<compile_context>
chip_gen: v5e
topology: v5e:2x2
jax: 0.10.0
libtpu: 0.0.40
codegen_flags: <defaults>
</compile_context>

<pallas_src>
import jax
import jax.numpy as jnp
import numpy as np
from jax.experimental import pallas as pl
from jax.experimental.pallas import tpu as pltpu


def _bottleneck_kernel(x_ref, w1_ref, b1_ref,
                       w2_ref, b2_ref,
                       w3_ref, b3_ref,
                       o_ref, pad_ref, col_ref):
    # x_ref : (1, H, W, Cin_p)      input block (also the residual)
    # w1_ref: (Cin_p, Cmid_p)       1x1 conv1, BN1 scale pre-folded
    # w2_ref: (9*Cmid_p, Cmid_p)    3x3 conv2, K-stacked (dy, dx, cin), BN2 folded
    # w3_ref: (Cmid_p, Cout_p)      1x1 conv3, BN3 scale pre-folded
    # b*    : (1, C*_p)             folded BatchNorm bias (f32)
    # o_ref : (1, H, W, Cout_p)
    # pad_ref: (H+2, W+2, Cmid_p)   zero-bordered intermediate for conv2
    # col_ref: (H*W, 9*Cmid_p)      im2col slab
    _, H, W, _ = x_ref.shape
    Hp2, Wp2, Cm = pad_ref.shape

    x = x_ref[0].reshape(H * W, x_ref.shape[-1])

    # ---- conv1 (1x1, scale folded into weight) + bias + relu ---------------
    a1 = jnp.dot(x, w1_ref[...], preferred_element_type=jnp.float32)
    h1 = jnp.maximum(a1 + b1_ref[0], 0.0)                       # (H*W, Cm) f32

    # ---- pad intermediate: zero only the 1-pixel border (every step, so it
    # ---- is safe under a "parallel"/multi-core grid), overwrite interior ---
    pad_ref[0:1, :, :] = jnp.zeros((1, Wp2, Cm), pad_ref.dtype)
    pad_ref[H + 1:H + 2, :, :] = jnp.zeros((1, Wp2, Cm), pad_ref.dtype)
    pad_ref[:, 0:1, :] = jnp.zeros((Hp2, 1, Cm), pad_ref.dtype)
    pad_ref[:, W + 1:W + 2, :] = jnp.zeros((Hp2, 1, Cm), pad_ref.dtype)
    pad_ref[1:H + 1, 1:W + 1, :] = h1.reshape(H, W, Cm).astype(pad_ref.dtype)

    # ---- build the im2col slab once (lane-aligned 128-multiple columns) ----
    t = 0
    for dy in range(3):
        for dx in range(3):
            tap = pad_ref[dy:dy + H, dx:dx + W, :]
            col_ref[:, t * Cm:(t + 1) * Cm] = tap.reshape(H * W, Cm)
            t += 1

    # ---- conv2 (3x3) as a single K = 9*Cmid matmul + bias + relu -----------
    a2 = jnp.dot(col_ref[...], w2_ref[...], preferred_element_type=jnp.float32)
    h2 = jnp.maximum(a2 + b2_ref[0], 0.0)                       # (H*W, Cm) f32

    # ---- conv3 (1x1) + bias + residual add + relu --------------------------
    a3 = jnp.dot(h2.astype(w3_ref.dtype), w3_ref[...],
                 preferred_element_type=jnp.float32)
    y = jnp.maximum(a3 + b3_ref[0] + x.astype(jnp.float32), 0.0)
    o_ref[0] = y.reshape(H, W, y.shape[-1]).astype(o_ref.dtype)


def _round_up(n, m=128):
    return ((n + m - 1) // m) * m


def bottleneck_pallas(x_nchw, w1, w2, w3,
                      g1, beta1, m1, v1,
                      g2, beta2, m2, v2,
                      g3, beta3, m3, v3,
                      eps=1e-5, compute_dtype=jnp.float32):
    """x_nchw: (N, Cin, H, W). Conv weights in HWIO: w1 (1,1,Cin,Cmid),
    w2 (3,3,Cmid,Cmid), w3 (1,1,Cmid,Cout). All convs are bias-free.
    compute_dtype: jnp.bfloat16 recommended on v6e/v7x (accumulation stays f32)."""
    N, Cin, H, W = x_nchw.shape
    Cmid = w1.shape[3]
    Cout = w3.shape[3]
    assert Cin == Cout, "identity residual requires inplanes == planes * expansion"
    Cin_p, Cmid_p, Cout_p = _round_up(Cin), _round_up(Cmid), _round_up(Cout)

    # NCHW -> NHWC, channels zero-padded to a multiple of 128 (lane-dense).
    x = jnp.transpose(x_nchw, (0, 2, 3, 1))
    x = jnp.pad(x, ((0, 0), (0, 0), (0, 0), (0, Cin_p - Cin))).astype(compute_dtype)

    # Fold eval-mode BatchNorm into per-channel scale / bias (f32); the scale
    # is then folded exactly into the conv weight's output-channel columns.
    def fold(g, b, m, v):
        s = (g / jnp.sqrt(v + eps)).astype(jnp.float32)
        return s, (b - m * (g / jnp.sqrt(v + eps))).astype(jnp.float32)

    def padvec(a, cp):
        return jnp.pad(a.astype(jnp.float32), (0, cp - a.shape[0])).reshape(1, cp)

    s1, b1 = fold(g1, beta1, m1, v1)
    s2, b2 = fold(g2, beta2, m2, v2)
    s3, b3 = fold(g3, beta3, m3, v3)
    b1p, b2p, b3p = padvec(b1, Cmid_p), padvec(b2, Cmid_p), padvec(b3, Cout_p)

    # Weights (BN scale folded in, f32), then padded + cast to compute dtype.
    w1f = w1[0, 0].astype(jnp.float32) * s1[None, :]                    # (Cin, Cmid)
    w2f = w2.astype(jnp.float32) * s2[None, None, None, :]              # (3,3,Cmid,Cmid)
    w3f = w3[0, 0].astype(jnp.float32) * s3[None, :]                    # (Cmid, Cout)

    w1m = jnp.pad(w1f, ((0, Cin_p - Cin), (0, Cmid_p - Cmid))).astype(compute_dtype)
    w2p = jnp.pad(w2f, ((0, 0), (0, 0), (0, Cmid_p - Cmid), (0, Cmid_p - Cmid)))
    w2s = w2p.reshape(9 * Cmid_p, Cmid_p).astype(compute_dtype)
    w3m = jnp.pad(w3f, ((0, Cmid_p - Cmid), (0, Cout_p - Cout))).astype(compute_dtype)

    full = lambda shape: pl.BlockSpec(shape, lambda n: (0,) * len(shape))

    out_nhwc = pl.pallas_call(
        _bottleneck_kernel,
        out_shape=jax.ShapeDtypeStruct((N, H, W, Cout_p), jnp.float32),
        grid_spec=pltpu.PrefetchScalarGridSpec(
            num_scalar_prefetch=0,
            grid=(N,),
            in_specs=[
                pl.BlockSpec((1, H, W, Cin_p), lambda n: (n, 0, 0, 0)),  # x (+ residual)
                full((Cin_p, Cmid_p)),                                   # w1 (scaled)
                full((1, Cmid_p)),                                       # b1
                full((9 * Cmid_p, Cmid_p)),                              # w2 (stacked, scaled)
                full((1, Cmid_p)),                                       # b2
                full((Cmid_p, Cout_p)),                                  # w3 (scaled)
                full((1, Cout_p)),                                       # b3
            ],
            out_specs=pl.BlockSpec((1, H, W, Cout_p), lambda n: (n, 0, 0, 0)),
            scratch_shapes=[
                pltpu.VMEM((H + 2, W + 2, Cmid_p), compute_dtype),       # padded conv2 input
                pltpu.VMEM((H * W, 9 * Cmid_p), compute_dtype),          # im2col slab
            ],
        ),
        compiler_params=pltpu.CompilerParams(dimension_semantics=("parallel",)),
    )(x, w1m, b1p, w2s, b2p, w3m, b3p)

    out = out_nhwc[..., :Cout]                     # drop channel padding
    return jnp.transpose(out, (0, 3, 1, 2))        # NHWC -> NCHW


def _reference(x_nchw, w1, w2, w3,
               g1, beta1, m1, v1, g2, beta2, m2, v2, g3, beta3, m3, v3, eps=1e-5):
    x = jnp.transpose(x_nchw, (0, 2, 3, 1))
    conv = lambda a, w: jax.lax.conv_general_dilated(
        a, w, (1, 1), 'SAME', dimension_numbers=('NHWC', 'HWIO', 'NHWC'))

    def fold(g, b, m, v):
        s = g / jnp.sqrt(v + eps)
        return s, b - m * s

    s1, b1 = fold(g1, beta1, m1, v1)
    s2, b2 = fold(g2, beta2, m2, v2)
    s3, b3 = fold(g3, beta3, m3, v3)
    y = jnp.maximum(conv(x, w1) * s1 + b1, 0.0)
    y = jnp.maximum(conv(y, w2) * s2 + b2, 0.0)
    y = conv(y, w3) * s3 + b3
    y = jnp.maximum(y + x, 0.0)
    return jnp.transpose(y, (0, 3, 1, 2))


if __name__ == "__main__":
    # Bottleneck(inplanes=16, planes=4, stride=1, cbam=None, downsample=None)
    N, planes, H, W = 2, 4, 16, 16
    expansion = 4
    Cmid = planes
    Cin = Cout = planes * expansion        # identity residual path

    key = jax.random.PRNGKey(0)
    ks = jax.random.split(key, 16)
    x = jax.random.normal(ks[0], (N, Cin, H, W), jnp.float32)
    # Conv weights in HWIO layout; all Bottleneck convs have bias=False.
    w1 = jax.random.normal(ks[1], (1, 1, Cin, Cmid), jnp.float32) * 0.2
    w2 = jax.random.normal(ks[2], (3, 3, Cmid, Cmid), jnp.float32) * 0.2
    w3 = jax.random.normal(ks[3], (1, 1, Cmid, Cout), jnp.float32) * 0.2

    def bn_params(kg, kb, km, kv, c):
        g = 1.0 + 0.1 * jax.random.normal(kg, (c,), jnp.float32)
        b = 0.1 * jax.random.normal(kb, (c,), jnp.float32)
        m = 0.1 * jax.random.normal(km, (c,), jnp.float32)
        v = jnp.abs(jax.random.normal(kv, (c,), jnp.float32)) + 0.5
        return g, b, m, v

    g1, beta1, m1, v1 = bn_params(ks[4], ks[5], ks[6], ks[7], Cmid)
    g2, beta2, m2, v2 = bn_params(ks[8], ks[9], ks[10], ks[11], Cmid)
    g3, beta3, m3, v3 = bn_params(ks[12], ks[13], ks[14], ks[15], Cout)

    out = bottleneck_pallas(x, w1, w2, w3,
                            g1, beta1, m1, v1,
                            g2, beta2, m2, v2,
                            g3, beta3, m3, v3)
    out = jax.block_until_ready(out)

    ref = _reference(x, w1, w2, w3,
                     g1, beta1, m1, v1,
                     g2, beta2, m2, v2,
                     g3, beta3, m3, v3)
    np.testing.assert_allclose(np.asarray(out), np.asarray(ref), atol=1e-4, rtol=1e-4)

    print("KERNEL_OK")
</pallas_src>

<mosaic_0001>
module attributes {stable_mosaic.version = 11 : i64} {
  func.func @_bottleneck_kernel(%arg0: i32, %arg1: memref<1x16x16x128xf32, #tpu.memory_space<vmem>>, %arg2: memref<128x128xf32, #tpu.memory_space<vmem>>, %arg3: memref<1x128xf32, #tpu.memory_space<vmem>>, %arg4: memref<1152x128xf32, #tpu.memory_space<vmem>>, %arg5: memref<1x128xf32, #tpu.memory_space<vmem>>, %arg6: memref<128x128xf32, #tpu.memory_space<vmem>>, %arg7: memref<1x128xf32, #tpu.memory_space<vmem>>, %arg8: memref<1x16x16x128xf32, #tpu.memory_space<vmem>>, %arg9: memref<18x18x128xf32, #tpu.memory_space<vmem>>, %arg10: memref<256x1152xf32, #tpu.memory_space<vmem>>) attributes {dimension_semantics = [#tpu.dimension_semantics<parallel>], iteration_bounds = array<i64: 2>, scalar_prefetch = 0 : i64, scratch_operands = 2 : i64, tpu.core_type = #tpu.core_type<tc>, window_params = [{transform_indices = @transform_0, window_bounds = array<i64: 1, 16, 16, 128>}, {pipeline_mode = #tpu.pipeline_mode<synchronous>, transform_indices = @transform_1, window_bounds = array<i64: 128, 128>}, {pipeline_mode = #tpu.pipeline_mode<synchronous>, transform_indices = @transform_2, window_bounds = array<i64: 1, 128>}, {pipeline_mode = #tpu.pipeline_mode<synchronous>, transform_indices = @transform_3, window_bounds = array<i64: 1152, 128>}, {pipeline_mode = #tpu.pipeline_mode<synchronous>, transform_indices = @transform_4, window_bounds = array<i64: 1, 128>}, {pipeline_mode = #tpu.pipeline_mode<synchronous>, transform_indices = @transform_5, window_bounds = array<i64: 128, 128>}, {pipeline_mode = #tpu.pipeline_mode<synchronous>, transform_indices = @transform_6, window_bounds = array<i64: 1, 128>}, {transform_indices = @transform_7, window_bounds = array<i64: 1, 16, 16, 128>}]} {
    %c0 = arith.constant 0 : index
    %c0_0 = arith.constant 0 : index
    %c0_1 = arith.constant 0 : index
    %c0_2 = arith.constant 0 : index
    %0 = vector.load %arg1[%c0, %c0_0, %c0_1, %c0_2] : memref<1x16x16x128xf32, #tpu.memory_space<vmem>>, vector<1x16x16x128xf32>
    %1 = vector.shape_cast %0 : vector<1x16x16x128xf32> to vector<16x16x128xf32>
    %2 = vector.shape_cast %1 : vector<16x16x128xf32> to vector<256x128xf32>
    %c0_3 = arith.constant 0 : index
    %c0_4 = arith.constant 0 : index
    %3 = vector.load %arg2[%c0_3, %c0_4] : memref<128x128xf32, #tpu.memory_space<vmem>>, vector<128x128xf32>
    %cst = arith.constant dense<0.000000e+00> : vector<256x128xf32>
    %4 = tpu.matmul %2, %3, %cst {dimension_numbers = #tpu.dot_dimension_numbers<[1], [0], [0], [1], [0, 0, 1, 1], [], []>} : vector<256x128xf32>, vector<128x128xf32>, vector<256x128xf32> -> vector<256x128xf32>
    %c0_5 = arith.constant 0 : index
    %c0_6 = arith.constant 0 : index
    %5 = vector.load %arg3[%c0_5, %c0_6] : memref<1x128xf32, #tpu.memory_space<vmem>>, vector<1x128xf32>
    %6 = vector.shape_cast %5 : vector<1x128xf32> to vector<128xf32>
    %7 = vector.shape_cast %6 : vector<128xf32> to vector<1x128xf32>
    %8 = vector.broadcast %7 : vector<1x128xf32> to vector<256x128xf32>
    %9 = arith.addf %4, %8 : vector<256x128xf32>
    %cst_7 = arith.constant 0.000000e+00 : f32
    %10 = vector.broadcast %cst_7 : f32 to vector<256x128xf32>
    %11 = arith.maximumf %9, %10 : vector<256x128xf32>
    %cst_8 = arith.constant 0.000000e+00 : f32
    %12 = vector.broadcast %cst_8 : f32 to vector<1x18x128xf32>
    %c0_9 = arith.constant 0 : index
    %c0_10 = arith.constant 0 : index
    %c0_11 = arith.constant 0 : index
    %13 = vector.load %arg9[%c0_9, %c0_10, %c0_11] : memref<18x18x128xf32, #tpu.memory_space<vmem>>, vector<1x18x128xf32>
    tpu.vector_store %arg9[%c0_9, %c0_10, %c0_11], %12 {strides = array<i32>} : memref<18x18x128xf32, #tpu.memory_space<vmem>>, vector<1x18x128xf32>,
    %cst_12 = arith.constant 0.000000e+00 : f32
    %14 = vector.broadcast %cst_12 : f32 to vector<1x18x128xf32>
    %c17 = arith.constant 17 : index
    %c0_13 = arith.constant 0 : index
    %c0_14 = arith.constant 0 : index
    %15 = vector.load %arg9[%c17, %c0_13, %c0_14] : memref<18x18x128xf32, #tpu.memory_space<vmem>>, vector<1x18x128xf32>
    tpu.vector_store %arg9[%c17, %c0_13, %c0_14], %14 {strides = array<i32>} : memref<18x18x128xf32, #tpu.memory_space<vmem>>, vector<1x18x128xf32>,
    %cst_15 = arith.constant 0.000000e+00 : f32
    %16 = vector.broadcast %cst_15 : f32 to vector<18x1x128xf32>
    %c0_16 = arith.constant 0 : index
    %c0_17 = arith.constant 0 : index
    %c0_18 = arith.constant 0 : index
    %17 = vector.load %arg9[%c0_16, %c0_17, %c0_18] : memref<18x18x128xf32, #tpu.memory_space<vmem>>, vector<18x1x128xf32>
    tpu.vector_store %arg9[%c0_16, %c0_17, %c0_18], %16 {strides = array<i32>} : memref<18x18x128xf32, #tpu.memory_space<vmem>>, vector<18x1x128xf32>,
    %cst_19 = arith.constant 0.000000e+00 : f32
    %18 = vector.broadcast %cst_19 : f32 to vector<18x1x128xf32>
    %c0_20 = arith.constant 0 : index
    %c17_21 = arith.constant 17 : index
    %c0_22 = arith.constant 0 : index
    %19 = vector.load %arg9[%c0_20, %c17_21, %c0_22] : memref<18x18x128xf32, #tpu.memory_space<vmem>>, vector<18x1x128xf32>
    tpu.vector_store %arg9[%c0_20, %c17_21, %c0_22], %18 {strides = array<i32>} : memref<18x18x128xf32, #tpu.memory_space<vmem>>, vector<18x1x128xf32>,
    %20 = vector.shape_cast %11 : vector<256x128xf32> to vector<16x16x128xf32>
    %c1 = arith.constant 1 : index
    %c1_23 = arith.constant 1 : index
    %c0_24 = arith.constant 0 : index
    %21 = vector.load %arg9[%c1, %c1_23, %c0_24] : memref<18x18x128xf32, #tpu.memory_space<vmem>>, vector<16x16x128xf32>
    tpu.vector_store %arg9[%c1, %c1_23, %c0_24], %20 {strides = array<i32>} : memref<18x18x128xf32, #tpu.memory_space<vmem>>, vector<16x16x128xf32>,
    %c0_25 = arith.constant 0 : index
    %c0_26 = arith.constant 0 : index
    %c0_27 = arith.constant 0 : index
    %22 = vector.load %arg9[%c0_25, %c0_26, %c0_27] : memref<18x18x128xf32, #tpu.memory_space<vmem>>, vector<16x16x128xf32>
    %23 = vector.shape_cast %22 : vector<16x16x128xf32> to vector<256x128xf32>
    %c0_28 = arith.constant 0 : index
    %c0_29 = arith.constant 0 : index
    %24 = vector.load %arg10[%c0_28, %c0_29] : memref<256x1152xf32, #tpu.memory_space<vmem>>, vector<256x128xf32>
    tpu.vector_store %arg10[%c0_28, %c0_29], %23 {strides = array<i32>} : memref<256x1152xf32, #tpu.memory_space<vmem>>, vector<256x128xf32>,
    %c0_30 = arith.constant 0 : index
    %c1_31 = arith.constant 1 : index
    %c0_32 = arith.constant 0 : index
    %25 = vector.load %arg9[%c0_30, %c1_31, %c0_32] : memref<18x18x128xf32, #tpu.memory_space<vmem>>, vector<16x16x128xf32>
    %26 = vector.shape_cast %25 : vector<16x16x128xf32> to vector<256x128xf32>
    %c0_33 = arith.constant 0 : index
    %c128 = arith.constant 128 : index
    %27 = vector.load %arg10[%c0_33, %c128] : memref<256x1152xf32, #tpu.memory_space<vmem>>, vector<256x128xf32>
    tpu.vector_store %arg10[%c0_33, %c128], %26 {strides = array<i32>} : memref<256x1152xf32, #tpu.memory_space<vmem>>, vector<256x128xf32>,
    %c0_34 = arith.constant 0 : index
    %c2 = arith.constant 2 : index
    %c0_35 = arith.constant 0 : index
    %28 = vector.load %arg9[%c0_34, %c2, %c0_35] : memref<18x18x128xf32, #tpu.memory_space<vmem>>, vector<16x16x128xf32>
    %29 = vector.shape_cast %28 : vector<16x16x128xf32> to vector<256x128xf32>
    %c0_36 = arith.constant 0 : index
    %c256 = arith.constant 256 : index
    %30 = vector.load %arg10[%c0_36, %c256] : memref<256x1152xf32, #tpu.memory_space<vmem>>, vector<256x128xf32>
    tpu.vector_store %arg10[%c0_36, %c256], %29 {strides = array<i32>} : memref<256x1152xf32, #tpu.memory_space<vmem>>, vector<256x128xf32>,
    %c1_37 = arith.constant 1 : index
    %c0_38 = arith.constant 0 : index
    %c0_39 = arith.constant 0 : index
    %31 = vector.load %arg9[%c1_37, %c0_38, %c0_39] : memref<18x18x128xf32, #tpu.memory_space<vmem>>, vector<16x16x128xf32>
    %32 = vector.shape_cast %31 : vector<16x16x128xf32> to vector<256x128xf32>
    %c0_40 = arith.constant 0 : index
    %c384 = arith.constant 384 : index
    %33 = vector.load %arg10[%c0_40, %c384] : memref<256x1152xf32, #tpu.memory_space<vmem>>, vector<256x128xf32>
    tpu.vector_store %arg10[%c0_40, %c384], %32 {strides = array<i32>} : memref<256x1152xf32, #tpu.memory_space<vmem>>, vector<256x128xf32>,
    %c1_41 = arith.constant 1 : index
    %c1_42 = arith.constant 1 : index
    %c0_43 = arith.constant 0 : index
    %34 = vector.load %arg9[%c1_41, %c1_42, %c0_43] : memref<18x18x128xf32, #tpu.memory_space<vmem>>, vector<16x16x128xf32>
    %35 = vector.shape_cast %34 : vector<16x16x128xf32> to vector<256x128xf32>
    %c0_44 = arith.constant 0 : index
    %c512 = arith.constant 512 : index
    %36 = vector.load %arg10[%c0_44, %c512] : memref<256x1152xf32, #tpu.memory_space<vmem>>, vector<256x128xf32>
    tpu.vector_store %arg10[%c0_44, %c512], %35 {strides = array<i32>} : memref<256x1152xf32, #tpu.memory_space<vmem>>, vector<256x128xf32>,
    %c1_45 = arith.constant 1 : index
    %c2_46 = arith.constant 2 : index
    %c0_47 = arith.constant 0 : index
    %37 = vector.load %arg9[%c1_45, %c2_46, %c0_47] : memref<18x18x128xf32, #tpu.memory_space<vmem>>, vector<16x16x128xf32>
    %38 = vector.shape_cast %37 : vector<16x16x128xf32> to vector<256x128xf32>
    %c0_48 = arith.constant 0 : index
    %c640 = arith.constant 640 : index
    %39 = vector.load %arg10[%c0_48, %c640] : memref<256x1152xf32, #tpu.memory_space<vmem>>, vector<256x128xf32>
    tpu.vector_store %arg10[%c0_48, %c640], %38 {strides = array<i32>} : memref<256x1152xf32, #tpu.memory_space<vmem>>, vector<256x128xf32>,
    %c2_49 = arith.constant 2 : index
    %c0_50 = arith.constant 0 : index
    %c0_51 = arith.constant 0 : index
    %40 = vector.load %arg9[%c2_49, %c0_50, %c0_51] : memref<18x18x128xf32, #tpu.memory_space<vmem>>, vector<16x16x128xf32>
    %41 = vector.shape_cast %40 : vector<16x16x128xf32> to vector<256x128xf32>
    %c0_52 = arith.constant 0 : index
    %c768 = arith.constant 768 : index
    %42 = vector.load %arg10[%c0_52, %c768] : memref<256x1152xf32, #tpu.memory_space<vmem>>, vector<256x128xf32>
    tpu.vector_store %arg10[%c0_52, %c768], %41 {strides = array<i32>} : memref<256x1152xf32, #tpu.memory_space<vmem>>, vector<256x128xf32>,
    %c2_53 = arith.constant 2 : index
    %c1_54 = arith.constant 1 : index
    %c0_55 = arith.constant 0 : index
    %43 = vector.load %arg9[%c2_53, %c1_54, %c0_55] : memref<18x18x128xf32, #tpu.memory_space<vmem>>, vector<16x16x128xf32>
    %44 = vector.shape_cast %43 : vector<16x16x128xf32> to vector<256x128xf32>
    %c0_56 = arith.constant 0 : index
    %c896 = arith.constant 896 : index
    %45 = vector.load %arg10[%c0_56, %c896] : memref<256x1152xf32, #tpu.memory_space<vmem>>, vector<256x128xf32>
    tpu.vector_store %arg10[%c0_56, %c896], %44 {strides = array<i32>} : memref<256x1152xf32, #tpu.memory_space<vmem>>, vector<256x128xf32>,
    %c2_57 = arith.constant 2 : index
    %c2_58 = arith.constant 2 : index
    %c0_59 = arith.constant 0 : index
    %46 = vector.load %arg9[%c2_57, %c2_58, %c0_59] : memref<18x18x128xf32, #tpu.memory_space<vmem>>, vector<16x16x128xf32>
    %47 = vector.shape_cast %46 : vector<16x16x128xf32> to vector<256x128xf32>
    %c0_60 = arith.constant 0 : index
    %c1024 = arith.constant 1024 : index
    %48 = vector.load %arg10[%c0_60, %c1024] : memref<256x1152xf32, #tpu.memory_space<vmem>>, vector<256x128xf32>
    tpu.vector_store %arg10[%c0_60, %c1024], %47 {strides = array<i32>} : memref<256x1152xf32, #tpu.memory_space<vmem>>, vector<256x128xf32>,
    %c0_61 = arith.constant 0 : index
    %c0_62 = arith.constant 0 : index
    %49 = vector.load %arg10[%c0_61, %c0_62] : memref<256x1152xf32, #tpu.memory_space<vmem>>, vector<256x1152xf32>
    %c0_63 = arith.constant 0 : index
    %c0_64 = arith.constant 0 : index
    %50 = vector.load %arg4[%c0_63, %c0_64] : memref<1152x128xf32, #tpu.memory_space<vmem>>, vector<1152x128xf32>
    %cst_65 = arith.constant dense<0.000000e+00> : vector<256x128xf32>
    %51 = tpu.matmul %49, %50, %cst_65 {dimension_numbers = #tpu.dot_dimension_numbers<[1], [0], [0], [1], [0, 0, 1, 1], [], []>} : vector<256x1152xf32>, vector<1152x128xf32>, vector<256x128xf32> -> vector<256x128xf32>
    %c0_66 = arith.constant 0 : index
    %c0_67 = arith.constant 0 : index
    %52 = vector.load %arg5[%c0_66, %c0_67] : memref<1x128xf32, #tpu.memory_space<vmem>>, vector<1x128xf32>
    %53 = vector.shape_cast %52 : vector<1x128xf32> to vector<128xf32>
    %54 = vector.shape_cast %53 : vector<128xf32> to vector<1x128xf32>
    %55 = vector.broadcast %54 : vector<1x128xf32> to vector<256x128xf32>
    %56 = arith.addf %51, %55 : vector<256x128xf32>
    %cst_68 = arith.constant 0.000000e+00 : f32
    %57 = vector.broadcast %cst_68 : f32 to vector<256x128xf32>
    %58 = arith.maximumf %56, %57 : vector<256x128xf32>
    %c0_69 = arith.constant 0 : index
    %c0_70 = arith.constant 0 : index
    %59 = vector.load %arg6[%c0_69, %c0_70] : memref<128x128xf32, #tpu.memory_space<vmem>>, vector<128x128xf32>
    %cst_71 = arith.constant dense<0.000000e+00> : vector<256x128xf32>
    %60 = tpu.matmul %58, %59, %cst_71 {dimension_numbers = #tpu.dot_dimension_numbers<[1], [0], [0], [1], [0, 0, 1, 1], [], []>} : vector<256x128xf32>, vector<128x128xf32>, vector<256x128xf32> -> vector<256x128xf32>
    %c0_72 = arith.constant 0 : index
    %c0_73 = arith.constant 0 : index
    %61 = vector.load %arg7[%c0_72, %c0_73] : memref<1x128xf32, #tpu.memory_space<vmem>>, vector<1x128xf32>
    %62 = vector.shape_cast %61 : vector<1x128xf32> to vector<128xf32>
    %63 = vector.shape_cast %62 : vector<128xf32> to vector<1x128xf32>
    %64 = vector.broadcast %63 : vector<1x128xf32> to vector<256x128xf32>
    %65 = arith.addf %60, %64 : vector<256x128xf32>
    %66 = arith.addf %65, %2 : vector<256x128xf32>
    %cst_74 = arith.constant 0.000000e+00 : f32
    %67 = vector.broadcast %cst_74 : f32 to vector<256x128xf32>
    %68 = arith.maximumf %66, %67 : vector<256x128xf32>
    %69 = vector.shape_cast %68 : vector<256x128xf32> to vector<16x16x128xf32>
    %c0_75 = arith.constant 0 : index
    %c0_76 = arith.constant 0 : index
    %c0_77 = arith.constant 0 : index
    %c0_78 = arith.constant 0 : index
    %70 = vector.load %arg8[%c0_75, %c0_76, %c0_77, %c0_78] : memref<1x16x16x128xf32, #tpu.memory_space<vmem>>, vector<1x16x16x128xf32>
    %71 = vector.shape_cast %70 : vector<1x16x16x128xf32> to vector<16x16x128xf32>
    %72 = vector.shape_cast %69 : vector<16x16x128xf32> to vector<1x16x16x128xf32>
    tpu.vector_store %arg8[%c0_75, %c0_76, %c0_77, %c0_78], %72 {strides = array<i32>} : memref<1x16x16x128xf32, #tpu.memory_space<vmem>>, vector<1x16x16x128xf32>,
    return
  }
  func.func @transform_0(%arg0: i32) -> (i32, i32, i32, i32) {
    %c0_i32 = arith.constant 0 : i32
    %c0_i32_0 = arith.constant 0 : i32
    %c0_i32_1 = arith.constant 0 : i32
    %c0_i32_2 = arith.constant 0 : i32
    return %arg0, %c0_i32, %c0_i32_0, %c0_i32_1 : i32, i32, i32, i32
  }
  func.func @transform_1(%arg0: i32) -> (i32, i32) {
    %c0_i32 = arith.constant 0 : i32
    %c0_i32_0 = arith.constant 0 : i32
    %c0_i32_1 = arith.constant 0 : i32
    return %c0_i32, %c0_i32_0 : i32, i32
  }
  func.func @transform_2(%arg0: i32) -> (i32, i32) {
    %c0_i32 = arith.constant 0 : i32
    %c0_i32_0 = arith.constant 0 : i32
    %c0_i32_1 = arith.constant 0 : i32
    return %c0_i32, %c0_i32_0 : i32, i32
  }
  func.func @transform_3(%arg0: i32) -> (i32, i32) {
    %c0_i32 = arith.constant 0 : i32
    %c0_i32_0 = arith.constant 0 : i32
    %c0_i32_1 = arith.constant 0 : i32
    return %c0_i32, %c0_i32_0 : i32, i32
  }
  func.func @transform_4(%arg0: i32) -> (i32, i32) {
    %c0_i32 = arith.constant 0 : i32
    %c0_i32_0 = arith.constant 0 : i32
    %c0_i32_1 = arith.constant 0 : i32
    return %c0_i32, %c0_i32_0 : i32, i32
  }
  func.func @transform_5(%arg0: i32) -> (i32, i32) {
    %c0_i32 = arith.constant 0 : i32
    %c0_i32_0 = arith.constant 0 : i32
    %c0_i32_1 = arith.constant 0 : i32
    return %c0_i32, %c0_i32_0 : i32, i32
  }
  func.func @transform_6(%arg0: i32) -> (i32, i32) {
    %c0_i32 = arith.constant 0 : i32
    %c0_i32_0 = arith.constant 0 : i32
    %c0_i32_1 = arith.constant 0 : i32
    return %c0_i32, %c0_i32_0 : i32, i32
  }
  func.func @transform_7(%arg0: i32) -> (i32, i32, i32, i32) {
    %c0_i32 = arith.constant 0 : i32
    %c0_i32_0 = arith.constant 0 : i32
    %c0_i32_1 = arith.constant 0 : i32
    %c0_i32_2 = arith.constant 0 : i32
    return %arg0, %c0_i32, %c0_i32_0, %c0_i32_1 : i32, i32, i32, i32
  }
}

</mosaic_0001>

<llo_original>
// kernel: tpu_custom_call.1
$region0: #{tpu_custom_call.1}
  #allocation0 [shape = 'u32[]', space=smem, size = 0x4, offset = 0x4, fixed_abs, tag = 'smem constant byte address 0x4 - core index']
  #allocation1 [shape = 'u32[72,128]{1,0:T(1,128)}', space=vmem, size = 0x9000, scoped, tag = 'internal scratch']
  #allocation2 [shape = 'f32[18,18,128]{2,1,0:T(8,128)}', space=vmem, size = 0x36000, scoped, tag = 'scratch operand']
  #allocation3 [shape = 'f32[256,1152]{1,0:T(8,128)}', space=vmem, size = 0x120000, scoped, tag = 'scratch operand']
  %s0 = inlined_call_operand.hbm [shape: f32[2,16,16,128], index: 0, kind: input, shape index: {}]
  %s1 = inlined_call_operand.hbm [shape: f32[128,128], index: 1, kind: input, shape index: {}]
  %s2 = inlined_call_operand.vmem [shape: f32[1,128], index: 2, kind: input, shape index: {}]
  %s3 = inlined_call_operand.hbm [shape: f32[1152,128], index: 3, kind: input, shape index: {}]
  %s4 = inlined_call_operand.vmem [shape: f32[1,128], index: 4, kind: input, shape index: {}]
  %s5 = inlined_call_operand.hbm [shape: f32[128,128], index: 5, kind: input, shape index: {}]
  %s6 = inlined_call_operand.vmem [shape: f32[1,128], index: 6, kind: input, shape index: {}]
  %s7 = inlined_call_operand.hbm [shape: f32[2,16,16,128], index: 7, kind: output, shape index: {}]
  %s8 = sld [smem:[#allocation0]]
  $region77: #{tpu_custom_call.1} parent=0
    _
  %s10 = ssub.s32 1, %s8
  %s11 = scalar_select 0, %s10, %s8
  $region1: #{tpu_custom_call.1} parent=0
    #allocation4 [shape = 'u8[262144]{0}', space=vmem, size = 0x40000, scoped, tag = 'input window, operand 0']
    #allocation5 [shape = 's32[2]{0}', space=sflag, size = 0x8, scoped, tag = 'scoped memory for tpu_custom_call.1']
    #allocation6 [shape = 's32[2]{0}', space=sflag, size = 0x8, scoped, tag = 'scoped memory for tpu_custom_call.1']
    #allocation7 [shape = 'u8[65536]{0}', space=vmem, size = 0x10000, scoped, tag = 'input window, operand 1, single buffered']
    #allocation8 [shape = 's32[1]{0}', space=sflag, size = 0x4, scoped, tag = 'scoped memory for tpu_custom_call.1']
    #allocation9 [shape = 'u8[589824]{0}', space=vmem, size = 0x90000, scoped, tag = 'input window, operand 3, single buffered']
    #allocation10 [shape = 'u8[65536]{0}', space=vmem, size = 0x10000, scoped, tag = 'input window, operand 5, single buffered']
    #allocation11 [shape = 's32[1]{0}', space=sflag, size = 0x4, scoped, tag = 'scoped memory for tpu_custom_call.1']
    #allocation12 [shape = 'u8[262144]{0}', space=vmem, size = 0x40000, scoped, tag = 'output window, operand 0']
    %12 = vsyncpa [#allocation5], 0
    %s13 = scalar_lea.sflag [#allocation5], 1
    %14 = vsyncpa %s13, 0
    %15 = vsyncpa [#allocation8], 0
    %16 = vsyncpa [#allocation11], 0
    %17 = vsyncpa [#allocation6], 0
    %s18 = scalar_lea.sflag [#allocation6], 1
    %19 = vsyncpa %s18, 0
    loop: start=0, step=1, limit=4
    $region2: #{tpu_custom_call.1} parent=1 // loop_pre_header
      _
    $region3: #{tpu_custom_call.1} parent=1 // loop_header
      %s21 = sphi 0, %s25
      %p22 = scmp.ge.s32.totalorder %s21, 4
      %s31 = sphi 0, %s33
      %s34 = sphi 0, %s31
      %s35 = sphi 0, %s34
      %s51 = sphi 0, %s35
      %s55 = sphi 0, %s55
      %s57 = sphi 0, %s55
      %s58 = sphi 0, %s57
      %s72 = sphi 0, %s58
      %s76 = sphi 0, %s76
      %s78 = sphi 0, %s76
      %s79 = sphi 0, %s78
      %s93 = sphi 0, %s79
      %s97 = sphi 0, %s97
      %s99 = sphi 0, %s97
      %s100 = sphi 0, %s99
      %s114 = sphi 0, %s100
      %s118 = sphi 0, %s118
      %s120 = sphi 0, %s118
      %s121 = sphi 0, %s120
      %s135 = sphi 0, %s121
      %s139 = sphi 0, %s139
      %s141 = sphi 0, %s139
      %s142 = sphi 0, %s141
      %s156 = sphi 0, %s142
      %s160 = sphi 0, %s160
      %s162 = sphi 0, %s160
      %s163 = sphi 0, %s162
      %s177 = sphi 0, %s163
      %s183 = sphi 0, %s185
      %s186 = sphi 0, %s183
      %s187 = sphi 0, %s186
      %s203 = sphi 0, %s187
    $region4: #{tpu_custom_call.1} parent=1 // loop_header_branch
      %24 = sbr.rel (%p22) target = $region8
    $region5: #{tpu_custom_call.1} parent=1 // loop_body
      %s26 = ssub.s32 %s21, 1
      %s27 = ssub.s32 %s21, 2
      %s28 = sadd.s32 %s21, 1
      %s29 = ssub.s32 %s21, %s28
      %p30 = scmp.eq.s32.totalorder %s29, 0
      %s32 = sadd.s32 %s31, 1
      %s33 = scalar_select %p30, %s31, %s32
      %p36 = pneg %p30
      %p37 = scmp.eq.s32.totalorder %s21, 1
      %p38 = por %p36, %p37
      %p39 = scmp.ne.s32.totalorder %s31, %s34
      %p40 = scmp.eq.s32.totalorder %s21, 0
      %p41 = por %p39, %p40
      %p42 = scmp.ne.s32.totalorder %s31, %s34
      %p43 = scmp.eq.s32.totalorder %s26, 1
      %p44 = por %p42, %p43
      %p45 = scmp.ne.s32.totalorder %s34, %s35
      %p46 = scmp.eq.s32.totalorder %s26, 0
      %p47 = por %p45, %p46
      %p48 = scmp.ne.s32.totalorder %s34, %s35
      %p49 = scmp.eq.s32.totalorder %s27, 1
      %p50 = por %p48, %p49
      %p52 = scmp.ne.s32.totalorder %s35, %s51
      %p53 = scmp.eq.s32.totalorder %s27, 0
      %p54 = por %p52, %p53
      %s56 = sadd.s32 %s55, 1
      %p59 = scmp.eq.s32.totalorder %s21, 1
      %p60 = scmp.ne.s32.totalorder %s55, %s57
      %p61 = scmp.eq.s32.totalorder %s21, 0
      %p62 = por %p60, %p61
      %p63 = scmp.ne.s32.totalorder %s55, %s57
      %p64 = scmp.eq.s32.totalorder %s26, 1
      %p65 = por %p63, %p64
      %p66 = scmp.ne.s32.totalorder %s57, %s58
      %p67 = scmp.eq.s32.totalorder %s26, 0
      %p68 = por %p66, %p67
      %p69 = scmp.ne.s32.totalorder %s57, %s58
      %p70 = scmp.eq.s32.totalorder %s27, 1
      %p71 = por %p69, %p70
      %p73 = scmp.ne.s32.totalorder %s58, %s72
      %p74 = scmp.eq.s32.totalorder %s27, 0
      %p75 = por %p73, %p74
      %s77 = sadd.s32 %s76, 1
      %p80 = scmp.eq.s32.totalorder %s21, 1
      %p81 = scmp.ne.s32.totalorder %s76, %s78
      %p82 = scmp.eq.s32.totalorder %s21, 0
      %p83 = por %p81, %p82
      %p84 = scmp.ne.s32.totalorder %s76, %s78
      %p85 = scmp.eq.s32.totalorder %s26, 1
      %p86 = por %p84, %p85
      %p87 = scmp.ne.s32.totalorder %s78, %s79
      %p88 = scmp.eq.s32.totalorder %s26, 0
      %p89 = por %p87, %p88
      %p90 = scmp.ne.s32.totalorder %s78, %s79
      %p91 = scmp.eq.s32.totalorder %s27, 1
      %p92 = por %p90, %p91
      %p94 = scmp.ne.s32.totalorder %s79, %s93
      %p95 = scmp.eq.s32.totalorder %s27, 0
      %p96 = por %p94, %p95
      %s98 = sadd.s32 %s97, 1
      %p101 = scmp.eq.s32.totalorder %s21, 1
      %p102 = scmp.ne.s32.totalorder %s97, %s99
      %p103 = scmp.eq.s32.totalorder %s21, 0
      %p104 = por %p102, %p103
      %p105 = scmp.ne.s32.totalorder %s97, %s99
      %p106 = scmp.eq.s32.totalorder %s26, 1
      %p107 = por %p105, %p106
      %p108 = scmp.ne.s32.totalorder %s99, %s100
      %p109 = scmp.eq.s32.totalorder %s26, 0
      %p110 = por %p108, %p109
      %p111 = scmp.ne.s32.totalorder %s99, %s100
      %p112 = scmp.eq.s32.totalorder %s27, 1
      %p113 = por %p111, %p112
      %p115 = scmp.ne.s32.totalorder %s100, %s114
      %p116 = scmp.eq.s32.totalorder %s27, 0
      %p117 = por %p115, %p116
      %s119 = sadd.s32 %s118, 1
      %p122 = scmp.eq.s32.totalorder %s21, 1
      %p123 = scmp.ne.s32.totalorder %s118, %s120
      %p124 = scmp.eq.s32.totalorder %s21, 0
      %p125 = por %p123, %p124
      %p126 = scmp.ne.s32.totalorder %s118, %s120
      %p127 = scmp.eq.s32.totalorder %s26, 1
      %p128 = por %p126, %p127
      %p129 = scmp.ne.s32.totalorder %s120, %s121
      %p130 = scmp.eq.s32.totalorder %s26, 0
      %p131 = por %p129, %p130
      %p132 = scmp.ne.s32.totalorder %s120, %s121
      %p133 = scmp.eq.s32.totalorder %s27, 1
      %p134 = por %p132, %p133
      %p136 = scmp.ne.s32.totalorder %s121, %s135
      %p137 = scmp.eq.s32.totalorder %s27, 0
      %p138 = por %p136, %p137
      %s140 = sadd.s32 %s139, 1
      %p143 = scmp.eq.s32.totalorder %s21, 1
      %p144 = scmp.ne.s32.totalorder %s139, %s141
      %p145 = scmp.eq.s32.totalorder %s21, 0
      %p146 = por %p144, %p145
      %p147 = scmp.ne.s32.totalorder %s139, %s141
      %p148 = scmp.eq.s32.totalorder %s26, 1
      %p149 = por %p147, %p148
      %p150 = scmp.ne.s32.totalorder %s141, %s142
      %p151 = scmp.eq.s32.totalorder %s26, 0
      %p152 = por %p150, %p151
      %p153 = scmp.ne.s32.totalorder %s141, %s142
      %p154 = scmp.eq.s32.totalorder %s27, 1
      %p155 = por %p153, %p154
      %p157 = scmp.ne.s32.totalorder %s142, %s156
      %p158 = scmp.eq.s32.totalorder %s27, 0
      %p159 = por %p157, %p158
      %s161 = sadd.s32 %s160, 1
      %p164 = scmp.eq.s32.totalorder %s21, 1
      %p165 = scmp.ne.s32.totalorder %s160, %s162
      %p166 = scmp.eq.s32.totalorder %s21, 0
      %p167 = por %p165, %p166
      %p168 = scmp.ne.s32.totalorder %s160, %s162
      %p169 = scmp.eq.s32.totalorder %s26, 1
      %p170 = por %p168, %p169
      %p171 = scmp.ne.s32.totalorder %s162, %s163
      %p172 = scmp.eq.s32.totalorder %s26, 0
      %p173 = por %p171, %p172
      %p174 = scmp.ne.s32.totalorder %s162, %s163
      %p175 = scmp.eq.s32.totalorder %s27, 1
      %p176 = por %p174, %p175
      %p178 = scmp.ne.s32.totalorder %s163, %s177
      %p179 = scmp.eq.s32.totalorder %s27, 0
      %p180 = por %p178, %p179
      %s181 = ssub.s32 %s21, %s28
      %p182 = scmp.eq.s32.totalorder %s181, 0
      %s184 = sadd.s32 %s183, 1
      %s185 = scalar_select %p182, %s183, %s184
      %p188 = pneg %p182
      %p189 = scmp.eq.s32.totalorder %s21, 1
      %p190 = por %p188, %p189
      %p191 = scmp.ne.s32.totalorder %s183, %s186
      %p192 = scmp.eq.s32.totalorder %s21, 0
      %p193 = por %p191, %p192
      %p194 = scmp.ne.s32.totalorder %s183, %s186
      %p195 = scmp.eq.s32.totalorder %s26, 1
      %p196 = por %p194, %p195
      %p197 = scmp.ne.s32.totalorder %s186, %s187
      %p198 = scmp.eq.s32.totalorder %s26, 0
      %p199 = por %p197, %p198
      %p200 = scmp.ne.s32.totalorder %s186, %s187
      %p201 = scmp.eq.s32.totalorder %s27, 1
      %p202 = por %p200, %p201
      %p204 = scmp.ne.s32.totalorder %s187, %s203
      %p205 = scmp.eq.s32.totalorder %s27, 0
      %p206 = por %p204, %p205
      %p207 = scmp.le.s32.totalorder 1, %s21
      %p208 = scmp.lt.s32.totalorder %s21, 3
      %p209 = pnand %p207, %p208
      %p210 = pneg %p209
      // Predicated region
      $region9: #{tpu_custom_call.1} parent=5 // pred_check
        _
      $region10: #{tpu_custom_call.1} parent=5 // pred_check_branch
        %212 = sbr.rel (%p209) target = $region12
      $region11: #{tpu_custom_call.1} parent=5 // pred_region
        %s213 = ssub.s32 %s21, 1
        // Predicated region
        $region13: #{tpu_custom_call.1} parent=11 // pred_check
          %p214 = pneg %p68
        $region14: #{tpu_custom_call.1} parent=11 // pred_check_branch
          %216 = sbr.rel (%p214) target = $region16
        $region15: #{tpu_custom_call.1} parent=11 // pred_region
          %218 = vsyncadd [#allocation8], 0
          %s219 = sshll.u32 %s1, 4
          %s220 = int_to_ptr.hbm [resolvable:$true] %s219
          %s221 = sshll.u32 [#allocation7], 4
          %s222 = int_to_ptr.vmem [resolvable:$true] %s221
          %227 = dma.hbm_to_vmem [thread:$0]  %s220, 2048, %s222, [#allocation8], 128, 128, 8
        $region16: #{tpu_custom_call.1} parent=11 // pred_fallthru
          _
        // Predicated region
        $region17: #{tpu_custom_call.1} parent=11 // pred_check
          %p228 = pneg %p89
        $region18: #{tpu_custom_call.1} parent=11 // pred_check_branch
          %230 = sbr.rel (%p228) target = $region20
        $region19: #{tpu_custom_call.1} parent=11 // pred_region
          _
        $region20: #{tpu_custom_call.1} parent=11 // pred_fallthru
          _
        // Predicated region
        $region21: #{tpu_custom_call.1} parent=11 // pred_check
          %p231 = pneg %p110
        $region22: #{tpu_custom_call.1} parent=11 // pred_check_branch
          %233 = sbr.rel (%p231) target = $region24
        $region23: #{tpu_custom_call.1} parent=11 // pred_region
          %235 = vsyncadd [#allocation8], 0
          %s236 = sshll.u32 %s3, 4
          %s237 = int_to_ptr.hbm [resolvable:$true] %s236
          %s238 = sshll.u32 [#allocation9], 4
          %s239 = int_to_ptr.vmem [resolvable:$true] %s238
          %244 = dma.hbm_to_vmem [thread:$0]  %s237, 18432, %s239, [#allocation8], 128, 128, 8
        $region24: #{tpu_custom_call.1} parent=11 // pred_fallthru
          _
        // Predicated region
        $region25: #{tpu_custom_call.1} parent=11 // pred_check
          %p245 = pneg %p131
        $region26: #{tpu_custom_call.1} parent=11 // pred_check_branch
          %247 = sbr.rel (%p245) target = $region28
        $region27: #{tpu_custom_call.1} parent=11 // pred_region
          _
        $region28: #{tpu_custom_call.1} parent=11 // pred_fallthru
          _
        // Predicated region
        $region29: #{tpu_custom_call.1} parent=11 // pred_check
          %p248 = pneg %p152
        $region30: #{tpu_custom_call.1} parent=11 // pred_check_branch
          %250 = sbr.rel (%p248) target = $region32
        $region31: #{tpu_custom_call.1} parent=11 // pred_region
          %252 = vsyncadd [#allocation11], 0
          %s253 = sshll.u32 %s5, 4
          %s254 = int_to_ptr.hbm [resolvable:$true] %s253
          %s255 = sshll.u32 [#allocation10], 4
          %s256 = int_to_ptr.vmem [resolvable:$true] %s255
          %261 = dma.hbm_to_vmem [thread:$0]  %s254, 2048, %s256, [#allocation11], 128, 128, 8
        $region32: #{tpu_custom_call.1} parent=11 // pred_fallthru
          _
        // Predicated region
        $region33: #{tpu_custom_call.1} parent=11 // pred_check
          %p262 = pneg %p173
        $region34: #{tpu_custom_call.1} parent=11 // pred_check_branch
          %264 = sbr.rel (%p262) target = $region36
        $region35: #{tpu_custom_call.1} parent=11 // pred_region
          _
        $region36: #{tpu_custom_call.1} parent=11 // pred_fallthru
          _
      $region12: #{tpu_custom_call.1} parent=5 // pred_fallthru
        _
      %p265 = scmp.lt.s32.totalorder %s21, 2
      // Predicated region
      $region37: #{tpu_custom_call.1} parent=5 // pred_check
        %p266 = pneg %p265
      $region38: #{tpu_custom_call.1} parent=5 // pred_check_branch
        %268 = sbr.rel (%p266) target = $region40
      $region39: #{tpu_custom_call.1} parent=5 // pred_region
        // Predicated region
        $region41: #{tpu_custom_call.1} parent=39 // pred_check
          %p269 = pneg %p41
        $region42: #{tpu_custom_call.1} parent=39 // pred_check_branch
          %271 = sbr.rel (%p269) target = $region44
        $region43: #{tpu_custom_call.1} parent=39 // pred_region
          %s272 = sand.u32 %s31, 1
          %s273 = scalar_lea.sflag [#allocation5], %s272
          %s274 = sand.u32 %s31, 1
          %s275 = smul.addr %s274, 256
          %s276 = scalar_lea.vmem [#allocation4], %s275
          %278 = vsyncadd %s273, 0
          %s279 = smul.addr %s21, 32
          %s280 = smul.addr %s279, 8
          %s281 = scalar_lea.hbm %s0, %s280
          %s282 = sshll.u32 %s281, 4
          %s283 = int_to_ptr.hbm [resolvable:$true] %s282
          %s284 = sshll.u32 %s276, 4
          %s285 = int_to_ptr.vmem [resolvable:$true] %s284
          %290 = dma.hbm_to_vmem [thread:$0]  %s283, 4096, %s285, %s273, 128, 128, 8
        $region44: #{tpu_custom_call.1} parent=39 // pred_fallthru
          _
      $region40: #{tpu_custom_call.1} parent=5 // pred_fallthru
        _
      %p291 = scmp.le.s32.totalorder 1, %s21
      %p292 = scmp.lt.s32.totalorder %s21, 3
      %p293 = pnand %p291, %p292
      %p294 = pneg %p293
      // Predicated region
      $region45: #{tpu_custom_call.1} parent=5 // pred_check
        _
      $region46: #{tpu_custom_call.1} parent=5 // pred_check_branch
        %296 = sbr.rel (%p293) target = $region48
      $region47: #{tpu_custom_call.1} parent=5 // pred_region
        %s297 = ssub.s32 %s21, 1
        %s298 = sand.u32 %s34, 1
        %s299 = scalar_lea.sflag [#allocation5], %s298
        %s300 = sand.u32 %s34, 1
        %s301 = smul.addr %s300, 256
        %s302 = scalar_lea.vmem [#allocation4], %s301
        // Predicated region
        $region49: #{tpu_custom_call.1} parent=47 // pred_check
          %p303 = pneg %p47
        $region50: #{tpu_custom_call.1} parent=47 // pred_check_branch
          %305 = sbr.rel (%p303) target = $region52
        $region51: #{tpu_custom_call.1} parent=47 // pred_region
          %307 = dma.done %s299, 4096
        $region52: #{tpu_custom_call.1} parent=47 // pred_fallthru
          _
        // Predicated region
        $region53: #{tpu_custom_call.1} parent=47 // pred_check
          %p308 = pneg %p68
        $region54: #{tpu_custom_call.1} parent=47 // pred_check_branch
          %310 = sbr.rel (%p308) target = $region56
        $region55: #{tpu_custom_call.1} parent=47 // pred_region
          %312 = dma.done [#allocation8], 2048
        $region56: #{tpu_custom_call.1} parent=47 // pred_fallthru
          _
        // Predicated region
        $region57: #{tpu_custom_call.1} parent=47 // pred_check
          %p313 = pneg %p110
        $region58: #{tpu_custom_call.1} parent=47 // pred_check_branch
          %315 = sbr.rel (%p313) target = $region60
        $region59: #{tpu_custom_call.1} parent=47 // pred_region
          %317 = dma.done [#allocation8], 18432
        $region60: #{tpu_custom_call.1} parent=47 // pred_fallthru
          _
        // Predicated region
        $region61: #{tpu_custom_call.1} parent=47 // pred_check
          %p318 = pneg %p152
        $region62: #{tpu_custom_call.1} parent=47 // pred_check_branch
          %320 = sbr.rel (%p318) target = $region64
        $region63: #{tpu_custom_call.1} parent=47 // pred_region
          %322 = dma.done [#allocation11], 2048
        $region64: #{tpu_custom_call.1} parent=47 // pred_fallthru
          _
        %s323 = sand.u32 %s34, 1
        %s324 = scalar_lea.sflag [#allocation5], %s323
        %s325 = sand.u32 %s34, 1
        %s326 = smul.addr %s325, 256
        %s327 = scalar_lea.vmem [#allocation4], %s326
        %p328 = pneg %p47
        %p329 = pneg %p44
        %p330 = pneg %p68
        %p331 = pneg %p65
        %p332 = pneg %p89
        %p333 = pneg %p86
        %p334 = pneg %p110
        %p335 = pneg %p107
        %p336 = pneg %p131
        %p337 = pneg %p128
        %p338 = pneg %p152
        %p339 = pneg %p149
        %p340 = pneg %p173
        %p341 = pneg %p170
        %p342 = pneg %p199
        %p343 = pneg %p196
        %s344 = sand.u32 %s186, 1
        %s345 = scalar_lea.sflag [#allocation6], %s344
        %s346 = sand.u32 %s186, 1
        %s347 = smul.addr %s346, 256
        %s348 = scalar_lea.vmem [#allocation12], %s347
        %v349 = vld [vmem:[%s302] sm:$0xff]
        %v350 = vld [vmem:[%s302 + $0x8] sm:$0xff]
        %v351 = vld [vmem:[%s302 + $0x10] sm:$0xff]
        %v352 = vld [vmem:[%s302 + $0x18] sm:$0xff]
        %v353 = vld [vmem:[%s302 + $0x20] sm:$0xff]
        %v354 = vld [vmem:[%s302 + $0x28] sm:$0xff]
        %v355 = vld [vmem:[%s302 + $0x30] sm:$0xff]
        %v356 = vld [vmem:[%s302 + $0x38] sm:$0xff]
        %v357 = vld [vmem:[%s302 + $0x40] sm:$0xff]
        %v358 = vld [vmem:[%s302 + $0x48] sm:$0xff]
        %v359 = vld [vmem:[%s302 + $0x50] sm:$0xff]
        %v360 = vld [vmem:[%s302 + $0x58] sm:$0xff]
        %v361 = vld [vmem:[%s302 + $0x60] sm:$0xff]
        %v362 = vld [vmem:[%s302 + $0x68] sm:$0xff]
        %v363 = vld [vmem:[%s302 + $0x70] sm:$0xff]
        %v364 = vld [vmem:[%s302 + $0x78] sm:$0xff]
        %v365 = vld [vmem:[%s302 + $0x80] sm:$0xff]
        %v366 = vld [vmem:[%s302 + $0x88] sm:$0xff]
        %v367 = vld [vmem:[%s302 + $0x90] sm:$0xff]
        %v368 = vld [vmem:[%s302 + $0x98] sm:$0xff]
        %v369 = vld [vmem:[%s302 + $0xa0] sm:$0xff]
        %v370 = vld [vmem:[%s302 + $0xa8] sm:$0xff]
        %v371 = vld [vmem:[%s302 + $0xb0] sm:$0xff]
        %v372 = vld [vmem:[%s302 + $0xb8] sm:$0xff]
        %v373 = vld [vmem:[%s302 + $0xc0] sm:$0xff]
        %v374 = vld [vmem:[%s302 + $0xc8] sm:$0xff]
        %v375 = vld [vmem:[%s302 + $0xd0] sm:$0xff]
        %v376 = vld [vmem:[%s302 + $0xd8] sm:$0xff]
        %v377 = vld [vmem:[%s302 + $0xe0] sm:$0xff]
        %v378 = vld [vmem:[%s302 + $0xe8] sm:$0xff]
        %v379 = vld [vmem:[%s302 + $0xf0] sm:$0xff]
        %v380 = vld [vmem:[%s302 + $0xf8] sm:$0xff]
        %v381 = vld [vmem:[#allocation7] sm:$0xff]
        %v382 = vld [vmem:[#allocation7 + $0x8] sm:$0xff]
        %v383 = vld [vmem:[#allocation7 + $0x10] sm:$0xff]
        %v384 = vld [vmem:[#allocation7 + $0x18] sm:$0xff]
        %v385 = vld [vmem:[#allocation7 + $0x20] sm:$0xff]
        %v386 = vld [vmem:[#allocation7 + $0x28] sm:$0xff]
        %v387 = vld [vmem:[#allocation7 + $0x30] sm:$0xff]
        %v388 = vld [vmem:[#allocation7 + $0x38] sm:$0xff]
        %v389 = vld [vmem:[#allocation7 + $0x40] sm:$0xff]
        %v390 = vld [vmem:[#allocation7 + $0x48] sm:$0xff]
        %v391 = vld [vmem:[#allocation7 + $0x50] sm:$0xff]
        %v392 = vld [vmem:[#allocation7 + $0x58] sm:$0xff]
        %v393 = vld [vmem:[#allocation7 + $0x60] sm:$0xff]
        %v394 = vld [vmem:[#allocation7 + $0x68] sm:$0xff]
        %v395 = vld [vmem:[#allocation7 + $0x70] sm:$0xff]
        %v396 = vld [vmem:[#allocation7 + $0x78] sm:$0xff]
        %v397 = vld [vmem:[%s2] sm:$0x1]
        %v399 = vperm.slane %v397, 0
        %401 = vmatpush.msra.mxu0 %v396
        %402 = vmatpush.msra.mxu0 %v395
        %403 = vmatpush.msra.mxu0 %v394
        %404 = vmatpush.msra.mxu0 %v393
        %405 = vmatpush.msra.mxu0 %v392
        %406 = vmatpush.msra.mxu0 %v391
        %407 = vmatpush.msra.mxu0 %v390
        %408 = vmatpush.msra.mxu0 %v389
        %409 = vmatpush.msra.mxu0 %v388
        %410 = vmatpush.msra.mxu0 %v387
        %411 = vmatpush.msra.mxu0 %v386
        %412 = vmatpush.msra.mxu0 %v385
        %413 = vmatpush.msra.mxu0 %v384
        %414 = vmatpush.msra.mxu0 %v383
        %415 = vmatpush.msra.mxu0 %v382
        %416 = vmatpush.msra.mxu0 %v381
        %417 = vmatmul.f32.gmra.mxu0 %v349
        %v418 = vpop.f32.mrf.mxu0
        %v419 = vadd.f32 %v399, %v418
        %420 = vmatmul.f32.gmra.mxu0 %v350
        %v421 = vpop.f32.mrf.mxu0
        %v422 = vadd.f32 %v399, %v421
        %423 = vmatmul.f32.gmra.mxu0 %v351
        %v424 = vpop.f32.mrf.mxu0
        %v425 = vadd.f32 %v399, %v424
        %426 = vmatmul.f32.gmra.mxu0 %v352
        %v427 = vpop.f32.mrf.mxu0
        %v428 = vadd.f32 %v399, %v427
        %429 = vmatmul.f32.gmra.mxu0 %v353
        %v430 = vpop.f32.mrf.mxu0
        %v431 = vadd.f32 %v399, %v430
        %432 = vmatmul.f32.gmra.mxu0 %v354
        %v433 = vpop.f32.mrf.mxu0
        %v434 = vadd.f32 %v399, %v433
        %435 = vmatmul.f32.gmra.mxu0 %v355
        %v436 = vpop.f32.mrf.mxu0
        %v437 = vadd.f32 %v399, %v436
        %438 = vmatmul.f32.gmra.mxu0 %v356
        %v439 = vpop.f32.mrf.mxu0
        %v440 = vadd.f32 %v399, %v439
        %441 = vmatmul.f32.gmra.mxu0 %v357
        %v442 = vpop.f32.mrf.mxu0
        %v443 = vadd.f32 %v399, %v442
        %444 = vmatmul.f32.gmra.mxu0 %v358
        %v445 = vpop.f32.mrf.mxu0
        %v446 = vadd.f32 %v399, %v445
        %447 = vmatmul.f32.gmra.mxu0 %v359
        %v448 = vpop.f32.mrf.mxu0
        %v449 = vadd.f32 %v399, %v448
        %450 = vmatmul.f32.gmra.mxu0 %v360
        %v451 = vpop.f32.mrf.mxu0
        %v452 = vadd.f32 %v399, %v451
        %453 = vmatmul.f32.gmra.mxu0 %v361
        %v454 = vpop.f32.mrf.mxu0
        %v455 = vadd.f32 %v399, %v454
        %456 = vmatmul.f32.gmra.mxu0 %v362
        %v457 = vpop.f32.mrf.mxu0
        %v458 = vadd.f32 %v399, %v457
        %459 = vmatmul.f32.gmra.mxu0 %v363
        %v460 = vpop.f32.mrf.mxu0
        %v461 = vadd.f32 %v399, %v460
        %462 = vmatmul.f32.gmra.mxu0 %v364
        %v463 = vpop.f32.mrf.mxu0
        %v464 = vadd.f32 %v399, %v463
        %465 = vmatmul.f32.gmra.mxu0 %v365
        %v466 = vpop.f32.mrf.mxu0
        %v467 = vadd.f32 %v399, %v466
        %468 = vmatmul.f32.gmra.mxu0 %v366
        %v469 = vpop.f32.mrf.mxu0
        %v470 = vadd.f32 %v399, %v469
        %471 = vmatmul.f32.gmra.mxu0 %v367
        %v472 = vpop.f32.mrf.mxu0
        %v473 = vadd.f32 %v399, %v472
        %474 = vmatmul.f32.gmra.mxu0 %v368
        %v475 = vpop.f32.mrf.mxu0
        %v476 = vadd.f32 %v399, %v475
        %477 = vmatmul.f32.gmra.mxu0 %v369
        %v478 = vpop.f32.mrf.mxu0
        %v479 = vadd.f32 %v399, %v478
        %480 = vmatmul.f32.gmra.mxu0 %v370
        %v481 = vpop.f32.mrf.mxu0
        %v482 = vadd.f32 %v399, %v481
        %483 = vmatmul.f32.gmra.mxu0 %v371
        %v484 = vpop.f32.mrf.mxu0
        %v485 = vadd.f32 %v399, %v484
        %486 = vmatmul.f32.gmra.mxu0 %v372
        %v487 = vpop.f32.mrf.mxu0
        %v488 = vadd.f32 %v399, %v487
        %489 = vmatmul.f32.gmra.mxu0 %v373
        %v490 = vpop.f32.mrf.mxu0
        %v491 = vadd.f32 %v399, %v490
        %492 = vmatmul.f32.gmra.mxu0 %v374
        %v493 = vpop.f32.mrf.mxu0
        %v494 = vadd.f32 %v399, %v493
        %495 = vmatmul.f32.gmra.mxu0 %v375
        %v496 = vpop.f32.mrf.mxu0
        %v497 = vadd.f32 %v399, %v496
        %498 = vmatmul.f32.gmra.mxu0 %v376
        %v499 = vpop.f32.mrf.mxu0
        %v500 = vadd.f32 %v399, %v499
        %501 = vmatmul.f32.gmra.mxu0 %v377
        %v502 = vpop.f32.mrf.mxu0
        %v503 = vadd.f32 %v399, %v502
        %504 = vmatmul.f32.gmra.mxu0 %v378
        %v505 = vpop.f32.mrf.mxu0
        %v506 = vadd.f32 %v399, %v505
        %507 = vmatmul.f32.gmra.mxu0 %v379
        %v508 = vpop.f32.mrf.mxu0
        %v509 = vadd.f32 %v399, %v508
        %510 = vmatmul.f32.gmra.mxu0 %v380
        %v511 = vpop.f32.mrf.mxu0
        %v512 = vadd.f32 %v399, %v511
        %513 = vdwg.mxu0
        %v514 = vmax.f32 %v419, 0.0
        %v515 = vmax.f32 %v422, 0.0
        %v516 = vmax.f32 %v425, 0.0
        %v517 = vmax.f32 %v428, 0.0
        %v518 = vmax.f32 %v431, 0.0
        %v519 = vmax.f32 %v434, 0.0
        %v520 = vmax.f32 %v437, 0.0
        %v521 = vmax.f32 %v440, 0.0
        %v522 = vmax.f32 %v443, 0.0
        %v523 = vmax.f32 %v446, 0.0
        %v524 = vmax.f32 %v449, 0.0
        %v525 = vmax.f32 %v452, 0.0
        %v526 = vmax.f32 %v455, 0.0
        %v527 = vmax.f32 %v458, 0.0
        %v528 = vmax.f32 %v461, 0.0
        %v529 = vmax.f32 %v464, 0.0
        %v530 = vmax.f32 %v467, 0.0
        %v531 = vmax.f32 %v470, 0.0
        %v532 = vmax.f32 %v473, 0.0
        %v533 = vmax.f32 %v476, 0.0
        %v534 = vmax.f32 %v479, 0.0
        %v535 = vmax.f32 %v482, 0.0
        %v536 = vmax.f32 %v485, 0.0
        %v537 = vmax.f32 %v488, 0.0
        %v538 = vmax.f32 %v491, 0.0
        %v539 = vmax.f32 %v494, 0.0
        %v540 = vmax.f32 %v497, 0.0
        %v541 = vmax.f32 %v500, 0.0
        %v542 = vmax.f32 %v503, 0.0
        %v543 = vmax.f32 %v506, 0.0
        %v544 = vmax.f32 %v509, 0.0
        %v545 = vmax.f32 %v512, 0.0
        %546 = vst [vmem:[#allocation2] sm:$0xff] 0.0
        %547 = vst [vmem:[#allocation2 + $0x8] sm:$0xff] 0.0
        %548 = vst [vmem:[#allocation2 + $0x10] sm:$0x3] 0.0
        %s549 = scalar_lea.vmem [#allocation2], 408
        %550 = vst [vmem:[%s549] sm:$0xff] 0.0
        %551 = vst [vmem:[%s549 + $0x8] sm:$0xff] 0.0
        %552 = vst [vmem:[%s549 + $0x10] sm:$0x3] 0.0
        %553 = vst [vmem:[#allocation2] sm:$0x1] 0.0
        %554 = vst [vmem:[#allocation2 + $0x18] sm:$0x1] 0.0
        %555 = vst [vmem:[#allocation2 + $0x30] sm:$0x1] 0.0
        %556 = vst [vmem:[#allocation2 + $0x48] sm:$0x1] 0.0
        %557 = vst [vmem:[#allocation2 + $0x60] sm:$0x1] 0.0
        %558 = vst [vmem:[#allocation2 + $0x78] sm:$0x1] 0.0
        %559 = vst [vmem:[#allocation2 + $0x90] sm:$0x1] 0.0
        %560 = vst [vmem:[#allocation2 + $0xa8] sm:$0x1] 0.0
        %561 = vst [vmem:[#allocation2 + $0xc0] sm:$0x1] 0.0
        %562 = vst [vmem:[#allocation2 + $0xd8] sm:$0x1] 0.0
        %563 = vst [vmem:[#allocation2 + $0xf0] sm:$0x1] 0.0
        %564 = vst [vmem:[#allocation2 + $0x108] sm:$0x1] 0.0
        %565 = vst [vmem:[#allocation2 + $0x120] sm:$0x1] 0.0
        %566 = vst [vmem:[#allocation2 + $0x138] sm:$0x1] 0.0
        %567 = vst [vmem:[#allocation2 + $0x150] sm:$0x1] 0.0
        %568 = vst [vmem:[#allocation2 + $0x168] sm:$0x1] 0.0
        %569 = vst [vmem:[#allocation2 + $0x180] sm:$0x1] 0.0
        %570 = vst [vmem:[#allocation2 + $0x198] sm:$0x1] 0.0
        %571 = vst [vmem:[#allocation2 + $0x11] sm:$0x1] 0.0
        %572 = vst [vmem:[#allocation2 + $0x29] sm:$0x1] 0.0
        %573 = vst [vmem:[#allocation2 + $0x41] sm:$0x1] 0.0
        %574 = vst [vmem:[#allocation2 + $0x59] sm:$0x1] 0.0
        %575 = vst [vmem:[#allocation2 + $0x71] sm:$0x1] 0.0
        %576 = vst [vmem:[#allocation2 + $0x89] sm:$0x1] 0.0
        %577 = vst [vmem:[#allocation2 + $0xa1] sm:$0x1] 0.0
        %578 = vst [vmem:[#allocation2 + $0xb9] sm:$0x1] 0.0
        %579 = vst [vmem:[#allocation2 + $0xd1] sm:$0x1] 0.0
        %580 = vst [vmem:[#allocation2 + $0xe9] sm:$0x1] 0.0
        %581 = vst [vmem:[#allocation2 + $0x101] sm:$0x1] 0.0
        %582 = vst [vmem:[#allocation2 + $0x119] sm:$0x1] 0.0
        %583 = vst [vmem:[#allocation2 + $0x131] sm:$0x1] 0.0
        %584 = vst [vmem:[#allocation2 + $0x149] sm:$0x1] 0.0
        %585 = vst [vmem:[#allocation2 + $0x161] sm:$0x1] 0.0
        %586 = vst [vmem:[#allocation2 + $0x179] sm:$0x1] 0.0
        %587 = vst [vmem:[#allocation2 + $0x191] sm:$0x1] 0.0
        %588 = vst [vmem:[#allocation2 + $0x1a9] sm:$0x1] 0.0
        %s589 = scalar_lea.vmem [#allocation2], 24
        %590 = vst [vmem:[%s589 + $0x1] sm:$0xff] %v514
        %591 = vst [vmem:[%s589 + $0x9] sm:$0xff] %v515
        %592 = vst [vmem:[%s589 + $0x19] sm:$0xff] %v516
        %593 = vst [vmem:[%s589 + $0x21] sm:$0xff] %v517
        %594 = vst [vmem:[%s589 + $0x31] sm:$0xff] %v518
        %595 = vst [vmem:[%s589 + $0x39] sm:$0xff] %v519
        %596 = vst [vmem:[%s589 + $0x49] sm:$0xff] %v520
        %597 = vst [vmem:[%s589 + $0x51] sm:$0xff] %v521
        %598 = vst [vmem:[%s589 + $0x61] sm:$0xff] %v522
        %599 = vst [vmem:[%s589 + $0x69] sm:$0xff] %v523
        %600 = vst [vmem:[%s589 + $0x79] sm:$0xff] %v524
        %601 = vst [vmem:[%s589 + $0x81] sm:$0xff] %v525
        %602 = vst [vmem:[%s589 + $0x91] sm:$0xff] %v526
        %603 = vst [vmem:[%s589 + $0x99] sm:$0xff] %v527
        %604 = vst [vmem:[%s589 + $0xa9] sm:$0xff] %v528
        %605 = vst [vmem:[%s589 + $0xb1] sm:$0xff] %v529
        %606 = vst [vmem:[%s589 + $0xc1] sm:$0xff] %v530
        %607 = vst [vmem:[%s589 + $0xc9] sm:$0xff] %v531
        %608 = vst [vmem:[%s589 + $0xd9] sm:$0xff] %v532
        %609 = vst [vmem:[%s589 + $0xe1] sm:$0xff] %v533
        %610 = vst [vmem:[%s589 + $0xf1] sm:$0xff] %v534
        %611 = vst [vmem:[%s589 + $0xf9] sm:$0xff] %v535
        %612 = vst [vmem:[%s589 + $0x109] sm:$0xff] %v536
        %613 = vst [vmem:[%s589 + $0x111] sm:$0xff] %v537
        %614 = vst [vmem:[%s589 + $0x121] sm:$0xff] %v538
        %615 = vst [vmem:[%s589 + $0x129] sm:$0xff] %v539
        %616 = vst [vmem:[%s589 + $0x139] sm:$0xff] %v540
        %617 = vst [vmem:[%s589 + $0x141] sm:$0xff] %v541
        %618 = vst [vmem:[%s589 + $0x151] sm:$0xff] %v542
        %619 = vst [vmem:[%s589 + $0x159] sm:$0xff] %v543
        %620 = vst [vmem:[%s589 + $0x169] sm:$0xff] %v544
        %621 = vst [vmem:[%s589 + $0x171] sm:$0xff] %v545
        %v622 = vld [vmem:[#allocation2] sm:$0xff]
        %v623 = vld [vmem:[#allocation2 + $0x8] sm:$0xff]
        %v624 = vld [vmem:[#allocation2 + $0x18] sm:$0xff]
        %v625 = vld [vmem:[#allocation2 + $0x20] sm:$0xff]
        %v626 = vld [vmem:[#allocation2 + $0x30] sm:$0xff]
        %v627 = vld [vmem:[#allocation2 + $0x38] sm:$0xff]
        %v628 = vld [vmem:[#allocation2 + $0x48] sm:$0xff]
        %v629 = vld [vmem:[#allocation2 + $0x50] sm:$0xff]
        %v630 = vld [vmem:[#allocation2 + $0x60] sm:$0xff]
        %v631 = vld [vmem:[#allocation2 + $0x68] sm:$0xff]
        %v632 = vld [vmem:[#allocation2 + $0x78] sm:$0xff]
        %v633 = vld [vmem:[#allocation2 + $0x80] sm:$0xff]
        %v634 = vld [vmem:[#allocation2 + $0x90] sm:$0xff]
        %v635 = vld [vmem:[#allocation2 + $0x98] sm:$0xff]
        %v636 = vld [vmem:[#allocation2 + $0xa8] sm:$0xff]
        %v637 = vld [vmem:[#allocation2 + $0xb0] sm:$0xff]
        %v638 = vld [vmem:[#allocation2 + $0xc0] sm:$0xff]
        %v639 = vld [vmem:[#allocation2 + $0xc8] sm:$0xff]
        %v640 = vld [vmem:[#allocation2 + $0xd8] sm:$0xff]
        %v641 = vld [vmem:[#allocation2 + $0xe0] sm:$0xff]
        %v642 = vld [vmem:[#allocation2 + $0xf0] sm:$0xff]
        %v643 = vld [vmem:[#allocation2 + $0xf8] sm:$0xff]
        %v644 = vld [vmem:[#allocation2 + $0x108] sm:$0xff]
        %v645 = vld [vmem:[#allocation2 + $0x110] sm:$0xff]
        %v646 = vld [vmem:[#allocation2 + $0x120] sm:$0xff]
        %v647 = vld [vmem:[#allocation2 + $0x128] sm:$0xff]
        %v648 = vld [vmem:[#allocation2 + $0x138] sm:$0xff]
        %v649 = vld [vmem:[#allocation2 + $0x140] sm:$0xff]
        %v650 = vld [vmem:[#allocation2 + $0x150] sm:$0xff]
        %v651 = vld [vmem:[#allocation2 + $0x158] sm:$0xff]
        %v652 = vld [vmem:[#allocation2 + $0x168] sm:$0xff]
        %v653 = vld [vmem:[#allocation2 + $0x170] sm:$0xff]
        %654 = vst [vmem:[#allocation3] sm:$0xff] %v622
        %655 = vst [vmem:[#allocation3 + $0x48] sm:$0xff] %v623
        %656 = vst [vmem:[#allocation3 + $0x90] sm:$0xff] %v624
        %657 = vst [vmem:[#allocation3 + $0xd8] sm:$0xff] %v625
        %658 = vst [vmem:[#allocation3 + $0x120] sm:$0xff] %v626
        %659 = vst [vmem:[#allocation3 + $0x168] sm:$0xff] %v627
        %660 = vst [vmem:[#allocation3 + $0x1b0] sm:$0xff] %v628
        %661 = vst [vmem:[#allocation3 + $0x1f8] sm:$0xff] %v629
        %662 = vst [vmem:[#allocation3 + $0x240] sm:$0xff] %v630
        %663 = vst [vmem:[#allocation3 + $0x288] sm:$0xff] %v631
        %664 = vst [vmem:[#allocation3 + $0x2d0] sm:$0xff] %v632
        %665 = vst [vmem:[#allocation3 + $0x318] sm:$0xff] %v633
        %666 = vst [vmem:[#allocation3 + $0x360] sm:$0xff] %v634
        %667 = vst [vmem:[#allocation3 + $0x3a8] sm:$0xff] %v635
        %668 = vst [vmem:[#allocation3 + $0x3f0] sm:$0xff] %v636
        %669 = vst [vmem:[#allocation3 + $0x438] sm:$0xff] %v637
        %670 = vst [vmem:[#allocation3 + $0x480] sm:$0xff] %v638
        %671 = vst [vmem:[#allocation3 + $0x4c8] sm:$0xff] %v639
        %672 = vst [vmem:[#allocation3 + $0x510] sm:$0xff] %v640
        %673 = vst [vmem:[#allocation3 + $0x558] sm:$0xff] %v641
        %674 = vst [vmem:[#allocation3 + $0x5a0] sm:$0xff] %v642
        %675 = vst [vmem:[#allocation3 + $0x5e8] sm:$0xff] %v643
        %676 = vst [vmem:[#allocation3 + $0x630] sm:$0xff] %v644
        %677 = vst [vmem:[#allocation3 + $0x678] sm:$0xff] %v645
        %678 = vst [vmem:[#allocation3 + $0x6c0] sm:$0xff] %v646
        %679 = vst [vmem:[#allocation3 + $0x708] sm:$0xff] %v647
        %680 = vst [vmem:[#allocation3 + $0x750] sm:$0xff] %v648
        %681 = vst [vmem:[#allocation3 + $0x798] sm:$0xff] %v649
        %682 = vst [vmem:[#allocation3 + $0x7e0] sm:$0xff] %v650
        %683 = vst [vmem:[#allocation3 + $0x828] sm:$0xff] %v651
        %684 = vst [vmem:[#allocation3 + $0x870] sm:$0xff] %v652
        %685 = vst [vmem:[#allocation3 + $0x8b8] sm:$0xff] %v653
        %v686 = vld [vmem:[#allocation2 + $0x1] sm:$0xff]
        %v687 = vld [vmem:[#allocation2 + $0x9] sm:$0xff]
        %v688 = vld [vmem:[#allocation2 + $0x19] sm:$0xff]
        %v689 = vld [vmem:[#allocation2 + $0x21] sm:$0xff]
        %v690 = vld [vmem:[#allocation2 + $0x31] sm:$0xff]
        %v691 = vld [vmem:[#allocation2 + $0x39] sm:$0xff]
        %v692 = vld [vmem:[#allocation2 + $0x49] sm:$0xff]
        %v693 = vld [vmem:[#allocation2 + $0x51] sm:$0xff]
        %v694 = vld [vmem:[#allocation2 + $0x61] sm:$0xff]
        %v695 = vld [vmem:[#allocation2 + $0x69] sm:$0xff]
        %v696 = vld [vmem:[#allocation2 + $0x79] sm:$0xff]
        %v697 = vld [vmem:[#allocation2 + $0x81] sm:$0xff]
        %v698 = vld [vmem:[#allocation2 + $0x91] sm:$0xff]
        %v699 = vld [vmem:[#allocation2 + $0x99] sm:$0xff]
        %v700 = vld [vmem:[#allocation2 + $0xa9] sm:$0xff]
        %v701 = vld [vmem:[#allocation2 + $0xb1] sm:$0xff]
        %v702 = vld [vmem:[#allocation2 + $0xc1] sm:$0xff]
        %v703 = vld [vmem:[#allocation2 + $0xc9] sm:$0xff]
        %v704 = vld [vmem:[#allocation2 + $0xd9] sm:$0xff]
        %v705 = vld [vmem:[#allocation2 + $0xe1] sm:$0xff]
        %v706 = vld [vmem:[#allocation2 + $0xf1] sm:$0xff]
        %v707 = vld [vmem:[#allocation2 + $0xf9] sm:$0xff]
        %v708 = vld [vmem:[#allocation2 + $0x109] sm:$0xff]
        %v709 = vld [vmem:[#allocation2 + $0x111] sm:$0xff]
        %v710 = vld [vmem:[#allocation2 + $0x121] sm:$0xff]
        %v711 = vld [vmem:[#allocation2 + $0x129] sm:$0xff]
        %v712 = vld [vmem:[#allocation2 + $0x139] sm:$0xff]
        %v713 = vld [vmem:[#allocation2 + $0x141] sm:$0xff]
        %v714 = vld [vmem:[#allocation2 + $0x151] sm:$0xff]
        %v715 = vld [vmem:[#allocation2 + $0x159] sm:$0xff]
        %v716 = vld [vmem:[#allocation2 + $0x169] sm:$0xff]
        %v717 = vld [vmem:[#allocation2 + $0x171] sm:$0xff]
        %718 = vst [vmem:[#allocation3 + $0x8] sm:$0xff] %v686
        %719 = vst [vmem:[#allocation3 + $0x50] sm:$0xff] %v687
        %720 = vst [vmem:[#allocation3 + $0x98] sm:$0xff] %v688
        %721 = vst [vmem:[#allocation3 + $0xe0] sm:$0xff] %v689
        %722 = vst [vmem:[#allocation3 + $0x128] sm:$0xff] %v690
        %723 = vst [vmem:[#allocation3 + $0x170] sm:$0xff] %v691
        %724 = vst [vmem:[#allocation3 + $0x1b8] sm:$0xff] %v692
        %725 = vst [vmem:[#allocation3 + $0x200] sm:$0xff] %v693
        %726 = vst [vmem:[#allocation3 + $0x248] sm:$0xff] %v694
        %727 = vst [vmem:[#allocation3 + $0x290] sm:$0xff] %v695
        %728 = vst [vmem:[#allocation3 + $0x2d8] sm:$0xff] %v696
        %729 = vst [vmem:[#allocation3 + $0x320] sm:$0xff] %v697
        %730 = vst [vmem:[#allocation3 + $0x368] sm:$0xff] %v698
        %731 = vst [vmem:[#allocation3 + $0x3b0] sm:$0xff] %v699
        %732 = vst [vmem:[#allocation3 + $0x3f8] sm:$0xff] %v700
        %733 = vst [vmem:[#allocation3 + $0x440] sm:$0xff] %v701
        %734 = vst [vmem:[#allocation3 + $0x488] sm:$0xff] %v702
        %735 = vst [vmem:[#allocation3 + $0x4d0] sm:$0xff] %v703
        %736 = vst [vmem:[#allocation3 + $0x518] sm:$0xff] %v704
        %737 = vst [vmem:[#allocation3 + $0x560] sm:$0xff] %v705
        %738 = vst [vmem:[#allocation3 + $0x5a8] sm:$0xff] %v706
        %739 = vst [vmem:[#allocation3 + $0x5f0] sm:$0xff] %v707
        %740 = vst [vmem:[#allocation3 + $0x638] sm:$0xff] %v708
        %741 = vst [vmem:[#allocation3 + $0x680] sm:$0xff] %v709
        %742 = vst [vmem:[#allocation3 + $0x6c8] sm:$0xff] %v710
        %743 = vst [vmem:[#allocation3 + $0x710] sm:$0xff] %v711
        %744 = vst [vmem:[#allocation3 + $0x758] sm:$0xff] %v712
        %745 = vst [vmem:[#allocation3 + $0x7a0] sm:$0xff] %v713
        %746 = vst [vmem:[#allocation3 + $0x7e8] sm:$0xff] %v714
        %747 = vst [vmem:[#allocation3 + $0x830] sm:$0xff] %v715
        %748 = vst [vmem:[#allocation3 + $0x878] sm:$0xff] %v716
        %749 = vst [vmem:[#allocation3 + $0x8c0] sm:$0xff] %v717
        %v750 = vld [vmem:[#allocation2 + $0x2] sm:$0xff]
        %v751 = vld [vmem:[#allocation2 + $0xa] sm:$0xff]
        %v752 = vld [vmem:[#allocation2 + $0x1a] sm:$0xff]
        %v753 = vld [vmem:[#allocation2 + $0x22] sm:$0xff]
        %v754 = vld [vmem:[#allocation2 + $0x32] sm:$0xff]
        %v755 = vld [vmem:[#allocation2 + $0x3a] sm:$0xff]
        %v756 = vld [vmem:[#allocation2 + $0x4a] sm:$0xff]
        %v757 = vld [vmem:[#allocation2 + $0x52] sm:$0xff]
        %v758 = vld [vmem:[#allocation2 + $0x62] sm:$0xff]
        %v759 = vld [vmem:[#allocation2 + $0x6a] sm:$0xff]
        %v760 = vld [vmem:[#allocation2 + $0x7a] sm:$0xff]
        %v761 = vld [vmem:[#allocation2 + $0x82] sm:$0xff]
        %v762 = vld [vmem:[#allocation2 + $0x92] sm:$0xff]
        %v763 = vld [vmem:[#allocation2 + $0x9a] sm:$0xff]
        %v764 = vld [vmem:[#allocation2 + $0xaa] sm:$0xff]
        %v765 = vld [vmem:[#allocation2 + $0xb2] sm:$0xff]
        %v766 = vld [vmem:[#allocation2 + $0xc2] sm:$0xff]
        %v767 = vld [vmem:[#allocation2 + $0xca] sm:$0xff]
        %v768 = vld [vmem:[#allocation2 + $0xda] sm:$0xff]
        %v769 = vld [vmem:[#allocation2 + $0xe2] sm:$0xff]
        %v770 = vld [vmem:[#allocation2 + $0xf2] sm:$0xff]
        %v771 = vld [vmem:[#allocation2 + $0xfa] sm:$0xff]
        %v772 = vld [vmem:[#allocation2 + $0x10a] sm:$0xff]
        %v773 = vld [vmem:[#allocation2 + $0x112] sm:$0xff]
        %v774 = vld [vmem:[#allocation2 + $0x122] sm:$0xff]
        %v775 = vld [vmem:[#allocation2 + $0x12a] sm:$0xff]
        %v776 = vld [vmem:[#allocation2 + $0x13a] sm:$0xff]
        %v777 = vld [vmem:[#allocation2 + $0x142] sm:$0xff]
        %v778 = vld [vmem:[#allocation2 + $0x152] sm:$0xff]
        %v779 = vld [vmem:[#allocation2 + $0x15a] sm:$0xff]
        %v780 = vld [vmem:[#allocation2 + $0x16a] sm:$0xff]
        %v781 = vld [vmem:[#allocation2 + $0x172] sm:$0xff]
        %782 = vst [vmem:[#allocation3 + $0x10] sm:$0xff] %v750
        %783 = vst [vmem:[#allocation3 + $0x58] sm:$0xff] %v751
        %784 = vst [vmem:[#allocation3 + $0xa0] sm:$0xff] %v752
        %785 = vst [vmem:[#allocation3 + $0xe8] sm:$0xff] %v753
        %786 = vst [vmem:[#allocation3 + $0x130] sm:$0xff] %v754
        %787 = vst [vmem:[#allocation3 + $0x178] sm:$0xff] %v755
        %788 = vst [vmem:[#allocation3 + $0x1c0] sm:$0xff] %v756
        %789 = vst [vmem:[#allocation3 + $0x208] sm:$0xff] %v757
        %790 = vst [vmem:[#allocation3 + $0x250] sm:$0xff] %v758
        %791 = vst [vmem:[#allocation3 + $0x298] sm:$0xff] %v759
        %792 = vst [vmem:[#allocation3 + $0x2e0] sm:$0xff] %v760
        %793 = vst [vmem:[#allocation3 + $0x328] sm:$0xff] %v761
        %794 = vst [vmem:[#allocation3 + $0x370] sm:$0xff] %v762
        %795 = vst [vmem:[#allocation3 + $0x3b8] sm:$0xff] %v763
        %796 = vst [vmem:[#allocation3 + $0x400] sm:$0xff] %v764
        %797 = vst [vmem:[#allocation3 + $0x448] sm:$0xff] %v765
        %798 = vst [vmem:[#allocation3 + $0x490] sm:$0xff] %v766
        %799 = vst [vmem:[#allocation3 + $0x4d8] sm:$0xff] %v767
        %800 = vst [vmem:[#allocation3 + $0x520] sm:$0xff] %v768
        %801 = vst [vmem:[#allocation3 + $0x568] sm:$0xff] %v769
        %802 = vst [vmem:[#allocation3 + $0x5b0] sm:$0xff] %v770
        %803 = vst [vmem:[#allocation3 + $0x5f8] sm:$0xff] %v771
        %804 = vst [vmem:[#allocation3 + $0x640] sm:$0xff] %v772
        %805 = vst [vmem:[#allocation3 + $0x688] sm:$0xff] %v773
        %806 = vst [vmem:[#allocation3 + $0x6d0] sm:$0xff] %v774
        %807 = vst [vmem:[#allocation3 + $0x718] sm:$0xff] %v775
        %808 = vst [vmem:[#allocation3 + $0x760] sm:$0xff] %v776
        %809 = vst [vmem:[#allocation3 + $0x7a8] sm:$0xff] %v777
        %810 = vst [vmem:[#allocation3 + $0x7f0] sm:$0xff] %v778
        %811 = vst [vmem:[#allocation3 + $0x838] sm:$0xff] %v779
        %812 = vst [vmem:[#allocation3 + $0x880] sm:$0xff] %v780
        %813 = vst [vmem:[#allocation3 + $0x8c8] sm:$0xff] %v781
        %v814 = vld [vmem:[%s589] sm:$0xff]
        %v815 = vld [vmem:[%s589 + $0x8] sm:$0xff]
        %v816 = vld [vmem:[%s589 + $0x18] sm:$0xff]
        %v817 = vld [vmem:[%s589 + $0x20] sm:$0xff]
        %v818 = vld [vmem:[%s589 + $0x30] sm:$0xff]
        %v819 = vld [vmem:[%s589 + $0x38] sm:$0xff]
        %v820 = vld [vmem:[%s589 + $0x48] sm:$0xff]
        %v821 = vld [vmem:[%s589 + $0x50] sm:$0xff]
        %v822 = vld [vmem:[%s589 + $0x60] sm:$0xff]
        %v823 = vld [vmem:[%s589 + $0x68] sm:$0xff]
        %v824 = vld [vmem:[%s589 + $0x78] sm:$0xff]
        %v825 = vld [vmem:[%s589 + $0x80] sm:$0xff]
        %v826 = vld [vmem:[%s589 + $0x90] sm:$0xff]
        %v827 = vld [vmem:[%s589 + $0x98] sm:$0xff]
        %v828 = vld [vmem:[%s589 + $0xa8] sm:$0xff]
        %v829 = vld [vmem:[%s589 + $0xb0] sm:$0xff]
        %v830 = vld [vmem:[%s589 + $0xc0] sm:$0xff]
        %v831 = vld [vmem:[%s589 + $0xc8] sm:$0xff]
        %v832 = vld [vmem:[%s589 + $0xd8] sm:$0xff]
        %v833 = vld [vmem:[%s589 + $0xe0] sm:$0xff]
        %v834 = vld [vmem:[%s589 + $0xf0] sm:$0xff]
        %v835 = vld [vmem:[%s589 + $0xf8] sm:$0xff]
        %v836 = vld [vmem:[%s589 + $0x108] sm:$0xff]
        %v837 = vld [vmem:[%s589 + $0x110] sm:$0xff]
        %v838 = vld [vmem:[%s589 + $0x120] sm:$0xff]
        %v839 = vld [vmem:[%s589 + $0x128] sm:$0xff]
        %v840 = vld [vmem:[%s589 + $0x138] sm:$0xff]
        %v841 = vld [vmem:[%s589 + $0x140] sm:$0xff]
        %v842 = vld [vmem:[%s589 + $0x150] sm:$0xff]
        %v843 = vld [vmem:[%s589 + $0x158] sm:$0xff]
        %v844 = vld [vmem:[%s589 + $0x168] sm:$0xff]
        %v845 = vld [vmem:[%s589 + $0x170] sm:$0xff]
        %846 = vst [vmem:[#allocation3 + $0x18] sm:$0xff] %v814
        %847 = vst [vmem:[#allocation3 + $0x60] sm:$0xff] %v815
        %848 = vst [vmem:[#allocation3 + $0xa8] sm:$0xff] %v816
        %849 = vst [vmem:[#allocation3 + $0xf0] sm:$0xff] %v817
        %850 = vst [vmem:[#allocation3 + $0x138] sm:$0xff] %v818
        %851 = vst [vmem:[#allocation3 + $0x180] sm:$0xff] %v819
        %852 = vst [vmem:[#allocation3 + $0x1c8] sm:$0xff] %v820
        %853 = vst [vmem:[#allocation3 + $0x210] sm:$0xff] %v821
        %854 = vst [vmem:[#allocation3 + $0x258] sm:$0xff] %v822
        %855 = vst [vmem:[#allocation3 + $0x2a0] sm:$0xff] %v823
        %856 = vst [vmem:[#allocation3 + $0x2e8] sm:$0xff] %v824
        %857 = vst [vmem:[#allocation3 + $0x330] sm:$0xff] %v825
        %858 = vst [vmem:[#allocation3 + $0x378] sm:$0xff] %v826
        %859 = vst [vmem:[#allocation3 + $0x3c0] sm:$0xff] %v827
        %860 = vst [vmem:[#allocation3 + $0x408] sm:$0xff] %v828
        %861 = vst [vmem:[#allocation3 + $0x450] sm:$0xff] %v829
        %862 = vst [vmem:[#allocation3 + $0x498] sm:$0xff] %v830
        %863 = vst [vmem:[#allocation3 + $0x4e0] sm:$0xff] %v831
        %864 = vst [vmem:[#allocation3 + $0x528] sm:$0xff] %v832
        %865 = vst [vmem:[#allocation3 + $0x570] sm:$0xff] %v833
        %866 = vst [vmem:[#allocation3 + $0x5b8] sm:$0xff] %v834
        %867 = vst [vmem:[#allocation3 + $0x600] sm:$0xff] %v835
        %868 = vst [vmem:[#allocation3 + $0x648] sm:$0xff] %v836
        %869 = vst [vmem:[#allocation3 + $0x690] sm:$0xff] %v837
        %870 = vst [vmem:[#allocation3 + $0x6d8] sm:$0xff] %v838
        %871 = vst [vmem:[#allocation3 + $0x720] sm:$0xff] %v839
        %872 = vst [vmem:[#allocation3 + $0x768] sm:$0xff] %v840
        %873 = vst [vmem:[#allocation3 + $0x7b0] sm:$0xff] %v841
        %874 = vst [vmem:[#allocation3 + $0x7f8] sm:$0xff] %v842
        %875 = vst [vmem:[#allocation3 + $0x840] sm:$0xff] %v843
        %876 = vst [vmem:[#allocation3 + $0x888] sm:$0xff] %v844
        %877 = vst [vmem:[#allocation3 + $0x8d0] sm:$0xff] %v845
        %v878 = vld [vmem:[%s589 + $0x1] sm:$0xff]
        %v879 = vld [vmem:[%s589 + $0x9] sm:$0xff]
        %v880 = vld [vmem:[%s589 + $0x19] sm:$0xff]
        %v881 = vld [vmem:[%s589 + $0x21] sm:$0xff]
        %v882 = vld [vmem:[%s589 + $0x31] sm:$0xff]
        %v883 = vld [vmem:[%s589 + $0x39] sm:$0xff]
        %v884 = vld [vmem:[%s589 + $0x49] sm:$0xff]
        %v885 = vld [vmem:[%s589 + $0x51] sm:$0xff]
        %v886 = vld [vmem:[%s589 + $0x61] sm:$0xff]
        %v887 = vld [vmem:[%s589 + $0x69] sm:$0xff]
        %v888 = vld [vmem:[%s589 + $0x79] sm:$0xff]
        %v889 = vld [vmem:[%s589 + $0x81] sm:$0xff]
        %v890 = vld [vmem:[%s589 + $0x91] sm:$0xff]
        %v891 = vld [vmem:[%s589 + $0x99] sm:$0xff]
        %v892 = vld [vmem:[%s589 + $0xa9] sm:$0xff]
        %v893 = vld [vmem:[%s589 + $0xb1] sm:$0xff]
        %v894 = vld [vmem:[%s589 + $0xc1] sm:$0xff]
        %v895 = vld [vmem:[%s589 + $0xc9] sm:$0xff]
        %v896 = vld [vmem:[%s589 + $0xd9] sm:$0xff]
        %v897 = vld [vmem:[%s589 + $0xe1] sm:$0xff]
        %v898 = vld [vmem:[%s589 + $0xf1] sm:$0xff]
        %v899 = vld [vmem:[%s589 + $0xf9] sm:$0xff]
        %v900 = vld [vmem:[%s589 + $0x109] sm:$0xff]
        %v901 = vld [vmem:[%s589 + $0x111] sm:$0xff]
        %v902 = vld [vmem:[%s589 + $0x121] sm:$0xff]
        %v903 = vld [vmem:[%s589 + $0x129] sm:$0xff]
        %v904 = vld [vmem:[%s589 + $0x139] sm:$0xff]
        %v905 = vld [vmem:[%s589 + $0x141] sm:$0xff]
        %v906 = vld [vmem:[%s589 + $0x151] sm:$0xff]
        %v907 = vld [vmem:[%s589 + $0x159] sm:$0xff]
        %v908 = vld [vmem:[%s589 + $0x169] sm:$0xff]
        %v909 = vld [vmem:[%s589 + $0x171] sm:$0xff]
        %910 = vst [vmem:[#allocation3 + $0x20] sm:$0xff] %v878
        %911 = vst [vmem:[#allocation3 + $0x68] sm:$0xff] %v879
        %912 = vst [vmem:[#allocation3 + $0xb0] sm:$0xff] %v880
        %913 = vst [vmem:[#allocation3 + $0xf8] sm:$0xff] %v881
        %914 = vst [vmem:[#allocation3 + $0x140] sm:$0xff] %v882
        %915 = vst [vmem:[#allocation3 + $0x188] sm:$0xff] %v883
        %916 = vst [vmem:[#allocation3 + $0x1d0] sm:$0xff] %v884
        %917 = vst [vmem:[#allocation3 + $0x218] sm:$0xff] %v885
        %918 = vst [vmem:[#allocation3 + $0x260] sm:$0xff] %v886
        %919 = vst [vmem:[#allocation3 + $0x2a8] sm:$0xff] %v887
        %920 = vst [vmem:[#allocation3 + $0x2f0] sm:$0xff] %v888
        %921 = vst [vmem:[#allocation3 + $0x338] sm:$0xff] %v889
        %922 = vst [vmem:[#allocation3 + $0x380] sm:$0xff] %v890
        %923 = vst [vmem:[#allocation3 + $0x3c8] sm:$0xff] %v891
        %924 = vst [vmem:[#allocation3 + $0x410] sm:$0xff] %v892
        %925 = vst [vmem:[#allocation3 + $0x458] sm:$0xff] %v893
        %926 = vst [vmem:[#allocation3 + $0x4a0] sm:$0xff] %v894
        %927 = vst [vmem:[#allocation3 + $0x4e8] sm:$0xff] %v895
        %928 = vst [vmem:[#allocation3 + $0x530] sm:$0xff] %v896
        %929 = vst [vmem:[#allocation3 + $0x578] sm:$0xff] %v897
        %930 = vst [vmem:[#allocation3 + $0x5c0] sm:$0xff] %v898
        %931 = vst [vmem:[#allocation3 + $0x608] sm:$0xff] %v899
        %932 = vst [vmem:[#allocation3 + $0x650] sm:$0xff] %v900
        %933 = vst [vmem:[#allocation3 + $0x698] sm:$0xff] %v901
        %934 = vst [vmem:[#allocation3 + $0x6e0] sm:$0xff] %v902
        %935 = vst [vmem:[#allocation3 + $0x728] sm:$0xff] %v903
        %936 = vst [vmem:[#allocation3 + $0x770] sm:$0xff] %v904
        %937 = vst [vmem:[#allocation3 + $0x7b8] sm:$0xff] %v905
        %938 = vst [vmem:[#allocation3 + $0x800] sm:$0xff] %v906
        %939 = vst [vmem:[#allocation3 + $0x848] sm:$0xff] %v907
        %940 = vst [vmem:[#allocation3 + $0x890] sm:$0xff] %v908
        %941 = vst [vmem:[#allocation3 + $0x8d8] sm:$0xff] %v909
        %v942 = vld [vmem:[%s589 + $0x2] sm:$0xff]
        %v943 = vld [vmem:[%s589 + $0xa] sm:$0xff]
        %v944 = vld [vmem:[%s589 + $0x1a] sm:$0xff]
        %v945 = vld [vmem:[%s589 + $0x22] sm:$0xff]
        %v946 = vld [vmem:[%s589 + $0x32] sm:$0xff]
        %v947 = vld [vmem:[%s589 + $0x3a] sm:$0xff]
        %v948 = vld [vmem:[%s589 + $0x4a] sm:$0xff]
        %v949 = vld [vmem:[%s589 + $0x52] sm:$0xff]
        %v950 = vld [vmem:[%s589 + $0x62] sm:$0xff]
        %v951 = vld [vmem:[%s589 + $0x6a] sm:$0xff]
        %v952 = vld [vmem:[%s589 + $0x7a] sm:$0xff]
        %v953 = vld [vmem:[%s589 + $0x82] sm:$0xff]
        %v954 = vld [vmem:[%s589 + $0x92] sm:$0xff]
        %v955 = vld [vmem:[%s589 + $0x9a] sm:$0xff]
        %v956 = vld [vmem:[%s589 + $0xaa] sm:$0xff]
        %v957 = vld [vmem:[%s589 + $0xb2] sm:$0xff]
        %v958 = vld [vmem:[%s589 + $0xc2] sm:$0xff]
        %v959 = vld [vmem:[%s589 + $0xca] sm:$0xff]
        %v960 = vld [vmem:[%s589 + $0xda] sm:$0xff]
        %v961 = vld [vmem:[%s589 + $0xe2] sm:$0xff]
        %v962 = vld [vmem:[%s589 + $0xf2] sm:$0xff]
        %v963 = vld [vmem:[%s589 + $0xfa] sm:$0xff]
        %v964 = vld [vmem:[%s589 + $0x10a] sm:$0xff]
        %v965 = vld [vmem:[%s589 + $0x112] sm:$0xff]
        %v966 = vld [vmem:[%s589 + $0x122] sm:$0xff]
        %v967 = vld [vmem:[%s589 + $0x12a] sm:$0xff]
        %v968 = vld [vmem:[%s589 + $0x13a] sm:$0xff]
        %v969 = vld [vmem:[%s589 + $0x142] sm:$0xff]
        %v970 = vld [vmem:[%s589 + $0x152] sm:$0xff]
        %v971 = vld [vmem:[%s589 + $0x15a] sm:$0xff]
        %v972 = vld [vmem:[%s589 + $0x16a] sm:$0xff]
        %v973 = vld [vmem:[%s589 + $0x172] sm:$0xff]
        %974 = vst [vmem:[#allocation3 + $0x28] sm:$0xff] %v942
        %975 = vst [vmem:[#allocation3 + $0x70] sm:$0xff] %v943
        %976 = vst [vmem:[#allocation3 + $0xb8] sm:$0xff] %v944
        %977 = vst [vmem:[#allocation3 + $0x100] sm:$0xff] %v945
        %978 = vst [vmem:[#allocation3 + $0x148] sm:$0xff] %v946
        %979 = vst [vmem:[#allocation3 + $0x190] sm:$0xff] %v947
        %980 = vst [vmem:[#allocation3 + $0x1d8] sm:$0xff] %v948
        %981 = vst [vmem:[#allocation3 + $0x220] sm:$0xff] %v949
        %982 = vst [vmem:[#allocation3 + $0x268] sm:$0xff] %v950
        %983 = vst [vmem:[#allocation3 + $0x2b0] sm:$0xff] %v951
        %984 = vst [vmem:[#allocation3 + $0x2f8] sm:$0xff] %v952
        %985 = vst [vmem:[#allocation3 + $0x340] sm:$0xff] %v953
        %986 = vst [vmem:[#allocation3 + $0x388] sm:$0xff] %v954
        %987 = vst [vmem:[#allocation3 + $0x3d0] sm:$0xff] %v955
        %988 = vst [vmem:[#allocation3 + $0x418] sm:$0xff] %v956
        %989 = vst [vmem:[#allocation3 + $0x460] sm:$0xff] %v957
        %990 = vst [vmem:[#allocation3 + $0x4a8] sm:$0xff] %v958
        %991 = vst [vmem:[#allocation3 + $0x4f0] sm:$0xff] %v959
        %992 = vst [vmem:[#allocation3 + $0x538] sm:$0xff] %v960
        %993 = vst [vmem:[#allocation3 + $0x580] sm:$0xff] %v961
        %994 = vst [vmem:[#allocation3 + $0x5c8] sm:$0xff] %v962
        %995 = vst [vmem:[#allocation3 + $0x610] sm:$0xff] %v963
        %996 = vst [vmem:[#allocation3 + $0x658] sm:$0xff] %v964
        %997 = vst [vmem:[#allocation3 + $0x6a0] sm:$0xff] %v965
        %998 = vst [vmem:[#allocation3 + $0x6e8] sm:$0xff] %v966
        %999 = vst [vmem:[#allocation3 + $0x730] sm:$0xff] %v967
        %1000 = vst [vmem:[#allocation3 + $0x778] sm:$0xff] %v968
        %1001 = vst [vmem:[#allocation3 + $0x7c0] sm:$0xff] %v969
        %1002 = vst [vmem:[#allocation3 + $0x808] sm:$0xff] %v970
        %1003 = vst [vmem:[#allocation3 + $0x850] sm:$0xff] %v971
        %1004 = vst [vmem:[#allocation3 + $0x898] sm:$0xff] %v972
        %1005 = vst [vmem:[#allocation3 + $0x8e0] sm:$0xff] %v973
        %s1006 = scalar_lea.vmem [#allocation2], 48
        %v1007 = vld [vmem:[%s1006] sm:$0xff]
        %v1008 = vld [vmem:[%s1006 + $0x8] sm:$0xff]
        %v1009 = vld [vmem:[%s1006 + $0x18] sm:$0xff]
        %v1010 = vld [vmem:[%s1006 + $0x20] sm:$0xff]
        %v1011 = vld [vmem:[%s1006 + $0x30] sm:$0xff]
        %v1012 = vld [vmem:[%s1006 + $0x38] sm:$0xff]
        %v1013 = vld [vmem:[%s1006 + $0x48] sm:$0xff]
        %v1014 = vld [vmem:[%s1006 + $0x50] sm:$0xff]
        %v1015 = vld [vmem:[%s1006 + $0x60] sm:$0xff]
        %v1016 = vld [vmem:[%s1006 + $0x68] sm:$0xff]
        %v1017 = vld [vmem:[%s1006 + $0x78] sm:$0xff]
        %v1018 = vld [vmem:[%s1006 + $0x80] sm:$0xff]
        %v1019 = vld [vmem:[%s1006 + $0x90] sm:$0xff]
        %v1020 = vld [vmem:[%s1006 + $0x98] sm:$0xff]
        %v1021 = vld [vmem:[%s1006 + $0xa8] sm:$0xff]
        %v1022 = vld [vmem:[%s1006 + $0xb0] sm:$0xff]
        %v1023 = vld [vmem:[%s1006 + $0xc0] sm:$0xff]
        %v1024 = vld [vmem:[%s1006 + $0xc8] sm:$0xff]
        %v1025 = vld [vmem:[%s1006 + $0xd8] sm:$0xff]
        %v1026 = vld [vmem:[%s1006 + $0xe0] sm:$0xff]
        %v1027 = vld [vmem:[%s1006 + $0xf0] sm:$0xff]
        %v1028 = vld [vmem:[%s1006 + $0xf8] sm:$0xff]
        %v1029 = vld [vmem:[%s1006 + $0x108] sm:$0xff]
        %v1030 = vld [vmem:[%s1006 + $0x110] sm:$0xff]
        %v1031 = vld [vmem:[%s1006 + $0x120] sm:$0xff]
        %v1032 = vld [vmem:[%s1006 + $0x128] sm:$0xff]
        %v1033 = vld [vmem:[%s1006 + $0x138] sm:$0xff]
        %v1034 = vld [vmem:[%s1006 + $0x140] sm:$0xff]
        %v1035 = vld [vmem:[%s1006 + $0x150] sm:$0xff]
        %v1036 = vld [vmem:[%s1006 + $0x158] sm:$0xff]
        %v1037 = vld [vmem:[%s1006 + $0x168] sm:$0xff]
        %v1038 = vld [vmem:[%s1006 + $0x170] sm:$0xff]
        %1039 = vst [vmem:[#allocation3 + $0x30] sm:$0xff] %v1007
        %1040 = vst [vmem:[#allocation3 + $0x78] sm:$0xff] %v1008
        %1041 = vst [vmem:[#allocation3 + $0xc0] sm:$0xff] %v1009
        %1042 = vst [vmem:[#allocation3 + $0x108] sm:$0xff] %v1010
        %1043 = vst [vmem:[#allocation3 + $0x150] sm:$0xff] %v1011
        %1044 = vst [vmem:[#allocation3 + $0x198] sm:$0xff] %v1012
        %1045 = vst [vmem:[#allocation3 + $0x1e0] sm:$0xff] %v1013
        %1046 = vst [vmem:[#allocation3 + $0x228] sm:$0xff] %v1014
        %1047 = vst [vmem:[#allocation3 + $0x270] sm:$0xff] %v1015
        %1048 = vst [vmem:[#allocation3 + $0x2b8] sm:$0xff] %v1016
        %1049 = vst [vmem:[#allocation3 + $0x300] sm:$0xff] %v1017
        %1050 = vst [vmem:[#allocation3 + $0x348] sm:$0xff] %v1018
        %1051 = vst [vmem:[#allocation3 + $0x390] sm:$0xff] %v1019
        %1052 = vst [vmem:[#allocation3 + $0x3d8] sm:$0xff] %v1020
        %1053 = vst [vmem:[#allocation3 + $0x420] sm:$0xff] %v1021
        %1054 = vst [vmem:[#allocation3 + $0x468] sm:$0xff] %v1022
        %1055 = vst [vmem:[#allocation3 + $0x4b0] sm:$0xff] %v1023
        %1056 = vst [vmem:[#allocation3 + $0x4f8] sm:$0xff] %v1024
        %1057 = vst [vmem:[#allocation3 + $0x540] sm:$0xff] %v1025
        %1058 = vst [vmem:[#allocation3 + $0x588] sm:$0xff] %v1026
        %1059 = vst [vmem:[#allocation3 + $0x5d0] sm:$0xff] %v1027
        %1060 = vst [vmem:[#allocation3 + $0x618] sm:$0xff] %v1028
        %1061 = vst [vmem:[#allocation3 + $0x660] sm:$0xff] %v1029
        %1062 = vst [vmem:[#allocation3 + $0x6a8] sm:$0xff] %v1030
        %1063 = vst [vmem:[#allocation3 + $0x6f0] sm:$0xff] %v1031
        %1064 = vst [vmem:[#allocation3 + $0x738] sm:$0xff] %v1032
        %1065 = vst [vmem:[#allocation3 + $0x780] sm:$0xff] %v1033
        %1066 = vst [vmem:[#allocation3 + $0x7c8] sm:$0xff] %v1034
        %1067 = vst [vmem:[#allocation3 + $0x810] sm:$0xff] %v1035
        %1068 = vst [vmem:[#allocation3 + $0x858] sm:$0xff] %v1036
        %1069 = vst [vmem:[#allocation3 + $0x8a0] sm:$0xff] %v1037
        %1070 = vst [vmem:[#allocation3 + $0x8e8] sm:$0xff] %v1038
        %v1071 = vld [vmem:[%s1006 + $0x1] sm:$0xff]
        %v1072 = vld [vmem:[%s1006 + $0x9] sm:$0xff]
        %v1073 = vld [vmem:[%s1006 + $0x19] sm:$0xff]
        %v1074 = vld [vmem:[%s1006 + $0x21] sm:$0xff]
        %v1075 = vld [vmem:[%s1006 + $0x31] sm:$0xff]
        %v1076 = vld [vmem:[%s1006 + $0x39] sm:$0xff]
        %v1077 = vld [vmem:[%s1006 + $0x49] sm:$0xff]
        %v1078 = vld [vmem:[%s1006 + $0x51] sm:$0xff]
        %v1079 = vld [vmem:[%s1006 + $0x61] sm:$0xff]
        %v1080 = vld [vmem:[%s1006 + $0x69] sm:$0xff]
        %v1081 = vld [vmem:[%s1006 + $0x79] sm:$0xff]
        %v1082 = vld [vmem:[%s1006 + $0x81] sm:$0xff]
        %v1083 = vld [vmem:[%s1006 + $0x91] sm:$0xff]
        %v1084 = vld [vmem:[%s1006 + $0x99] sm:$0xff]
        %v1085 = vld [vmem:[%s1006 + $0xa9] sm:$0xff]
        %v1086 = vld [vmem:[%s1006 + $0xb1] sm:$0xff]
        %v1087 = vld [vmem:[%s1006 + $0xc1] sm:$0xff]
        %v1088 = vld [vmem:[%s1006 + $0xc9] sm:$0xff]
        %v1089 = vld [vmem:[%s1006 + $0xd9] sm:$0xff]
        %v1090 = vld [vmem:[%s1006 + $0xe1] sm:$0xff]
        %v1091 = vld [vmem:[%s1006 + $0xf1] sm:$0xff]
        %v1092 = vld [vmem:[%s1006 + $0xf9] sm:$0xff]
        %v1093 = vld [vmem:[%s1006 + $0x109] sm:$0xff]
        %v1094 = vld [vmem:[%s1006 + $0x111] sm:$0xff]
        %v1095 = vld [vmem:[%s1006 + $0x121] sm:$0xff]
        %v1096 = vld [vmem:[%s1006 + $0x129] sm:$0xff]
        %v1097 = vld [vmem:[%s1006 + $0x139] sm:$0xff]
        %v1098 = vld [vmem:[%s1006 + $0x141] sm:$0xff]
        %v1099 = vld [vmem:[%s1006 + $0x151] sm:$0xff]
        %v1100 = vld [vmem:[%s1006 + $0x159] sm:$0xff]
        %v1101 = vld [vmem:[%s1006 + $0x169] sm:$0xff]
        %v1102 = vld [vmem:[%s1006 + $0x171] sm:$0xff]
        %1103 = vst [vmem:[#allocation3 + $0x38] sm:$0xff] %v1071
        %1104 = vst [vmem:[#allocation3 + $0x80] sm:$0xff] %v1072
        %1105 = vst [vmem:[#allocation3 + $0xc8] sm:$0xff] %v1073
        %1106 = vst [vmem:[#allocation3 + $0x110] sm:$0xff] %v1074
        %1107 = vst [vmem:[#allocation3 + $0x158] sm:$0xff] %v1075
        %1108 = vst [vmem:[#allocation3 + $0x1a0] sm:$0xff] %v1076
        %1109 = vst [vmem:[#allocation3 + $0x1e8] sm:$0xff] %v1077
        %1110 = vst [vmem:[#allocation3 + $0x230] sm:$0xff] %v1078
        %1111 = vst [vmem:[#allocation3 + $0x278] sm:$0xff] %v1079
        %1112 = vst [vmem:[#allocation3 + $0x2c0] sm:$0xff] %v1080
        %1113 = vst [vmem:[#allocation3 + $0x308] sm:$0xff] %v1081
        %1114 = vst [vmem:[#allocation3 + $0x350] sm:$0xff] %v1082
        %1115 = vst [vmem:[#allocation3 + $0x398] sm:$0xff] %v1083
        %1116 = vst [vmem:[#allocation3 + $0x3e0] sm:$0xff] %v1084
        %1117 = vst [vmem:[#allocation3 + $0x428] sm:$0xff] %v1085
        %1118 = vst [vmem:[#allocation3 + $0x470] sm:$0xff] %v1086
        %1119 = vst [vmem:[#allocation3 + $0x4b8] sm:$0xff] %v1087
        %1120 = vst [vmem:[#allocation3 + $0x500] sm:$0xff] %v1088
        %1121 = vst [vmem:[#allocation3 + $0x548] sm:$0xff] %v1089
        %1122 = vst [vmem:[#allocation3 + $0x590] sm:$0xff] %v1090
        %1123 = vst [vmem:[#allocation3 + $0x5d8] sm:$0xff] %v1091
        %1124 = vst [vmem:[#allocation3 + $0x620] sm:$0xff] %v1092
        %1125 = vst [vmem:[#allocation3 + $0x668] sm:$0xff] %v1093
        %1126 = vst [vmem:[#allocation3 + $0x6b0] sm:$0xff] %v1094
        %1127 = vst [vmem:[#allocation3 + $0x6f8] sm:$0xff] %v1095
        %1128 = vst [vmem:[#allocation3 + $0x740] sm:$0xff] %v1096
        %1129 = vst [vmem:[#allocation3 + $0x788] sm:$0xff] %v1097
        %1130 = vst [vmem:[#allocation3 + $0x7d0] sm:$0xff] %v1098
        %1131 = vst [vmem:[#allocation3 + $0x818] sm:$0xff] %v1099
        %1132 = vst [vmem:[#allocation3 + $0x860] sm:$0xff] %v1100
        %1133 = vst [vmem:[#allocation3 + $0x8a8] sm:$0xff] %v1101
        %1134 = vst [vmem:[#allocation3 + $0x8f0] sm:$0xff] %v1102
        %v1135 = vld [vmem:[%s1006 + $0x2] sm:$0xff]
        %v1136 = vld [vmem:[%s1006 + $0xa] sm:$0xff]
        %v1137 = vld [vmem:[%s1006 + $0x1a] sm:$0xff]
        %v1138 = vld [vmem:[%s1006 + $0x22] sm:$0xff]
        %v1139 = vld [vmem:[%s1006 + $0x32] sm:$0xff]
        %v1140 = vld [vmem:[%s1006 + $0x3a] sm:$0xff]
        %v1141 = vld [vmem:[%s1006 + $0x4a] sm:$0xff]
        %v1142 = vld [vmem:[%s1006 + $0x52] sm:$0xff]
        %v1143 = vld [vmem:[%s1006 + $0x62] sm:$0xff]
        %v1144 = vld [vmem:[%s1006 + $0x6a] sm:$0xff]
        %v1145 = vld [vmem:[%s1006 + $0x7a] sm:$0xff]
        %v1146 = vld [vmem:[%s1006 + $0x82] sm:$0xff]
        %v1147 = vld [vmem:[%s1006 + $0x92] sm:$0xff]
        %v1148 = vld [vmem:[%s1006 + $0x9a] sm:$0xff]
        %v1149 = vld [vmem:[%s1006 + $0xaa] sm:$0xff]
        %v1150 = vld [vmem:[%s1006 + $0xb2] sm:$0xff]
        %v1151 = vld [vmem:[%s1006 + $0xc2] sm:$0xff]
        %v1152 = vld [vmem:[%s1006 + $0xca] sm:$0xff]
        %v1153 = vld [vmem:[%s1006 + $0xda] sm:$0xff]
        %v1154 = vld [vmem:[%s1006 + $0xe2] sm:$0xff]
        %v1155 = vld [vmem:[%s1006 + $0xf2] sm:$0xff]
        %v1156 = vld [vmem:[%s1006 + $0xfa] sm:$0xff]
        %v1157 = vld [vmem:[%s1006 + $0x10a] sm:$0xff]
        %v1158 = vld [vmem:[%s1006 + $0x112] sm:$0xff]
        %v1159 = vld [vmem:[%s1006 + $0x122] sm:$0xff]
        %v1160 = vld [vmem:[%s1006 + $0x12a] sm:$0xff]
        %v1161 = vld [vmem:[%s1006 + $0x13a] sm:$0xff]
        %v1162 = vld [vmem:[%s1006 + $0x142] sm:$0xff]
        %v1163 = vld [vmem:[%s1006 + $0x152] sm:$0xff]
        %v1164 = vld [vmem:[%s1006 + $0x15a] sm:$0xff]
        %v1165 = vld [vmem:[%s1006 + $0x16a] sm:$0xff]
        %v1166 = vld [vmem:[%s1006 + $0x172] sm:$0xff]
        %1167 = vst [vmem:[#allocation3 + $0x40] sm:$0xff] %v1135
        %1168 = vst [vmem:[#allocation3 + $0x88] sm:$0xff] %v1136
        %1169 = vst [vmem:[#allocation3 + $0xd0] sm:$0xff] %v1137
        %1170 = vst [vmem:[#allocation3 + $0x118] sm:$0xff] %v1138
        %1171 = vst [vmem:[#allocation3 + $0x160] sm:$0xff] %v1139
        %1172 = vst [vmem:[#allocation3 + $0x1a8] sm:$0xff] %v1140
        %1173 = vst [vmem:[#allocation3 + $0x1f0] sm:$0xff] %v1141
        %1174 = vst [vmem:[#allocation3 + $0x238] sm:$0xff] %v1142
        %1175 = vst [vmem:[#allocation3 + $0x280] sm:$0xff] %v1143
        %1176 = vst [vmem:[#allocation3 + $0x2c8] sm:$0xff] %v1144
        %1177 = vst [vmem:[#allocation3 + $0x310] sm:$0xff] %v1145
        %1178 = vst [vmem:[#allocation3 + $0x358] sm:$0xff] %v1146
        %1179 = vst [vmem:[#allocation3 + $0x3a0] sm:$0xff] %v1147
        %1180 = vst [vmem:[#allocation3 + $0x3e8] sm:$0xff] %v1148
        %1181 = vst [vmem:[#allocation3 + $0x430] sm:$0xff] %v1149
        %1182 = vst [vmem:[#allocation3 + $0x478] sm:$0xff] %v1150
        %1183 = vst [vmem:[#allocation3 + $0x4c0] sm:$0xff] %v1151
        %1184 = vst [vmem:[#allocation3 + $0x508] sm:$0xff] %v1152
        %1185 = vst [vmem:[#allocation3 + $0x550] sm:$0xff] %v1153
        %1186 = vst [vmem:[#allocation3 + $0x598] sm:$0xff] %v1154
        %1187 = vst [vmem:[#allocation3 + $0x5e0] sm:$0xff] %v1155
        %1188 = vst [vmem:[#allocation3 + $0x628] sm:$0xff] %v1156
        %1189 = vst [vmem:[#allocation3 + $0x670] sm:$0xff] %v1157
        %1190 = vst [vmem:[#allocation3 + $0x6b8] sm:$0xff] %v1158
        %1191 = vst [vmem:[#allocation3 + $0x700] sm:$0xff] %v1159
        %1192 = vst [vmem:[#allocation3 + $0x748] sm:$0xff] %v1160
        %1193 = vst [vmem:[#allocation3 + $0x790] sm:$0xff] %v1161
        %1194 = vst [vmem:[#allocation3 + $0x7d8] sm:$0xff] %v1162
        %1195 = vst [vmem:[#allocation3 + $0x820] sm:$0xff] %v1163
        %1196 = vst [vmem:[#allocation3 + $0x868] sm:$0xff] %v1164
        %1197 = vst [vmem:[#allocation3 + $0x8b0] sm:$0xff] %v1165
        %1198 = vst [vmem:[#allocation3 + $0x8f8] sm:$0xff] %v1166
        %v1199 = vld [vmem:[#allocation3] sm:$0xff]
        %v1200 = vld [vmem:[#allocation3 + $0x8] sm:$0xff]
        %v1201 = vld [vmem:[#allocation3 + $0x10] sm:$0xff]
        %v1202 = vld [vmem:[#allocation3 + $0x18] sm:$0xff]
        %v1203 = vld [vmem:[#allocation3 + $0x20] sm:$0xff]
        %v1204 = vld [vmem:[#allocation3 + $0x28] sm:$0xff]
        %v1205 = vld [vmem:[#allocation3 + $0x30] sm:$0xff]
        %v1206 = vld [vmem:[#allocation3 + $0x38] sm:$0xff]
        %v1207 = vld [vmem:[#allocation3 + $0x40] sm:$0xff]
        %v1208 = vld [vmem:[#allocation3 + $0x48] sm:$0xff]
        %v1209 = vld [vmem:[#allocation3 + $0x50] sm:$0xff]
        %v1210 = vld [vmem:[#allocation3 + $0x58] sm:$0xff]
        %v1211 = vld [vmem:[#allocation3 + $0x60] sm:$0xff]
        %v1212 = vld [vmem:[#allocation3 + $0x68] sm:$0xff]
        %v1213 = vld [vmem:[#allocation3 + $0x70] sm:$0xff]
        %v1214 = vld [vmem:[#allocation3 + $0x78] sm:$0xff]
        %v1215 = vld [vmem:[#allocation3 + $0x80] sm:$0xff]
        %v1216 = vld [vmem:[#allocation3 + $0x88] sm:$0xff]
        %v1217 = vld [vmem:[#allocation3 + $0x90] sm:$0xff]
        %v1218 = vld [vmem:[#allocation3 + $0x98] sm:$0xff]
        %v1219 = vld [vmem:[#allocation3 + $0xa0] sm:$0xff]
        %v1220 = vld [vmem:[#allocation3 + $0xa8] sm:$0xff]
        %v1221 = vld [vmem:[#allocation3 + $0xb0] sm:$0xff]
        %v1222 = vld [vmem:[#allocation3 + $0xb8] sm:$0xff]
        %v1223 = vld [vmem:[#allocation3 + $0xc0] sm:$0xff]
        %v1224 = vld [vmem:[#allocation3 + $0xc8] sm:$0xff]
        %v1225 = vld [vmem:[#allocation3 + $0xd0] sm:$0xff]
        %v1226 = vld [vmem:[#allocation3 + $0xd8] sm:$0xff]
        %v1227 = vld [vmem:[#allocation3 + $0xe0] sm:$0xff]
        %v1228 = vld [vmem:[#allocation3 + $0xe8] sm:$0xff]
        %v1229 = vld [vmem:[#allocation3 + $0xf0] sm:$0xff]
        %v1230 = vld [vmem:[#allocation3 + $0xf8] sm:$0xff]
        %v1231 = vld [vmem:[#allocation3 + $0x100] sm:$0xff]
        %v1232 = vld [vmem:[#allocation3 + $0x108] sm:$0xff]
        %v1233 = vld [vmem:[#allocation3 + $0x110] sm:$0xff]
        %v1234 = vld [vmem:[#allocation3 + $0x118] sm:$0xff]
        %v1235 = vld [vmem:[#allocation3 + $0x120] sm:$0xff]
        %v1236 = vld [vmem:[#allocation3 + $0x128] sm:$0xff]
        %v1237 = vld [vmem:[#allocation3 + $0x130] sm:$0xff]
        %v1238 = vld [vmem:[#allocation3 + $0x138] sm:$0xff]
        %v1239 = vld [vmem:[#allocation3 + $0x140] sm:$0xff]
        %v1240 = vld [vmem:[#allocation3 + $0x148] sm:$0xff]
        %v1241 = vld [vmem:[#allocation3 + $0x150] sm:$0xff]
        %v1242 = vld [vmem:[#allocation3 + $0x158] sm:$0xff]
        %v1243 = vld [vmem:[#allocation3 + $0x160] sm:$0xff]
        %v1244 = vld [vmem:[#allocation3 + $0x168] sm:$0xff]
        %v1245 = vld [vmem:[#allocation3 + $0x170] sm:$0xff]
        %v1246 = vld [vmem:[#allocation3 + $0x178] sm:$0xff]
        %v1247 = vld [vmem:[#allocation3 + $0x180] sm:$0xff]
        %v1248 = vld [vmem:[#allocation3 + $0x188] sm:$0xff]
        %v1249 = vld [vmem:[#allocation3 + $0x190] sm:$0xff]
        %v1250 = vld [vmem:[#allocation3 + $0x198] sm:$0xff]
        %v1251 = vld [vmem:[#allocation3 + $0x1a0] sm:$0xff]
        %v1252 = vld [vmem:[#allocation3 + $0x1a8] sm:$0xff]
        %v1253 = vld [vmem:[#allocation3 + $0x1b0] sm:$0xff]
        %v1254 = vld [vmem:[#allocation3 + $0x1b8] sm:$0xff]
        %v1255 = vld [vmem:[#allocation3 + $0x1c0] sm:$0xff]
        %v1256 = vld [vmem:[#allocation3 + $0x1c8] sm:$0xff]
        %v1257 = vld [vmem:[#allocation3 + $0x1d0] sm:$0xff]
        %v1258 = vld [vmem:[#allocation3 + $0x1d8] sm:$0xff]
        %v1259 = vld [vmem:[#allocation3 + $0x1e0] sm:$0xff]
        %v1260 = vld [vmem:[#allocation3 + $0x1e8] sm:$0xff]
        %v1261 = vld [vmem:[#allocation3 + $0x1f0] sm:$0xff]
        %v1262 = vld [vmem:[#allocation3 + $0x1f8] sm:$0xff]
        %v1263 = vld [vmem:[#allocation3 + $0x200] sm:$0xff]
        %v1264 = vld [vmem:[#allocation3 + $0x208] sm:$0xff]
        %v1265 = vld [vmem:[#allocation3 + $0x210] sm:$0xff]
        %v1266 = vld [vmem:[#allocation3 + $0x218] sm:$0xff]
        %v1267 = vld [vmem:[#allocation3 + $0x220] sm:$0xff]
        %v1268 = vld [vmem:[#allocation3 + $0x228] sm:$0xff]
        %v1269 = vld [vmem:[#allocation3 + $0x230] sm:$0xff]
        %v1270 = vld [vmem:[#allocation3 + $0x238] sm:$0xff]
        %v1271 = vld [vmem:[#allocation3 + $0x240] sm:$0xff]
        %v1272 = vld [vmem:[#allocation3 + $0x248] sm:$0xff]
        %v1273 = vld [vmem:[#allocation3 + $0x250] sm:$0xff]
        %v1274 = vld [vmem:[#allocation3 + $0x258] sm:$0xff]
        %v1275 = vld [vmem:[#allocation3 + $0x260] sm:$0xff]
        %v1276 = vld [vmem:[#allocation3 + $0x268] sm:$0xff]
        %v1277 = vld [vmem:[#allocation3 + $0x270] sm:$0xff]
        %v1278 = vld [vmem:[#allocation3 + $0x278] sm:$0xff]
        %v1279 = vld [vmem:[#allocation3 + $0x280] sm:$0xff]
        %v1280 = vld [vmem:[#allocation3 + $0x288] sm:$0xff]
        %v1281 = vld [vmem:[#allocation3 + $0x290] sm:$0xff]
        %v1282 = vld [vmem:[#allocation3 + $0x298] sm:$0xff]
        %v1283 = vld [vmem:[#allocation3 + $0x2a0] sm:$0xff]
        %v1284 = vld [vmem:[#allocation3 + $0x2a8] sm:$0xff]
        %v1285 = vld [vmem:[#allocation3 + $0x2b0] sm:$0xff]
        %v1286 = vld [vmem:[#allocation3 + $0x2b8] sm:$0xff]
        %v1287 = vld [vmem:[#allocation3 + $0x2c0] sm:$0xff]
        %v1288 = vld [vmem:[#allocation3 + $0x2c8] sm:$0xff]
        %v1289 = vld [vmem:[#allocation3 + $0x2d0] sm:$0xff]
        %v1290 = vld [vmem:[#allocation3 + $0x2d8] sm:$0xff]
        %v1291 = vld [vmem:[#allocation3 + $0x2e0] sm:$0xff]
        %v1292 = vld [vmem:[#allocation3 + $0x2e8] sm:$0xff]
        %v1293 = vld [vmem:[#allocation3 + $0x2f0] sm:$0xff]
        %v1294 = vld [vmem:[#allocation3 + $0x2f8] sm:$0xff]
        %v1295 = vld [vmem:[#allocation3 + $0x300] sm:$0xff]
        %v1296 = vld [vmem:[#allocation3 + $0x308] sm:$0xff]
        %v1297 = vld [vmem:[#allocation3 + $0x310] sm:$0xff]
        %v1298 = vld [vmem:[#allocation3 + $0x318] sm:$0xff]
        %v1299 = vld [vmem:[#allocation3 + $0x320] sm:$0xff]
        %v1300 = vld [vmem:[#allocation3 + $0x328] sm:$0xff]
        %v1301 = vld [vmem:[#allocation3 + $0x330] sm:$0xff]
        %v1302 = vld [vmem:[#allocation3 + $0x338] sm:$0xff]
        %v1303 = vld [vmem:[#allocation3 + $0x340] sm:$0xff]
        %v1304 = vld [vmem:[#allocation3 + $0x348] sm:$0xff]
        %v1305 = vld [vmem:[#allocation3 + $0x350] sm:$0xff]
        %v1306 = vld [vmem:[#allocation3 + $0x358] sm:$0xff]
        %v1307 = vld [vmem:[#allocation3 + $0x360] sm:$0xff]
        %v1308 = vld [vmem:[#allocation3 + $0x368] sm:$0xff]
        %v1309 = vld [vmem:[#allocation3 + $0x370] sm:$0xff]
        %v1310 = vld [vmem:[#allocation3 + $0x378] sm:$0xff]
        %v1311 = vld [vmem:[#allocation3 + $0x380] sm:$0xff]
        %v1312 = vld [vmem:[#allocation3 + $0x388] sm:$0xff]
        %v1313 = vld [vmem:[#allocation3 + $0x390] sm:$0xff]
        %v1314 = vld [vmem:[#allocation3 + $0x398] sm:$0xff]
        %v1315 = vld [vmem:[#allocation3 + $0x3a0] sm:$0xff]
        %v1316 = vld [vmem:[#allocation3 + $0x3a8] sm:$0xff]
        %v1317 = vld [vmem:[#allocation3 + $0x3b0] sm:$0xff]
        %v1318 = vld [vmem:[#allocation3 + $0x3b8] sm:$0xff]
        %v1319 = vld [vmem:[#allocation3 + $0x3c0] sm:$0xff]
        %v1320 = vld [vmem:[#allocation3 + $0x3c8] sm:$0xff]
        %v1321 = vld [vmem:[#allocation3 + $0x3d0] sm:$0xff]
        %v1322 = vld [vmem:[#allocation3 + $0x3d8] sm:$0xff]
        %v1323 = vld [vmem:[#allocation3 + $0x3e0] sm:$0xff]
        %v1324 = vld [vmem:[#allocation3 + $0x3e8] sm:$0xff]
        %v1325 = vld [vmem:[#allocation3 + $0x3f0] sm:$0xff]
        %v1326 = vld [vmem:[#allocation3 + $0x3f8] sm:$0xff]
        %v1327 = vld [vmem:[#allocation3 + $0x400] sm:$0xff]
        %v1328 = vld [vmem:[#allocation3 + $0x408] sm:$0xff]
        %v1329 = vld [vmem:[#allocation3 + $0x410] sm:$0xff]
        %v1330 = vld [vmem:[#allocation3 + $0x418] sm:$0xff]
        %v1331 = vld [vmem:[#allocation3 + $0x420] sm:$0xff]
        %v1332 = vld [vmem:[#allocation3 + $0x428] sm:$0xff]
        %v1333 = vld [vmem:[#allocation3 + $0x430] sm:$0xff]
        %v1334 = vld [vmem:[#allocation3 + $0x438] sm:$0xff]
        %v1335 = vld [vmem:[#allocation3 + $0x440] sm:$0xff]
        %v1336 = vld [vmem:[#allocation3 + $0x448] sm:$0xff]
        %v1337 = vld [vmem:[#allocation3 + $0x450] sm:$0xff]
        %v1338 = vld [vmem:[#allocation3 + $0x458] sm:$0xff]
        %v1339 = vld [vmem:[#allocation3 + $0x460] sm:$0xff]
        %v1340 = vld [vmem:[#allocation3 + $0x468] sm:$0xff]
        %v1341 = vld [vmem:[#allocation3 + $0x470] sm:$0xff]
        %v1342 = vld [vmem:[#allocation3 + $0x478] sm:$0xff]
        %v1343 = vld [vmem:[#allocation3 + $0x480] sm:$0xff]
        %v1344 = vld [vmem:[#allocation3 + $0x488] sm:$0xff]
        %v1345 = vld [vmem:[#allocation3 + $0x490] sm:$0xff]
        %v1346 = vld [vmem:[#allocation3 + $0x498] sm:$0xff]
        %v1347 = vld [vmem:[#allocation3 + $0x4a0] sm:$0xff]
        %v1348 = vld [vmem:[#allocation3 + $0x4a8] sm:$0xff]
        %v1349 = vld [vmem:[#allocation3 + $0x4b0] sm:$0xff]
        %v1350 = vld [vmem:[#allocation3 + $0x4b8] sm:$0xff]
        %v1351 = vld [vmem:[#allocation3 + $0x4c0] sm:$0xff]
        %v1352 = vld [vmem:[#allocation3 + $0x4c8] sm:$0xff]
        %v1353 = vld [vmem:[#allocation3 + $0x4d0] sm:$0xff]
        %v1354 = vld [vmem:[#allocation3 + $0x4d8] sm:$0xff]
        %v1355 = vld [vmem:[#allocation3 + $0x4e0] sm:$0xff]
        %v1356 = vld [vmem:[#allocation3 + $0x4e8] sm:$0xff]
        %v1357 = vld [vmem:[#allocation3 + $0x4f0] sm:$0xff]
        %v1358 = vld [vmem:[#allocation3 + $0x4f8] sm:$0xff]
        %v1359 = vld [vmem:[#allocation3 + $0x500] sm:$0xff]
        %v1360 = vld [vmem:[#allocation3 + $0x508] sm:$0xff]
        %v1361 = vld [vmem:[#allocation3 + $0x510] sm:$0xff]
        %v1362 = vld [vmem:[#allocation3 + $0x518] sm:$0xff]
        %v1363 = vld [vmem:[#allocation3 + $0x520] sm:$0xff]
        %v1364 = vld [vmem:[#allocation3 + $0x528] sm:$0xff]
        %v1365 = vld [vmem:[#allocation3 + $0x530] sm:$0xff]
        %v1366 = vld [vmem:[#allocation3 + $0x538] sm:$0xff]
        %v1367 = vld [vmem:[#allocation3 + $0x540] sm:$0xff]
        %v1368 = vld [vmem:[#allocation3 + $0x548] sm:$0xff]
        %v1369 = vld [vmem:[#allocation3 + $0x550] sm:$0xff]
        %v1370 = vld [vmem:[#allocation3 + $0x558] sm:$0xff]
        %v1371 = vld [vmem:[#allocation3 + $0x560] sm:$0xff]
        %v1372 = vld [vmem:[#allocation3 + $0x568] sm:$0xff]
        %v1373 = vld [vmem:[#allocation3 + $0x570] sm:$0xff]
        %v1374 = vld [vmem:[#allocation3 + $0x578] sm:$0xff]
        %v1375 = vld [vmem:[#allocation3 + $0x580] sm:$0xff]
        %v1376 = vld [vmem:[#allocation3 + $0x588] sm:$0xff]
        %v1377 = vld [vmem:[#allocation3 + $0x590] sm:$0xff]
        %v1378 = vld [vmem:[#allocation3 + $0x598] sm:$0xff]
        %v1379 = vld [vmem:[#allocation3 + $0x5a0] sm:$0xff]
        %v1380 = vld [vmem:[#allocation3 + $0x5a8] sm:$0xff]
        %v1381 = vld [vmem:[#allocation3 + $0x5b0] sm:$0xff]
        %v1382 = vld [vmem:[#allocation3 + $0x5b8] sm:$0xff]
        %v1383 = vld [vmem:[#allocation3 + $0x5c0] sm:$0xff]
        %v1384 = vld [vmem:[#allocation3 + $0x5c8] sm:$0xff]
        %v1385 = vld [vmem:[#allocation3 + $0x5d0] sm:$0xff]
        %v1386 = vld [vmem:[#allocation3 + $0x5d8] sm:$0xff]
        %v1387 = vld [vmem:[#allocation3 + $0x5e0] sm:$0xff]
        %v1388 = vld [vmem:[#allocation3 + $0x5e8] sm:$0xff]
        %v1389 = vld [vmem:[#allocation3 + $0x5f0] sm:$0xff]
        %v1390 = vld [vmem:[#allocation3 + $0x5f8] sm:$0xff]
        %v1391 = vld [vmem:[#allocation3 + $0x600] sm:$0xff]
        %v1392 = vld [vmem:[#allocation3 + $0x608] sm:$0xff]
        %v1393 = vld [vmem:[#allocation3 + $0x610] sm:$0xff]
        %v1394 = vld [vmem:[#allocation3 + $0x618] sm:$0xff]
        %v1395 = vld [vmem:[#allocation3 + $0x620] sm:$0xff]
        %v1396 = vld [vmem:[#allocation3 + $0x628] sm:$0xff]
        %v1397 = vld [vmem:[#allocation3 + $0x630] sm:$0xff]
        %v1398 = vld [vmem:[#allocation3 + $0x638] sm:$0xff]
        %v1399 = vld [vmem:[#allocation3 + $0x640] sm:$0xff]
        %v1400 = vld [vmem:[#allocation3 + $0x648] sm:$0xff]
        %v1401 = vld [vmem:[#allocation3 + $0x650] sm:$0xff]
        %v1402 = vld [vmem:[#allocation3 + $0x658] sm:$0xff]
        %v1403 = vld [vmem:[#allocation3 + $0x660] sm:$0xff]
        %v1404 = vld [vmem:[#allocation3 + $0x668] sm:$0xff]
        %v1405 = vld [vmem:[#allocation3 + $0x670] sm:$0xff]
        %v1406 = vld [vmem:[#allocation3 + $0x678] sm:$0xff]
        %v1407 = vld [vmem:[#allocation3 + $0x680] sm:$0xff]
        %v1408 = vld [vmem:[#allocation3 + $0x688] sm:$0xff]
        %v1409 = vld [vmem:[#allocation3 + $0x690] sm:$0xff]
        %v1410 = vld [vmem:[#allocation3 + $0x698] sm:$0xff]
        %v1411 = vld [vmem:[#allocation3 + $0x6a0] sm:$0xff]
        %v1412 = vld [vmem:[#allocation3 + $0x6a8] sm:$0xff]
        %v1413 = vld [vmem:[#allocation3 + $0x6b0] sm:$0xff]
        %v1414 = vld [vmem:[#allocation3 + $0x6b8] sm:$0xff]
        %v1415 = vld [vmem:[#allocation3 + $0x6c0] sm:$0xff]
        %v1416 = vld [vmem:[#allocation3 + $0x6c8] sm:$0xff]
        %v1417 = vld [vmem:[#allocation3 + $0x6d0] sm:$0xff]
        %v1418 = vld [vmem:[#allocation3 + $0x6d8] sm:$0xff]
        %v1419 = vld [vmem:[#allocation3 + $0x6e0] sm:$0xff]
        %v1420 = vld [vmem:[#allocation3 + $0x6e8] sm:$0xff]
        %v1421 = vld [vmem:[#allocation3 + $0x6f0] sm:$0xff]
        %v1422 = vld [vmem:[#allocation3 + $0x6f8] sm:$0xff]
        %v1423 = vld [vmem:[#allocation3 + $0x700] sm:$0xff]
        %v1424 = vld [vmem:[#allocation3 + $0x708] sm:$0xff]
        %v1425 = vld [vmem:[#allocation3 + $0x710] sm:$0xff]
        %v1426 = vld [vmem:[#allocation3 + $0x718] sm:$0xff]
        %v1427 = vld [vmem:[#allocation3 + $0x720] sm:$0xff]
        %v1428 = vld [vmem:[#allocation3 + $0x728] sm:$0xff]
        %v1429 = vld [vmem:[#allocation3 + $0x730] sm:$0xff]
        %v1430 = vld [vmem:[#allocation3 + $0x738] sm:$0xff]
        %v1431 = vld [vmem:[#allocation3 + $0x740] sm:$0xff]
        %v1432 = vld [vmem:[#allocation3 + $0x748] sm:$0xff]
        %v1433 = vld [vmem:[#allocation3 + $0x750] sm:$0xff]
        %v1434 = vld [vmem:[#allocation3 + $0x758] sm:$0xff]
        %v1435 = vld [vmem:[#allocation3 + $0x760] sm:$0xff]
        %v1436 = vld [vmem:[#allocation3 + $0x768] sm:$0xff]
        %v1437 = vld [vmem:[#allocation3 + $0x770] sm:$0xff]
        %v1438 = vld [vmem:[#allocation3 + $0x778] sm:$0xff]
        %v1439 = vld [vmem:[#allocation3 + $0x780] sm:$0xff]
        %v1440 = vld [vmem:[#allocation3 + $0x788] sm:$0xff]
        %v1441 = vld [vmem:[#allocation3 + $0x790] sm:$0xff]
        %v1442 = vld [vmem:[#allocation3 + $0x798] sm:$0xff]
        %v1443 = vld [vmem:[#allocation3 + $0x7a0] sm:$0xff]
        %v1444 = vld [vmem:[#allocation3 + $0x7a8] sm:$0xff]
        %v1445 = vld [vmem:[#allocation3 + $0x7b0] sm:$0xff]
        %v1446 = vld [vmem:[#allocation3 + $0x7b8] sm:$0xff]
        %v1447 = vld [vmem:[#allocation3 + $0x7c0] sm:$0xff]
        %v1448 = vld [vmem:[#allocation3 + $0x7c8] sm:$0xff]
        %v1449 = vld [vmem:[#allocation3 + $0x7d0] sm:$0xff]
        %v1450 = vld [vmem:[#allocation3 + $0x7d8] sm:$0xff]
        %v1451 = vld [vmem:[#allocation3 + $0x7e0] sm:$0xff]
        %v1452 = vld [vmem:[#allocation3 + $0x7e8] sm:$0xff]
        %v1453 = vld [vmem:[#allocation3 + $0x7f0] sm:$0xff]
        %v1454 = vld [vmem:[#allocation3 + $0x7f8] sm:$0xff]
        %v1455 = vld [vmem:[#allocation3 + $0x800] sm:$0xff]
        %v1456 = vld [vmem:[#allocation3 + $0x808] sm:$0xff]
        %v1457 = vld [vmem:[#allocation3 + $0x810] sm:$0xff]
        %v1458 = vld [vmem:[#allocation3 + $0x818] sm:$0xff]
        %v1459 = vld [vmem:[#allocation3 + $0x820] sm:$0xff]
        %v1460 = vld [vmem:[#allocation3 + $0x828] sm:$0xff]
        %v1461 = vld [vmem:[#allocation3 + $0x830] sm:$0xff]
        %v1462 = vld [vmem:[#allocation3 + $0x838] sm:$0xff]
        %v1463 = vld [vmem:[#allocation3 + $0x840] sm:$0xff]
        %v1464 = vld [vmem:[#allocation3 + $0x848] sm:$0xff]
        %v1465 = vld [vmem:[#allocation3 + $0x850] sm:$0xff]
        %v1466 = vld [vmem:[#allocation3 + $0x858] sm:$0xff]
        %v1467 = vld [vmem:[#allocation3 + $0x860] sm:$0xff]
        %v1468 = vld [vmem:[#allocation3 + $0x868] sm:$0xff]
        %v1469 = vld [vmem:[#allocation3 + $0x870] sm:$0xff]
        %v1470 = vld [vmem:[#allocation3 + $0x878] sm:$0xff]
        %v1471 = vld [vmem:[#allocation3 + $0x880] sm:$0xff]
        %v1472 = vld [vmem:[#allocation3 + $0x888] sm:$0xff]
        %v1473 = vld [vmem:[#allocation3 + $0x890] sm:$0xff]
        %v1474 = vld [vmem:[#allocation3 + $0x898] sm:$0xff]
        %v1475 = vld [vmem:[#allocation3 + $0x8a0] sm:$0xff]
        %v1476 = vld [vmem:[#allocation3 + $0x8a8] sm:$0xff]
        %v1477 = vld [vmem:[#allocation3 + $0x8b0] sm:$0xff]
        %v1478 = vld [vmem:[#allocation3 + $0x8b8] sm:$0xff]
        %v1479 = vld [vmem:[#allocation3 + $0x8c0] sm:$0xff]
        %v1480 = vld [vmem:[#allocation3 + $0x8c8] sm:$0xff]
        %v1481 = vld [vmem:[#allocation3 + $0x8d0] sm:$0xff]
        %v1482 = vld [vmem:[#allocation3 + $0x8d8] sm:$0xff]
        %v1483 = vld [vmem:[#allocation3 + $0x8e0] sm:$0xff]
        %v1484 = vld [vmem:[#allocation3 + $0x8e8] sm:$0xff]
        %v1485 = vld [vmem:[#allocation3 + $0x8f0] sm:$0xff]
        %v1486 = vld [vmem:[#allocation3 + $0x8f8] sm:$0xff]
        %v1487 = vld [vmem:[#allocation9] sm:$0xff]
        %v1488 = vld [vmem:[#allocation9 + $0x8] sm:$0xff]
        %v1489 = vld [vmem:[#allocation9 + $0x10] sm:$0xff]
        %v1490 = vld [vmem:[#allocation9 + $0x18] sm:$0xff]
        %v1491 = vld [vmem:[#allocation9 + $0x20] sm:$0xff]
        %v1492 = vld [vmem:[#allocation9 + $0x28] sm:$0xff]
        %v1493 = vld [vmem:[#allocation9 + $0x30] sm:$0xff]
        %v1494 = vld [vmem:[#allocation9 + $0x38] sm:$0xff]
        %v1495 = vld [vmem:[#allocation9 + $0x40] sm:$0xff]
        %v1496 = vld [vmem:[#allocation9 + $0x48] sm:$0xff]
        %v1497 = vld [vmem:[#allocation9 + $0x50] sm:$0xff]
        %v1498 = vld [vmem:[#allocation9 + $0x58] sm:$0xff]
        %v1499 = vld [vmem:[#allocation9 + $0x60] sm:$0xff]
        %v1500 = vld [vmem:[#allocation9 + $0x68] sm:$0xff]
        %v1501 = vld [vmem:[#allocation9 + $0x70] sm:$0xff]
        %v1502 = vld [vmem:[#allocation9 + $0x78] sm:$0xff]
        %v1503 = vld [vmem:[#allocation9 + $0x80] sm:$0xff]
        %v1504 = vld [vmem:[#allocation9 + $0x88] sm:$0xff]
        %v1505 = vld [vmem:[#allocation9 + $0x90] sm:$0xff]
        %v1506 = vld [vmem:[#allocation9 + $0x98] sm:$0xff]
        %v1507 = vld [vmem:[#allocation9 + $0xa0] sm:$0xff]
        %v1508 = vld [vmem:[#allocation9 + $0xa8] sm:$0xff]
        %v1509 = vld [vmem:[#allocation9 + $0xb0] sm:$0xff]
        %v1510 = vld [vmem:[#allocation9 + $0xb8] sm:$0xff]
        %v1511 = vld [vmem:[#allocation9 + $0xc0] sm:$0xff]
        %v1512 = vld [vmem:[#allocation9 + $0xc8] sm:$0xff]
        %v1513 = vld [vmem:[#allocation9 + $0xd0] sm:$0xff]
        %v1514 = vld [vmem:[#allocation9 + $0xd8] sm:$0xff]
        %v1515 = vld [vmem:[#allocation9 + $0xe0] sm:$0xff]
        %v1516 = vld [vmem:[#allocation9 + $0xe8] sm:$0xff]
        %v1517 = vld [vmem:[#allocation9 + $0xf0] sm:$0xff]
        %v1518 = vld [vmem:[#allocation9 + $0xf8] sm:$0xff]
        %v1519 = vld [vmem:[#allocation9 + $0x100] sm:$0xff]
        %v1520 = vld [vmem:[#allocation9 + $0x108] sm:$0xff]
        %v1521 = vld [vmem:[#allocation9 + $0x110] sm:$0xff]
        %v1522 = vld [vmem:[#allocation9 + $0x118] sm:$0xff]
        %v1523 = vld [vmem:[#allocation9 + $0x120] sm:$0xff]
        %v1524 = vld [vmem:[#allocation9 + $0x128] sm:$0xff]
        %v1525 = vld [vmem:[#allocation9 + $0x130] sm:$0xff]
        %v1526 = vld [vmem:[#allocation9 + $0x138] sm:$0xff]
        %v1527 = vld [vmem:[#allocation9 + $0x140] sm:$0xff]
        %v1528 = vld [vmem:[#allocation9 + $0x148] sm:$0xff]
        %v1529 = vld [vmem:[#allocation9 + $0x150] sm:$0xff]
        %v1530 = vld [vmem:[#allocation9 + $0x158] sm:$0xff]
        %v1531 = vld [vmem:[#allocation9 + $0x160] sm:$0xff]
        %v1532 = vld [vmem:[#allocation9 + $0x168] sm:$0xff]
        %v1533 = vld [vmem:[#allocation9 + $0x170] sm:$0xff]
        %v1534 = vld [vmem:[#allocation9 + $0x178] sm:$0xff]
        %v1535 = vld [vmem:[#allocation9 + $0x180] sm:$0xff]
        %v1536 = vld [vmem:[#allocation9 + $0x188] sm:$0xff]
        %v1537 = vld [vmem:[#allocation9 + $0x190] sm:$0xff]
        %v1538 = vld [vmem:[#allocation9 + $0x198] sm:$0xff]
        %v1539 = vld [vmem:[#allocation9 + $0x1a0] sm:$0xff]
        %v1540 = vld [vmem:[#allocation9 + $0x1a8] sm:$0xff]
        %v1541 = vld [vmem:[#allocation9 + $0x1b0] sm:$0xff]
        %v1542 = vld [vmem:[#allocation9 + $0x1b8] sm:$0xff]
        %v1543 = vld [vmem:[#allocation9 + $0x1c0] sm:$0xff]
        %v1544 = vld [vmem:[#allocation9 + $0x1c8] sm:$0xff]
        %v1545 = vld [vmem:[#allocation9 + $0x1d0] sm:$0xff]
        %v1546 = vld [vmem:[#allocation9 + $0x1d8] sm:$0xff]
        %v1547 = vld [vmem:[#allocation9 + $0x1e0] sm:$0xff]
        %v1548 = vld [vmem:[#allocation9 + $0x1e8] sm:$0xff]
        %v1549 = vld [vmem:[#allocation9 + $0x1f0] sm:$0xff]
        %v1550 = vld [vmem:[#allocation9 + $0x1f8] sm:$0xff]
        %v1551 = vld [vmem:[#allocation9 + $0x200] sm:$0xff]
        %v1552 = vld [vmem:[#allocation9 + $0x208] sm:$0xff]
        %v1553 = vld [vmem:[#allocation9 + $0x210] sm:$0xff]
        %v1554 = vld [vmem:[#allocation9 + $0x218] sm:$0xff]
        %v1555 = vld [vmem:[#allocation9 + $0x220] sm:$0xff]
        %v1556 = vld [vmem:[#allocation9 + $0x228] sm:$0xff]
        %v1557 = vld [vmem:[#allocation9 + $0x230] sm:$0xff]
        %v1558 = vld [vmem:[#allocation9 + $0x238] sm:$0xff]
        %v1559 = vld [vmem:[#allocation9 + $0x240] sm:$0xff]
        %v1560 = vld [vmem:[#allocation9 + $0x248] sm:$0xff]
        %v1561 = vld [vmem:[#allocation9 + $0x250] sm:$0xff]
        %v1562 = vld [vmem:[#allocation9 + $0x258] sm:$0xff]
        %v1563 = vld [vmem:[#allocation9 + $0x260] sm:$0xff]
        %v1564 = vld [vmem:[#allocation9 + $0x268] sm:$0xff]
        %v1565 = vld [vmem:[#allocation9 + $0x270] sm:$0xff]
        %v1566 = vld [vmem:[#allocation9 + $0x278] sm:$0xff]
        %v1567 = vld [vmem:[#allocation9 + $0x280] sm:$0xff]
        %v1568 = vld [vmem:[#allocation9 + $0x288] sm:$0xff]
        %v1569 = vld [vmem:[#allocation9 + $0x290] sm:$0xff]
        %v1570 = vld [vmem:[#allocation9 + $0x298] sm:$0xff]
        %v1571 = vld [vmem:[#allocation9 + $0x2a0] sm:$0xff]
        %v1572 = vld [vmem:[#allocation9 + $0x2a8] sm:$0xff]
        %v1573 = vld [vmem:[#allocation9 + $0x2b0] sm:$0xff]
        %v1574 = vld [vmem:[#allocation9 + $0x2b8] sm:$0xff]
        %v1575 = vld [vmem:[#allocation9 + $0x2c0] sm:$0xff]
        %v1576 = vld [vmem:[#allocation9 + $0x2c8] sm:$0xff]
        %v1577 = vld [vmem:[#allocation9 + $0x2d0] sm:$0xff]
        %v1578 = vld [vmem:[#allocation9 + $0x2d8] sm:$0xff]
        %v1579 = vld [vmem:[#allocation9 + $0x2e0] sm:$0xff]
        %v1580 = vld [vmem:[#allocation9 + $0x2e8] sm:$0xff]
        %v1581 = vld [vmem:[#allocation9 + $0x2f0] sm:$0xff]
        %v1582 = vld [vmem:[#allocation9 + $0x2f8] sm:$0xff]
        %v1583 = vld [vmem:[#allocation9 + $0x300] sm:$0xff]
        %v1584 = vld [vmem:[#allocation9 + $0x308] sm:$0xff]
        %v1585 = vld [vmem:[#allocation9 + $0x310] sm:$0xff]
        %v1586 = vld [vmem:[#allocation9 + $0x318] sm:$0xff]
        %v1587 = vld [vmem:[#allocation9 + $0x320] sm:$0xff]
        %v1588 = vld [vmem:[#allocation9 + $0x328] sm:$0xff]
        %v1589 = vld [vmem:[#allocation9 + $0x330] sm:$0xff]
        %v1590 = vld [vmem:[#allocation9 + $0x338] sm:$0xff]
        %v1591 = vld [vmem:[#allocation9 + $0x340] sm:$0xff]
        %v1592 = vld [vmem:[#allocation9 + $0x348] sm:$0xff]
        %v1593 = vld [vmem:[#allocation9 + $0x350] sm:$0xff]
        %v1594 = vld [vmem:[#allocation9 + $0x358] sm:$0xff]
        %v1595 = vld [vmem:[#allocation9 + $0x360] sm:$0xff]
        %v1596 = vld [vmem:[#allocation9 + $0x368] sm:$0xff]
        %v1597 = vld [vmem:[#allocation9 + $0x370] sm:$0xff]
        %v1598 = vld [vmem:[#allocation9 + $0x378] sm:$0xff]
        %v1599 = vld [vmem:[#allocation9 + $0x380] sm:$0xff]
        %v1600 = vld [vmem:[#allocation9 + $0x388] sm:$0xff]
        %v1601 = vld [vmem:[#allocation9 + $0x390] sm:$0xff]
        %v1602 = vld [vmem:[#allocation9 + $0x398] sm:$0xff]
        %v1603 = vld [vmem:[#allocation9 + $0x3a0] sm:$0xff]
        %v1604 = vld [vmem:[#allocation9 + $0x3a8] sm:$0xff]
        %v1605 = vld [vmem:[#allocation9 + $0x3b0] sm:$0xff]
        %v1606 = vld [vmem:[#allocation9 + $0x3b8] sm:$0xff]
        %v1607 = vld [vmem:[#allocation9 + $0x3c0] sm:$0xff]
        %v1608 = vld [vmem:[#allocation9 + $0x3c8] sm:$0xff]
        %v1609 = vld [vmem:[#allocation9 + $0x3d0] sm:$0xff]
        %v1610 = vld [vmem:[#allocation9 + $0x3d8] sm:$0xff]
        %v1611 = vld [vmem:[#allocation9 + $0x3e0] sm:$0xff]
        %v1612 = vld [vmem:[#allocation9 + $0x3e8] sm:$0xff]
        %v1613 = vld [vmem:[#allocation9 + $0x3f0] sm:$0xff]
        %v1614 = vld [vmem:[#allocation9 + $0x3f8] sm:$0xff]
        %v1615 = vld [vmem:[#allocation9 + $0x400] sm:$0xff]
        %v1616 = vld [vmem:[#allocation9 + $0x408] sm:$0xff]
        %v1617 = vld [vmem:[#allocation9 + $0x410] sm:$0xff]
        %v1618 = vld [vmem:[#allocation9 + $0x418] sm:$0xff]
        %v1619 = vld [vmem:[#allocation9 + $0x420] sm:$0xff]
        %v1620 = vld [vmem:[#allocation9 + $0x428] sm:$0xff]
        %v1621 = vld [vmem:[#allocation9 + $0x430] sm:$0xff]
        %v1622 = vld [vmem:[#allocation9 + $0x438] sm:$0xff]
        %v1623 = vld [vmem:[#allocation9 + $0x440] sm:$0xff]
        %v1624 = vld [vmem:[#allocation9 + $0x448] sm:$0xff]
        %v1625 = vld [vmem:[#allocation9 + $0x450] sm:$0xff]
        %v1626 = vld [vmem:[#allocation9 + $0x458] sm:$0xff]
        %v1627 = vld [vmem:[#allocation9 + $0x460] sm:$0xff]
        %v1628 = vld [vmem:[#allocation9 + $0x468] sm:$0xff]
        %v1629 = vld [vmem:[#allocation9 + $0x470] sm:$0xff]
        %v1630 = vld [vmem:[#allocation9 + $0x478] sm:$0xff]
        %v1631 = vld [vmem:[%s4] sm:$0x1]
        %v1633 = vperm.slane %v1631, 0
        %1635 = vmatpush.msra.mxu0 %v1502
        %1636 = vmatpush.msra.mxu0 %v1501
        %1637 = vmatpush.msra.mxu0 %v1500
        %1638 = vmatpush.msra.mxu0 %v1499
        %1639 = vmatpush.msra.mxu0 %v1498
        %1640 = vmatpush.msra.mxu0 %v1497
        %1641 = vmatpush.msra.mxu0 %v1496
        %1642 = vmatpush.msra.mxu0 %v1495
        %1643 = vmatpush.msra.mxu0 %v1494
        %1644 = vmatpush.msra.mxu0 %v1493
        %1645 = vmatpush.msra.mxu0 %v1492
        %1646 = vmatpush.msra.mxu0 %v1491
        %1647 = vmatpush.msra.mxu0 %v1490
        %1648 = vmatpush.msra.mxu0 %v1489
        %1649 = vmatpush.msra.mxu0 %v1488
        %1650 = vmatpush.msra.mxu0 %v1487
        %1651 = vmatmul.f32.gmra.mxu0 %v1199
        %v1652 = vpop.f32.mrf.mxu0
        %v1653 = vadd.f32 %v1633, %v1652
        %1654 = vmatmul.f32.gmra.mxu0 %v1208
        %v1655 = vpop.f32.mrf.mxu0
        %v1656 = vadd.f32 %v1633, %v1655
        %1657 = vmatmul.f32.gmra.mxu0 %v1217
        %v1658 = vpop.f32.mrf.mxu0
        %v1659 = vadd.f32 %v1633, %v1658
        %1660 = vmatmul.f32.gmra.mxu0 %v1226
        %v1661 = vpop.f32.mrf.mxu0
        %v1662 = vadd.f32 %v1633, %v1661
        %1663 = vmatmul.f32.gmra.mxu0 %v1235
        %v1664 = vpop.f32.mrf.mxu0
        %v1665 = vadd.f32 %v1633, %v1664
        %1666 = vmatmul.f32.gmra.mxu0 %v1244
        %v1667 = vpop.f32.mrf.mxu0
        %v1668 = vadd.f32 %v1633, %v1667
        %1669 = vmatmul.f32.gmra.mxu0 %v1253
        %v1670 = vpop.f32.mrf.mxu0
        %v1671 = vadd.f32 %v1633, %v1670
        %1672 = vmatmul.f32.gmra.mxu0 %v1262
        %v1673 = vpop.f32.mrf.mxu0
        %v1674 = vadd.f32 %v1633, %v1673
        %1675 = vmatmul.f32.gmra.mxu0 %v1271
        %v1676 = vpop.f32.mrf.mxu0
        %v1677 = vadd.f32 %v1633, %v1676
        %1678 = vmatmul.f32.gmra.mxu0 %v1280
        %v1679 = vpop.f32.mrf.mxu0
        %v1680 = vadd.f32 %v1633, %v1679
        %1681 = vmatmul.f32.gmra.mxu0 %v1289
        %v1682 = vpop.f32.mrf.mxu0
        %v1683 = vadd.f32 %v1633, %v1682
        %1684 = vmatmul.f32.gmra.mxu0 %v1298
        %v1685 = vpop.f32.mrf.mxu0
        %v1686 = vadd.f32 %v1633, %v1685
        %1687 = vmatmul.f32.gmra.mxu0 %v1307
        %v1688 = vpop.f32.mrf.mxu0
        %v1689 = vadd.f32 %v1633, %v1688
        %1690 = vmatmul.f32.gmra.mxu0 %v1316
        %v1691 = vpop.f32.mrf.mxu0
        %v1692 = vadd.f32 %v1633, %v1691
        %1693 = vmatmul.f32.gmra.mxu0 %v1325
        %v1694 = vpop.f32.mrf.mxu0
        %v1695 = vadd.f32 %v1633, %v1694
        %1696 = vmatmul.f32.gmra.mxu0 %v1334
        %v1697 = vpop.f32.mrf.mxu0
        %v1698 = vadd.f32 %v1633, %v1697
        %1699 = vmatmul.f32.gmra.mxu0 %v1343
        %v1700 = vpop.f32.mrf.mxu0
        %v1701 = vadd.f32 %v1633, %v1700
        %1702 = vmatmul.f32.gmra.mxu0 %v1352
        %v1703 = vpop.f32.mrf.mxu0
        %v1704 = vadd.f32 %v1633, %v1703
        %1705 = vmatmul.f32.gmra.mxu0 %v1361
        %v1706 = vpop.f32.mrf.mxu0
        %v1707 = vadd.f32 %v1633, %v1706
        %1708 = vmatmul.f32.gmra.mxu0 %v1370
        %v1709 = vpop.f32.mrf.mxu0
        %v1710 = vadd.f32 %v1633, %v1709
        %1711 = vmatmul.f32.gmra.mxu0 %v1379
        %v1712 = vpop.f32.mrf.mxu0
        %v1713 = vadd.f32 %v1633, %v1712
        %1714 = vmatmul.f32.gmra.mxu0 %v1388
        %v1715 = vpop.f32.mrf.mxu0
        %v1716 = vadd.f32 %v1633, %v1715
        %1717 = vmatmul.f32.gmra.mxu0 %v1397
        %v1718 = vpop.f32.mrf.mxu0
        %v1719 = vadd.f32 %v1633, %v1718
        %1720 = vmatmul.f32.gmra.mxu0 %v1406
        %v1721 = vpop.f32.mrf.mxu0
        %v1722 = vadd.f32 %v1633, %v1721
        %1723 = vmatmul.f32.gmra.mxu0 %v1415
        %v1724 = vpop.f32.mrf.mxu0
        %v1725 = vadd.f32 %v1633, %v1724
        %1726 = vmatmul.f32.gmra.mxu0 %v1424
        %v1727 = vpop.f32.mrf.mxu0
        %v1728 = vadd.f32 %v1633, %v1727
        %1729 = vmatmul.f32.gmra.mxu0 %v1433
        %v1730 = vpop.f32.mrf.mxu0
        %v1731 = vadd.f32 %v1633, %v1730
        %1732 = vmatmul.f32.gmra.mxu0 %v1442
        %v1733 = vpop.f32.mrf.mxu0
        %v1734 = vadd.f32 %v1633, %v1733
        %1735 = vmatmul.f32.gmra.mxu0 %v1451
        %v1736 = vpop.f32.mrf.mxu0
        %v1737 = vadd.f32 %v1633, %v1736
        %1738 = vmatmul.f32.gmra.mxu0 %v1460
        %v1739 = vpop.f32.mrf.mxu0
        %v1740 = vadd.f32 %v1633, %v1739
        %1741 = vmatmul.f32.gmra.mxu0 %v1469
        %v1742 = vpop.f32.mrf.mxu0
        %v1743 = vadd.f32 %v1633, %v1742
        %1744 = vmatmul.f32.gmra.mxu0 %v1478
        %v1745 = vpop.f32.mrf.mxu0
        %v1746 = vadd.f32 %v1633, %v1745
        %1747 = vdwg.mxu0
        %1748 = vmatpush.msra.mxu0 %v1518
        %1749 = vmatpush.msra.mxu0 %v1517
        %1750 = vmatpush.msra.mxu0 %v1516
        %1751 = vmatpush.msra.mxu0 %v1515
        %1752 = vmatpush.msra.mxu0 %v1514
        %1753 = vmatpush.msra.mxu0 %v1513
        %1754 = vmatpush.msra.mxu0 %v1512
        %1755 = vmatpush.msra.mxu0 %v1511
        %1756 = vmatpush.msra.mxu0 %v1510
        %1757 = vmatpush.msra.mxu0 %v1509
        %1758 = vmatpush.msra.mxu0 %v1508
        %1759 = vmatpush.msra.mxu0 %v1507
        %1760 = vmatpush.msra.mxu0 %v1506
        %1761 = vmatpush.msra.mxu0 %v1505
        %1762 = vmatpush.msra.mxu0 %v1504
        %1763 = vmatpush.msra.mxu0 %v1503
        %1764 = vmatmul.f32.gmra.mxu0 %v1200
        %v1765 = vpop.f32.mrf.mxu0
        %v1766 = vadd.f32 %v1653, %v1765
        %1767 = vmatmul.f32.gmra.mxu0 %v1209
        %v1768 = vpop.f32.mrf.mxu0
        %v1769 = vadd.f32 %v1656, %v1768
        %1770 = vmatmul.f32.gmra.mxu0 %v1218
        %v1771 = vpop.f32.mrf.mxu0
        %v1772 = vadd.f32 %v1659, %v1771
        %1773 = vmatmul.f32.gmra.mxu0 %v1227
        %v1774 = vpop.f32.mrf.mxu0
        %v1775 = vadd.f32 %v1662, %v1774
        %1776 = vmatmul.f32.gmra.mxu0 %v1236
        %v1777 = vpop.f32.mrf.mxu0
        %v1778 = vadd.f32 %v1665, %v1777
        %1779 = vmatmul.f32.gmra.mxu0 %v1245
        %v1780 = vpop.f32.mrf.mxu0
        %v1781 = vadd.f32 %v1668, %v1780
        %1782 = vmatmul.f32.gmra.mxu0 %v1254
        %v1783 = vpop.f32.mrf.mxu0
        %v1784 = vadd.f32 %v1671, %v1783
        %1785 = vmatmul.f32.gmra.mxu0 %v1263
        %v1786 = vpop.f32.mrf.mxu0
        %v1787 = vadd.f32 %v1674, %v1786
        %1788 = vmatmul.f32.gmra.mxu0 %v1272
        %v1789 = vpop.f32.mrf.mxu0
        %v1790 = vadd.f32 %v1677, %v1789
        %1791 = vmatmul.f32.gmra.mxu0 %v1281
        %v1792 = vpop.f32.mrf.mxu0
        %v1793 = vadd.f32 %v1680, %v1792
        %1794 = vmatmul.f32.gmra.mxu0 %v1290
        %v1795 = vpop.f32.mrf.mxu0
        %v1796 = vadd.f32 %v1683, %v1795
        %1797 = vmatmul.f32.gmra.mxu0 %v1299
        %v1798 = vpop.f32.mrf.mxu0
        %v1799 = vadd.f32 %v1686, %v1798
        %1800 = vmatmul.f32.gmra.mxu0 %v1308
        %v1801 = vpop.f32.mrf.mxu0
        %v1802 = vadd.f32 %v1689, %v1801
        %1803 = vmatmul.f32.gmra.mxu0 %v1317
        %v1804 = vpop.f32.mrf.mxu0
        %v1805 = vadd.f32 %v1692, %v1804
        %1806 = vmatmul.f32.gmra.mxu0 %v1326
        %v1807 = vpop.f32.mrf.mxu0
        %v1808 = vadd.f32 %v1695, %v1807
        %1809 = vmatmul.f32.gmra.mxu0 %v1335
        %v1810 = vpop.f32.mrf.mxu0
        %v1811 = vadd.f32 %v1698, %v1810
        %1812 = vmatmul.f32.gmra.mxu0 %v1344
        %v1813 = vpop.f32.mrf.mxu0
        %v1814 = vadd.f32 %v1701, %v1813
        %1815 = vmatmul.f32.gmra.mxu0 %v1353
        %v1816 = vpop.f32.mrf.mxu0
        %v1817 = vadd.f32 %v1704, %v1816
        %1818 = vmatmul.f32.gmra.mxu0 %v1362
        %v1819 = vpop.f32.mrf.mxu0
        %v1820 = vadd.f32 %v1707, %v1819
        %1821 = vmatmul.f32.gmra.mxu0 %v1371
        %v1822 = vpop.f32.mrf.mxu0
        %v1823 = vadd.f32 %v1710, %v1822
        %1824 = vmatmul.f32.gmra.mxu0 %v1380
        %v1825 = vpop.f32.mrf.mxu0
        %v1826 = vadd.f32 %v1713, %v1825
        %1827 = vmatmul.f32.gmra.mxu0 %v1389
        %v1828 = vpop.f32.mrf.mxu0
        %v1829 = vadd.f32 %v1716, %v1828
        %1830 = vmatmul.f32.gmra.mxu0 %v1398
        %v1831 = vpop.f32.mrf.mxu0
        %v1832 = vadd.f32 %v1719, %v1831
        %1833 = vmatmul.f32.gmra.mxu0 %v1407
        %v1834 = vpop.f32.mrf.mxu0
        %v1835 = vadd.f32 %v1722, %v1834
        %1836 = vmatmul.f32.gmra.mxu0 %v1416
        %v1837 = vpop.f32.mrf.mxu0
        %v1838 = vadd.f32 %v1725, %v1837
        %1839 = vmatmul.f32.gmra.mxu0 %v1425
        %v1840 = vpop.f32.mrf.mxu0
        %v1841 = vadd.f32 %v1728, %v1840
        %1842 = vmatmul.f32.gmra.mxu0 %v1434
        %v1843 = vpop.f32.mrf.mxu0
        %v1844 = vadd.f32 %v1731, %v1843
        %1845 = vmatmul.f32.gmra.mxu0 %v1443
        %v1846 = vpop.f32.mrf.mxu0
        %v1847 = vadd.f32 %v1734, %v1846
        %1848 = vmatmul.f32.gmra.mxu0 %v1452
        %v1849 = vpop.f32.mrf.mxu0
        %v1850 = vadd.f32 %v1737, %v1849
        %1851 = vmatmul.f32.gmra.mxu0 %v1461
        %v1852 = vpop.f32.mrf.mxu0
        %v1853 = vadd.f32 %v1740, %v1852
        %1854 = vmatmul.f32.gmra.mxu0 %v1470
        %v1855 = vpop.f32.mrf.mxu0
        %v1856 = vadd.f32 %v1743, %v1855
        %1857 = vmatmul.f32.gmra.mxu0 %v1479
        %v1858 = vpop.f32.mrf.mxu0
        %v1859 = vadd.f32 %v1746, %v1858
        %1860 = vdwg.mxu0
        %1861 = vmatpush.msra.mxu0 %v1534
        %1862 = vmatpush.msra.mxu0 %v1533
        %1863 = vmatpush.msra.mxu0 %v1532
        %1864 = vmatpush.msra.mxu0 %v1531
        %1865 = vmatpush.msra.mxu0 %v1530
        %1866 = vmatpush.msra.mxu0 %v1529
        %1867 = vmatpush.msra.mxu0 %v1528
        %1868 = vmatpush.msra.mxu0 %v1527
        %1869 = vmatpush.msra.mxu0 %v1526
        %1870 = vmatpush.msra.mxu0 %v1525
        %1871 = vmatpush.msra.mxu0 %v1524
        %1872 = vmatpush.msra.mxu0 %v1523
        %1873 = vmatpush.msra.mxu0 %v1522
        %1874 = vmatpush.msra.mxu0 %v1521
        %1875 = vmatpush.msra.mxu0 %v1520
        %1876 = vmatpush.msra.mxu0 %v1519
        %1877 = vmatmul.f32.gmra.mxu0 %v1201
        %v1878 = vpop.f32.mrf.mxu0
        %v1879 = vadd.f32 %v1766, %v1878
        %1880 = vmatmul.f32.gmra.mxu0 %v1210
        %v1881 = vpop.f32.mrf.mxu0
        %v1882 = vadd.f32 %v1769, %v1881
        %1883 = vmatmul.f32.gmra.mxu0 %v1219
        %v1884 = vpop.f32.mrf.mxu0
        %v1885 = vadd.f32 %v1772, %v1884
        %1886 = vmatmul.f32.gmra.mxu0 %v1228
        %v1887 = vpop.f32.mrf.mxu0
        %v1888 = vadd.f32 %v1775, %v1887
        %1889 = vmatmul.f32.gmra.mxu0 %v1237
        %v1890 = vpop.f32.mrf.mxu0
        %v1891 = vadd.f32 %v1778, %v1890
        %1892 = vmatmul.f32.gmra.mxu0 %v1246
        %v1893 = vpop.f32.mrf.mxu0
        %v1894 = vadd.f32 %v1781, %v1893
        %1895 = vmatmul.f32.gmra.mxu0 %v1255
        %v1896 = vpop.f32.mrf.mxu0
        %v1897 = vadd.f32 %v1784, %v1896
        %1898 = vmatmul.f32.gmra.mxu0 %v1264
        %v1899 = vpop.f32.mrf.mxu0
        %v1900 = vadd.f32 %v1787, %v1899
        %1901 = vmatmul.f32.gmra.mxu0 %v1273
        %v1902 = vpop.f32.mrf.mxu0
        %v1903 = vadd.f32 %v1790, %v1902
        %1904 = vmatmul.f32.gmra.mxu0 %v1282
        %v1905 = vpop.f32.mrf.mxu0
        %v1906 = vadd.f32 %v1793, %v1905
        %1907 = vmatmul.f32.gmra.mxu0 %v1291
        %v1908 = vpop.f32.mrf.mxu0
        %v1909 = vadd.f32 %v1796, %v1908
        %1910 = vmatmul.f32.gmra.mxu0 %v1300
        %v1911 = vpop.f32.mrf.mxu0
        %v1912 = vadd.f32 %v1799, %v1911
        %1913 = vmatmul.f32.gmra.mxu0 %v1309
        %v1914 = vpop.f32.mrf.mxu0
        %v1915 = vadd.f32 %v1802, %v1914
        %1916 = vmatmul.f32.gmra.mxu0 %v1318
        %v1917 = vpop.f32.mrf.mxu0
        %v1918 = vadd.f32 %v1805, %v1917
        %1919 = vmatmul.f32.gmra.mxu0 %v1327
        %v1920 = vpop.f32.mrf.mxu0
        %v1921 = vadd.f32 %v1808, %v1920
        %1922 = vmatmul.f32.gmra.mxu0 %v1336
        %v1923 = vpop.f32.mrf.mxu0
        %v1924 = vadd.f32 %v1811, %v1923
        %1925 = vmatmul.f32.gmra.mxu0 %v1345
        %v1926 = vpop.f32.mrf.mxu0
        %v1927 = vadd.f32 %v1814, %v1926
        %1928 = vmatmul.f32.gmra.mxu0 %v1354
        %v1929 = vpop.f32.mrf.mxu0
        %v1930 = vadd.f32 %v1817, %v1929
        %1931 = vmatmul.f32.gmra.mxu0 %v1363
        %v1932 = vpop.f32.mrf.mxu0
        %v1933 = vadd.f32 %v1820, %v1932
        %1934 = vmatmul.f32.gmra.mxu0 %v1372
        %v1935 = vpop.f32.mrf.mxu0
        %v1936 = vadd.f32 %v1823, %v1935
        %1937 = vmatmul.f32.gmra.mxu0 %v1381
        %v1938 = vpop.f32.mrf.mxu0
        %v1939 = vadd.f32 %v1826, %v1938
        %1940 = vmatmul.f32.gmra.mxu0 %v1390
        %v1941 = vpop.f32.mrf.mxu0
        %v1942 = vadd.f32 %v1829, %v1941
        %1943 = vmatmul.f32.gmra.mxu0 %v1399
        %v1944 = vpop.f32.mrf.mxu0
        %v1945 = vadd.f32 %v1832, %v1944
        %1946 = vmatmul.f32.gmra.mxu0 %v1408
        %v1947 = vpop.f32.mrf.mxu0
        %v1948 = vadd.f32 %v1835, %v1947
        %1949 = vmatmul.f32.gmra.mxu0 %v1417
        %v1950 = vpop.f32.mrf.mxu0
        %v1951 = vadd.f32 %v1838, %v1950
        %1952 = vmatmul.f32.gmra.mxu0 %v1426
        %v1953 = vpop.f32.mrf.mxu0
        %v1954 = vadd.f32 %v1841, %v1953
        %1955 = vmatmul.f32.gmra.mxu0 %v1435
        %v1956 = vpop.f32.mrf.mxu0
        %v1957 = vadd.f32 %v1844, %v1956
        %1958 = vmatmul.f32.gmra.mxu0 %v1444
        %v1959 = vpop.f32.mrf.mxu0
        %v1960 = vadd.f32 %v1847, %v1959
        %1961 = vmatmul.f32.gmra.mxu0 %v1453
        %v1962 = vpop.f32.mrf.mxu0
        %v1963 = vadd.f32 %v1850, %v1962
        %1964 = vmatmul.f32.gmra.mxu0 %v1462
        %v1965 = vpop.f32.mrf.mxu0
        %v1966 = vadd.f32 %v1853, %v1965
        %1967 = vmatmul.f32.gmra.mxu0 %v1471
        %v1968 = vpop.f32.mrf.mxu0
        %v1969 = vadd.f32 %v1856, %v1968
        %1970 = vmatmul.f32.gmra.mxu0 %v1480
        %v1971 = vpop.f32.mrf.mxu0
        %v1972 = vadd.f32 %v1859, %v1971
        %1973 = vdwg.mxu0
        %1974 = vmatpush.msra.mxu0 %v1550
        %1975 = vmatpush.msra.mxu0 %v1549
        %1976 = vmatpush.msra.mxu0 %v1548
        %1977 = vmatpush.msra.mxu0 %v1547
        %1978 = vmatpush.msra.mxu0 %v1546
        %1979 = vmatpush.msra.mxu0 %v1545
        %1980 = vmatpush.msra.mxu0 %v1544
        %1981 = vmatpush.msra.mxu0 %v1543
        %1982 = vmatpush.msra.mxu0 %v1542
        %1983 = vmatpush.msra.mxu0 %v1541
        %1984 = vmatpush.msra.mxu0 %v1540
        %1985 = vmatpush.msra.mxu0 %v1539
        %1986 = vmatpush.msra.mxu0 %v1538
        %1987 = vmatpush.msra.mxu0 %v1537
        %1988 = vmatpush.msra.mxu0 %v1536
        %1989 = vmatpush.msra.mxu0 %v1535
        %1990 = vmatmul.f32.gmra.mxu0 %v1202
        %v1991 = vpop.f32.mrf.mxu0
        %v1992 = vadd.f32 %v1879, %v1991
        %1993 = vmatmul.f32.gmra.mxu0 %v1211
        %v1994 = vpop.f32.mrf.mxu0
        %v1995 = vadd.f32 %v1882, %v1994
        %1996 = vmatmul.f32.gmra.mxu0 %v1220
        %v1997 = vpop.f32.mrf.mxu0
        %v1998 = vadd.f32 %v1885, %v1997
        %1999 = vmatmul.f32.gmra.mxu0 %v1229
        %v2000 = vpop.f32.mrf.mxu0
        %v2001 = vadd.f32 %v1888, %v2000
        %2002 = vmatmul.f32.gmra.mxu0 %v1238
        %v2003 = vpop.f32.mrf.mxu0
        %v2004 = vadd.f32 %v1891, %v2003
        %2005 = vmatmul.f32.gmra.mxu0 %v1247
        %v2006 = vpop.f32.mrf.mxu0
        %v2007 = vadd.f32 %v1894, %v2006
        %2008 = vmatmul.f32.gmra.mxu0 %v1256
        %v2009 = vpop.f32.mrf.mxu0
        %v2010 = vadd.f32 %v1897, %v2009
        %2011 = vmatmul.f32.gmra.mxu0 %v1265
        %v2012 = vpop.f32.mrf.mxu0
        %v2013 = vadd.f32 %v1900, %v2012
        %2014 = vmatmul.f32.gmra.mxu0 %v1274
        %v2015 = vpop.f32.mrf.mxu0
        %v2016 = vadd.f32 %v1903, %v2015
        %2017 = vmatmul.f32.gmra.mxu0 %v1283
        %v2018 = vpop.f32.mrf.mxu0
        %v2019 = vadd.f32 %v1906, %v2018
        %2020 = vmatmul.f32.gmra.mxu0 %v1292
        %v2021 = vpop.f32.mrf.mxu0
        %v2022 = vadd.f32 %v1909, %v2021
        %2023 = vmatmul.f32.gmra.mxu0 %v1301
        %v2024 = vpop.f32.mrf.mxu0
        %v2025 = vadd.f32 %v1912, %v2024
        %2026 = vmatmul.f32.gmra.mxu0 %v1310
        %v2027 = vpop.f32.mrf.mxu0
        %v2028 = vadd.f32 %v1915, %v2027
        %2029 = vmatmul.f32.gmra.mxu0 %v1319
        %v2030 = vpop.f32.mrf.mxu0
        %v2031 = vadd.f32 %v1918, %v2030
        %2032 = vmatmul.f32.gmra.mxu0 %v1328
        %v2033 = vpop.f32.mrf.mxu0
        %v2034 = vadd.f32 %v1921, %v2033
        %2035 = vmatmul.f32.gmra.mxu0 %v1337
        %v2036 = vpop.f32.mrf.mxu0
        %v2037 = vadd.f32 %v1924, %v2036
        %2038 = vmatmul.f32.gmra.mxu0 %v1346
        %v2039 = vpop.f32.mrf.mxu0
        %v2040 = vadd.f32 %v1927, %v2039
        %2041 = vmatmul.f32.gmra.mxu0 %v1355
        %v2042 = vpop.f32.mrf.mxu0
        %v2043 = vadd.f32 %v1930, %v2042
        %2044 = vmatmul.f32.gmra.mxu0 %v1364
        %v2045 = vpop.f32.mrf.mxu0
        %v2046 = vadd.f32 %v1933, %v2045
        %2047 = vmatmul.f32.gmra.mxu0 %v1373
        %v2048 = vpop.f32.mrf.mxu0
        %v2049 = vadd.f32 %v1936, %v2048
        %2050 = vmatmul.f32.gmra.mxu0 %v1382
        %v2051 = vpop.f32.mrf.mxu0
        %v2052 = vadd.f32 %v1939, %v2051
        %2053 = vmatmul.f32.gmra.mxu0 %v1391
        %v2054 = vpop.f32.mrf.mxu0
        %v2055 = vadd.f32 %v1942, %v2054
        %2056 = vmatmul.f32.gmra.mxu0 %v1400
        %v2057 = vpop.f32.mrf.mxu0
        %v2058 = vadd.f32 %v1945, %v2057
        %2059 = vmatmul.f32.gmra.mxu0 %v1409
        %v2060 = vpop.f32.mrf.mxu0
        %v2061 = vadd.f32 %v1948, %v2060
        %2062 = vmatmul.f32.gmra.mxu0 %v1418
        %v2063 = vpop.f32.mrf.mxu0
        %v2064 = vadd.f32 %v1951, %v2063
        %2065 = vmatmul.f32.gmra.mxu0 %v1427
        %v2066 = vpop.f32.mrf.mxu0
        %v2067 = vadd.f32 %v1954, %v2066
        %2068 = vmatmul.f32.gmra.mxu0 %v1436
        %v2069 = vpop.f32.mrf.mxu0
        %v2070 = vadd.f32 %v1957, %v2069
        %2071 = vmatmul.f32.gmra.mxu0 %v1445
        %v2072 = vpop.f32.mrf.mxu0
        %v2073 = vadd.f32 %v1960, %v2072
        %2074 = vmatmul.f32.gmra.mxu0 %v1454
        %v2075 = vpop.f32.mrf.mxu0
        %v2076 = vadd.f32 %v1963, %v2075
        %2077 = vmatmul.f32.gmra.mxu0 %v1463
        %v2078 = vpop.f32.mrf.mxu0
        %v2079 = vadd.f32 %v1966, %v2078
        %2080 = vmatmul.f32.gmra.mxu0 %v1472
        %v2081 = vpop.f32.mrf.mxu0
        %v2082 = vadd.f32 %v1969, %v2081
        %2083 = vmatmul.f32.gmra.mxu0 %v1481
        %v2084 = vpop.f32.mrf.mxu0
        %v2085 = vadd.f32 %v1972, %v2084
        %2086 = vdwg.mxu0
        %2087 = vmatpush.msra.mxu0 %v1566
        %2088 = vmatpush.msra.mxu0 %v1565
        %2089 = vmatpush.msra.mxu0 %v1564
        %2090 = vmatpush.msra.mxu0 %v1563
        %2091 = vmatpush.msra.mxu0 %v1562
        %2092 = vmatpush.msra.mxu0 %v1561
        %2093 = vmatpush.msra.mxu0 %v1560
        %2094 = vmatpush.msra.mxu0 %v1559
        %2095 = vmatpush.msra.mxu0 %v1558
        %2096 = vmatpush.msra.mxu0 %v1557
        %2097 = vmatpush.msra.mxu0 %v1556
        %2098 = vmatpush.msra.mxu0 %v1555
        %2099 = vmatpush.msra.mxu0 %v1554
        %2100 = vmatpush.msra.mxu0 %v1553
        %2101 = vmatpush.msra.mxu0 %v1552
        %2102 = vmatpush.msra.mxu0 %v1551
        %2103 = vmatmul.f32.gmra.mxu0 %v1203
        %v2104 = vpop.f32.mrf.mxu0
        %v2105 = vadd.f32 %v1992, %v2104
        %2106 = vmatmul.f32.gmra.mxu0 %v1212
        %v2107 = vpop.f32.mrf.mxu0
        %v2108 = vadd.f32 %v1995, %v2107
        %2109 = vmatmul.f32.gmra.mxu0 %v1221
        %v2110 = vpop.f32.mrf.mxu0
        %v2111 = vadd.f32 %v1998, %v2110
        %2112 = vmatmul.f32.gmra.mxu0 %v1230
        %v2113 = vpop.f32.mrf.mxu0
        %v2114 = vadd.f32 %v2001, %v2113
        %2115 = vmatmul.f32.gmra.mxu0 %v1239
        %v2116 = vpop.f32.mrf.mxu0
        %v2117 = vadd.f32 %v2004, %v2116
        %2118 = vmatmul.f32.gmra.mxu0 %v1248
        %v2119 = vpop.f32.mrf.mxu0
        %v2120 = vadd.f32 %v2007, %v2119
        %2121 = vmatmul.f32.gmra.mxu0 %v1257
        %v2122 = vpop.f32.mrf.mxu0
        %v2123 = vadd.f32 %v2010, %v2122
        %2124 = vmatmul.f32.gmra.mxu0 %v1266
        %v2125 = vpop.f32.mrf.mxu0
        %v2126 = vadd.f32 %v2013, %v2125
        %2127 = vmatmul.f32.gmra.mxu0 %v1275
        %v2128 = vpop.f32.mrf.mxu0
        %v2129 = vadd.f32 %v2016, %v2128
        %2130 = vmatmul.f32.gmra.mxu0 %v1284
        %v2131 = vpop.f32.mrf.mxu0
        %v2132 = vadd.f32 %v2019, %v2131
        %2133 = vmatmul.f32.gmra.mxu0 %v1293
        %v2134 = vpop.f32.mrf.mxu0
        %v2135 = vadd.f32 %v2022, %v2134
        %2136 = vmatmul.f32.gmra.mxu0 %v1302
        %v2137 = vpop.f32.mrf.mxu0
        %v2138 = vadd.f32 %v2025, %v2137
        %2139 = vmatmul.f32.gmra.mxu0 %v1311
        %v2140 = vpop.f32.mrf.mxu0
        %v2141 = vadd.f32 %v2028, %v2140
        %2142 = vmatmul.f32.gmra.mxu0 %v1320
        %v2143 = vpop.f32.mrf.mxu0
        %v2144 = vadd.f32 %v2031, %v2143
        %2145 = vmatmul.f32.gmra.mxu0 %v1329
        %v2146 = vpop.f32.mrf.mxu0
        %v2147 = vadd.f32 %v2034, %v2146
        %2148 = vmatmul.f32.gmra.mxu0 %v1338
        %v2149 = vpop.f32.mrf.mxu0
        %v2150 = vadd.f32 %v2037, %v2149
        %2151 = vmatmul.f32.gmra.mxu0 %v1347
        %v2152 = vpop.f32.mrf.mxu0
        %v2153 = vadd.f32 %v2040, %v2152
        %2154 = vmatmul.f32.gmra.mxu0 %v1356
        %v2155 = vpop.f32.mrf.mxu0
        %v2156 = vadd.f32 %v2043, %v2155
        %2157 = vmatmul.f32.gmra.mxu0 %v1365
        %v2158 = vpop.f32.mrf.mxu0
        %v2159 = vadd.f32 %v2046, %v2158
        %2160 = vmatmul.f32.gmra.mxu0 %v1374
        %v2161 = vpop.f32.mrf.mxu0
        %v2162 = vadd.f32 %v2049, %v2161
        %2163 = vmatmul.f32.gmra.mxu0 %v1383
        %v2164 = vpop.f32.mrf.mxu0
        %v2165 = vadd.f32 %v2052, %v2164
        %2166 = vmatmul.f32.gmra.mxu0 %v1392
        %v2167 = vpop.f32.mrf.mxu0
        %v2168 = vadd.f32 %v2055, %v2167
        %2169 = vmatmul.f32.gmra.mxu0 %v1401
        %v2170 = vpop.f32.mrf.mxu0
        %v2171 = vadd.f32 %v2058, %v2170
        %2172 = vmatmul.f32.gmra.mxu0 %v1410
        %v2173 = vpop.f32.mrf.mxu0
        %v2174 = vadd.f32 %v2061, %v2173
        %2175 = vmatmul.f32.gmra.mxu0 %v1419
        %v2176 = vpop.f32.mrf.mxu0
        %v2177 = vadd.f32 %v2064, %v2176
        %2178 = vmatmul.f32.gmra.mxu0 %v1428
        %v2179 = vpop.f32.mrf.mxu0
        %v2180 = vadd.f32 %v2067, %v2179
        %2181 = vmatmul.f32.gmra.mxu0 %v1437
        %v2182 = vpop.f32.mrf.mxu0
        %v2183 = vadd.f32 %v2070, %v2182
        %2184 = vmatmul.f32.gmra.mxu0 %v1446
        %v2185 = vpop.f32.mrf.mxu0
        %v2186 = vadd.f32 %v2073, %v2185
        %2187 = vmatmul.f32.gmra.mxu0 %v1455
        %v2188 = vpop.f32.mrf.mxu0
        %v2189 = vadd.f32 %v2076, %v2188
        %2190 = vmatmul.f32.gmra.mxu0 %v1464
        %v2191 = vpop.f32.mrf.mxu0
        %v2192 = vadd.f32 %v2079, %v2191
        %2193 = vmatmul.f32.gmra.mxu0 %v1473
        %v2194 = vpop.f32.mrf.mxu0
        %v2195 = vadd.f32 %v2082, %v2194
        %2196 = vmatmul.f32.gmra.mxu0 %v1482
        %v2197 = vpop.f32.mrf.mxu0
        %v2198 = vadd.f32 %v2085, %v2197
        %2199 = vdwg.mxu0
        %2200 = vmatpush.msra.mxu0 %v1582
        %2201 = vmatpush.msra.mxu0 %v1581
        %2202 = vmatpush.msra.mxu0 %v1580
        %2203 = vmatpush.msra.mxu0 %v1579
        %2204 = vmatpush.msra.mxu0 %v1578
        %2205 = vmatpush.msra.mxu0 %v1577
        %2206 = vmatpush.msra.mxu0 %v1576
        %2207 = vmatpush.msra.mxu0 %v1575
        %2208 = vmatpush.msra.mxu0 %v1574
        %2209 = vmatpush.msra.mxu0 %v1573
        %2210 = vmatpush.msra.mxu0 %v1572
        %2211 = vmatpush.msra.mxu0 %v1571
        %2212 = vmatpush.msra.mxu0 %v1570
        %2213 = vmatpush.msra.mxu0 %v1569
        %2214 = vmatpush.msra.mxu0 %v1568
        %2215 = vmatpush.msra.mxu0 %v1567
        %2216 = vmatmul.f32.gmra.mxu0 %v1204
        %v2217 = vpop.f32.mrf.mxu0
        %v2218 = vadd.f32 %v2105, %v2217
        %2219 = vmatmul.f32.gmra.mxu0 %v1213
        %v2220 = vpop.f32.mrf.mxu0
        %v2221 = vadd.f32 %v2108, %v2220
        %2222 = vmatmul.f32.gmra.mxu0 %v1222
        %v2223 = vpop.f32.mrf.mxu0
        %v2224 = vadd.f32 %v2111, %v2223
        %2225 = vmatmul.f32.gmra.mxu0 %v1231
        %v2226 = vpop.f32.mrf.mxu0
        %v2227 = vadd.f32 %v2114, %v2226
        %2228 = vmatmul.f32.gmra.mxu0 %v1240
        %v2229 = vpop.f32.mrf.mxu0
        %v2230 = vadd.f32 %v2117, %v2229
        %2231 = vmatmul.f32.gmra.mxu0 %v1249
        %v2232 = vpop.f32.mrf.mxu0
        %v2233 = vadd.f32 %v2120, %v2232
        %2234 = vmatmul.f32.gmra.mxu0 %v1258
        %v2235 = vpop.f32.mrf.mxu0
        %v2236 = vadd.f32 %v2123, %v2235
        %2237 = vmatmul.f32.gmra.mxu0 %v1267
        %v2238 = vpop.f32.mrf.mxu0
        %v2239 = vadd.f32 %v2126, %v2238
        %2240 = vmatmul.f32.gmra.mxu0 %v1276
        %v2241 = vpop.f32.mrf.mxu0
        %v2242 = vadd.f32 %v2129, %v2241
        %2243 = vmatmul.f32.gmra.mxu0 %v1285
        %v2244 = vpop.f32.mrf.mxu0
        %v2245 = vadd.f32 %v2132, %v2244
        %2246 = vmatmul.f32.gmra.mxu0 %v1294
        %v2247 = vpop.f32.mrf.mxu0
        %v2248 = vadd.f32 %v2135, %v2247
        %2249 = vmatmul.f32.gmra.mxu0 %v1303
        %v2250 = vpop.f32.mrf.mxu0
        %v2251 = vadd.f32 %v2138, %v2250
        %2252 = vmatmul.f32.gmra.mxu0 %v1312
        %v2253 = vpop.f32.mrf.mxu0
        %v2254 = vadd.f32 %v2141, %v2253
        %2255 = vmatmul.f32.gmra.mxu0 %v1321
        %v2256 = vpop.f32.mrf.mxu0
        %v2257 = vadd.f32 %v2144, %v2256
        %2258 = vmatmul.f32.gmra.mxu0 %v1330
        %v2259 = vpop.f32.mrf.mxu0
        %v2260 = vadd.f32 %v2147, %v2259
        %2261 = vmatmul.f32.gmra.mxu0 %v1339
        %v2262 = vpop.f32.mrf.mxu0
        %v2263 = vadd.f32 %v2150, %v2262
        %2264 = vmatmul.f32.gmra.mxu0 %v1348
        %v2265 = vpop.f32.mrf.mxu0
        %v2266 = vadd.f32 %v2153, %v2265
        %2267 = vmatmul.f32.gmra.mxu0 %v1357
        %v2268 = vpop.f32.mrf.mxu0
        %v2269 = vadd.f32 %v2156, %v2268
        %2270 = vmatmul.f32.gmra.mxu0 %v1366
        %v2271 = vpop.f32.mrf.mxu0
        %v2272 = vadd.f32 %v2159, %v2271
        %2273 = vmatmul.f32.gmra.mxu0 %v1375
        %v2274 = vpop.f32.mrf.mxu0
        %v2275 = vadd.f32 %v2162, %v2274
        %2276 = vmatmul.f32.gmra.mxu0 %v1384
        %v2277 = vpop.f32.mrf.mxu0
        %v2278 = vadd.f32 %v2165, %v2277
        %2279 = vmatmul.f32.gmra.mxu0 %v1393
        %v2280 = vpop.f32.mrf.mxu0
        %v2281 = vadd.f32 %v2168, %v2280
        %2282 = vmatmul.f32.gmra.mxu0 %v1402
        %v2283 = vpop.f32.mrf.mxu0
        %v2284 = vadd.f32 %v2171, %v2283
        %2285 = vmatmul.f32.gmra.mxu0 %v1411
        %v2286 = vpop.f32.mrf.mxu0
        %v2287 = vadd.f32 %v2174, %v2286
        %2288 = vmatmul.f32.gmra.mxu0 %v1420
        %v2289 = vpop.f32.mrf.mxu0
        %v2290 = vadd.f32 %v2177, %v2289
        %2291 = vmatmul.f32.gmra.mxu0 %v1429
        %v2292 = vpop.f32.mrf.mxu0
        %v2293 = vadd.f32 %v2180, %v2292
        %2294 = vmatmul.f32.gmra.mxu0 %v1438
        %v2295 = vpop.f32.mrf.mxu0
        %v2296 = vadd.f32 %v2183, %v2295
        %2297 = vmatmul.f32.gmra.mxu0 %v1447
        %v2298 = vpop.f32.mrf.mxu0
        %v2299 = vadd.f32 %v2186, %v2298
        %2300 = vmatmul.f32.gmra.mxu0 %v1456
        %v2301 = vpop.f32.mrf.mxu0
        %v2302 = vadd.f32 %v2189, %v2301
        %2303 = vmatmul.f32.gmra.mxu0 %v1465
        %v2304 = vpop.f32.mrf.mxu0
        %v2305 = vadd.f32 %v2192, %v2304
        %2306 = vmatmul.f32.gmra.mxu0 %v1474
        %v2307 = vpop.f32.mrf.mxu0
        %v2308 = vadd.f32 %v2195, %v2307
        %2309 = vmatmul.f32.gmra.mxu0 %v1483
        %v2310 = vpop.f32.mrf.mxu0
        %v2311 = vadd.f32 %v2198, %v2310
        %2312 = vdwg.mxu0
        %2313 = vmatpush.msra.mxu0 %v1598
        %2314 = vmatpush.msra.mxu0 %v1597
        %2315 = vmatpush.msra.mxu0 %v1596
        %2316 = vmatpush.msra.mxu0 %v1595
        %2317 = vmatpush.msra.mxu0 %v1594
        %2318 = vmatpush.msra.mxu0 %v1593
        %2319 = vmatpush.msra.mxu0 %v1592
        %2320 = vmatpush.msra.mxu0 %v1591
        %2321 = vmatpush.msra.mxu0 %v1590
        %2322 = vmatpush.msra.mxu0 %v1589
        %2323 = vmatpush.msra.mxu0 %v1588
        %2324 = vmatpush.msra.mxu0 %v1587
        %2325 = vmatpush.msra.mxu0 %v1586
        %2326 = vmatpush.msra.mxu0 %v1585
        %2327 = vmatpush.msra.mxu0 %v1584
        %2328 = vmatpush.msra.mxu0 %v1583
        %2329 = vmatmul.f32.gmra.mxu0 %v1205
        %v2330 = vpop.f32.mrf.mxu0
        %v2331 = vadd.f32 %v2218, %v2330
        %2332 = vmatmul.f32.gmra.mxu0 %v1214
        %v2333 = vpop.f32.mrf.mxu0
        %v2334 = vadd.f32 %v2221, %v2333
        %2335 = vmatmul.f32.gmra.mxu0 %v1223
        %v2336 = vpop.f32.mrf.mxu0
        %v2337 = vadd.f32 %v2224, %v2336
        %2338 = vmatmul.f32.gmra.mxu0 %v1232
        %v2339 = vpop.f32.mrf.mxu0
        %v2340 = vadd.f32 %v2227, %v2339
        %2341 = vmatmul.f32.gmra.mxu0 %v1241
        %v2342 = vpop.f32.mrf.mxu0
        %v2343 = vadd.f32 %v2230, %v2342
        %2344 = vmatmul.f32.gmra.mxu0 %v1250
        %v2345 = vpop.f32.mrf.mxu0
        %v2346 = vadd.f32 %v2233, %v2345
        %2347 = vmatmul.f32.gmra.mxu0 %v1259
        %v2348 = vpop.f32.mrf.mxu0
        %v2349 = vadd.f32 %v2236, %v2348
        %2350 = vmatmul.f32.gmra.mxu0 %v1268
        %v2351 = vpop.f32.mrf.mxu0
        %v2352 = vadd.f32 %v2239, %v2351
        %2353 = vmatmul.f32.gmra.mxu0 %v1277
        %v2354 = vpop.f32.mrf.mxu0
        %v2355 = vadd.f32 %v2242, %v2354
        %2356 = vmatmul.f32.gmra.mxu0 %v1286
        %v2357 = vpop.f32.mrf.mxu0
        %v2358 = vadd.f32 %v2245, %v2357
        %2359 = vmatmul.f32.gmra.mxu0 %v1295
        %v2360 = vpop.f32.mrf.mxu0
        %v2361 = vadd.f32 %v2248, %v2360
        %2362 = vmatmul.f32.gmra.mxu0 %v1304
        %v2363 = vpop.f32.mrf.mxu0
        %v2364 = vadd.f32 %v2251, %v2363
        %2365 = vmatmul.f32.gmra.mxu0 %v1313
        %v2366 = vpop.f32.mrf.mxu0
        %v2367 = vadd.f32 %v2254, %v2366
        %2368 = vmatmul.f32.gmra.mxu0 %v1322
        %v2369 = vpop.f32.mrf.mxu0
        %v2370 = vadd.f32 %v2257, %v2369
        %2371 = vmatmul.f32.gmra.mxu0 %v1331
        %v2372 = vpop.f32.mrf.mxu0
        %v2373 = vadd.f32 %v2260, %v2372
        %2374 = vmatmul.f32.gmra.mxu0 %v1340
        %v2375 = vpop.f32.mrf.mxu0
        %v2376 = vadd.f32 %v2263, %v2375
        %2377 = vmatmul.f32.gmra.mxu0 %v1349
        %v2378 = vpop.f32.mrf.mxu0
        %v2379 = vadd.f32 %v2266, %v2378
        %2380 = vmatmul.f32.gmra.mxu0 %v1358
        %v2381 = vpop.f32.mrf.mxu0
        %v2382 = vadd.f32 %v2269, %v2381
        %2383 = vmatmul.f32.gmra.mxu0 %v1367
        %v2384 = vpop.f32.mrf.mxu0
        %v2385 = vadd.f32 %v2272, %v2384
        %2386 = vmatmul.f32.gmra.mxu0 %v1376
        %v2387 = vpop.f32.mrf.mxu0
        %v2388 = vadd.f32 %v2275, %v2387
        %2389 = vmatmul.f32.gmra.mxu0 %v1385
        %v2390 = vpop.f32.mrf.mxu0
        %v2391 = vadd.f32 %v2278, %v2390
        %2392 = vmatmul.f32.gmra.mxu0 %v1394
        %v2393 = vpop.f32.mrf.mxu0
        %v2394 = vadd.f32 %v2281, %v2393
        %2395 = vmatmul.f32.gmra.mxu0 %v1403
        %v2396 = vpop.f32.mrf.mxu0
        %v2397 = vadd.f32 %v2284, %v2396
        %2398 = vmatmul.f32.gmra.mxu0 %v1412
        %v2399 = vpop.f32.mrf.mxu0
        %v2400 = vadd.f32 %v2287, %v2399
        %2401 = vmatmul.f32.gmra.mxu0 %v1421
        %v2402 = vpop.f32.mrf.mxu0
        %v2403 = vadd.f32 %v2290, %v2402
        %2404 = vmatmul.f32.gmra.mxu0 %v1430
        %v2405 = vpop.f32.mrf.mxu0
        %v2406 = vadd.f32 %v2293, %v2405
        %2407 = vmatmul.f32.gmra.mxu0 %v1439
        %v2408 = vpop.f32.mrf.mxu0
        %v2409 = vadd.f32 %v2296, %v2408
        %2410 = vmatmul.f32.gmra.mxu0 %v1448
        %v2411 = vpop.f32.mrf.mxu0
        %v2412 = vadd.f32 %v2299, %v2411
        %2413 = vmatmul.f32.gmra.mxu0 %v1457
        %v2414 = vpop.f32.mrf.mxu0
        %v2415 = vadd.f32 %v2302, %v2414
        %2416 = vmatmul.f32.gmra.mxu0 %v1466
        %v2417 = vpop.f32.mrf.mxu0
        %v2418 = vadd.f32 %v2305, %v2417
        %2419 = vmatmul.f32.gmra.mxu0 %v1475
        %v2420 = vpop.f32.mrf.mxu0
        %v2421 = vadd.f32 %v2308, %v2420
        %2422 = vmatmul.f32.gmra.mxu0 %v1484
        %v2423 = vpop.f32.mrf.mxu0
        %v2424 = vadd.f32 %v2311, %v2423
        %2425 = vdwg.mxu0
        %2426 = vmatpush.msra.mxu0 %v1614
        %2427 = vmatpush.msra.mxu0 %v1613
        %2428 = vmatpush.msra.mxu0 %v1612
        %2429 = vmatpush.msra.mxu0 %v1611
        %2430 = vmatpush.msra.mxu0 %v1610
        %2431 = vmatpush.msra.mxu0 %v1609
        %2432 = vmatpush.msra.mxu0 %v1608
        %2433 = vmatpush.msra.mxu0 %v1607
        %2434 = vmatpush.msra.mxu0 %v1606
        %2435 = vmatpush.msra.mxu0 %v1605
        %2436 = vmatpush.msra.mxu0 %v1604
        %2437 = vmatpush.msra.mxu0 %v1603
        %2438 = vmatpush.msra.mxu0 %v1602
        %2439 = vmatpush.msra.mxu0 %v1601
        %2440 = vmatpush.msra.mxu0 %v1600
        %2441 = vmatpush.msra.mxu0 %v1599
        %2442 = vmatmul.f32.gmra.mxu0 %v1206
        %v2443 = vpop.f32.mrf.mxu0
        %v2444 = vadd.f32 %v2331, %v2443
        %2445 = vmatmul.f32.gmra.mxu0 %v1215
        %v2446 = vpop.f32.mrf.mxu0
        %v2447 = vadd.f32 %v2334, %v2446
        %2448 = vmatmul.f32.gmra.mxu0 %v1224
        %v2449 = vpop.f32.mrf.mxu0
        %v2450 = vadd.f32 %v2337, %v2449
        %2451 = vmatmul.f32.gmra.mxu0 %v1233
        %v2452 = vpop.f32.mrf.mxu0
        %v2453 = vadd.f32 %v2340, %v2452
        %2454 = vmatmul.f32.gmra.mxu0 %v1242
        %v2455 = vpop.f32.mrf.mxu0
        %v2456 = vadd.f32 %v2343, %v2455
        %2457 = vmatmul.f32.gmra.mxu0 %v1251
        %v2458 = vpop.f32.mrf.mxu0
        %v2459 = vadd.f32 %v2346, %v2458
        %2460 = vmatmul.f32.gmra.mxu0 %v1260
        %v2461 = vpop.f32.mrf.mxu0
        %v2462 = vadd.f32 %v2349, %v2461
        %2463 = vmatmul.f32.gmra.mxu0 %v1269
        %v2464 = vpop.f32.mrf.mxu0
        %v2465 = vadd.f32 %v2352, %v2464
        %2466 = vmatmul.f32.gmra.mxu0 %v1278
        %v2467 = vpop.f32.mrf.mxu0
        %v2468 = vadd.f32 %v2355, %v2467
        %2469 = vmatmul.f32.gmra.mxu0 %v1287
        %v2470 = vpop.f32.mrf.mxu0
        %v2471 = vadd.f32 %v2358, %v2470
        %2472 = vmatmul.f32.gmra.mxu0 %v1296
        %v2473 = vpop.f32.mrf.mxu0
        %v2474 = vadd.f32 %v2361, %v2473
        %2475 = vmatmul.f32.gmra.mxu0 %v1305
        %v2476 = vpop.f32.mrf.mxu0
        %v2477 = vadd.f32 %v2364, %v2476
        %2478 = vmatmul.f32.gmra.mxu0 %v1314
        %v2479 = vpop.f32.mrf.mxu0
        %v2480 = vadd.f32 %v2367, %v2479
        %2481 = vmatmul.f32.gmra.mxu0 %v1323
        %v2482 = vpop.f32.mrf.mxu0
        %v2483 = vadd.f32 %v2370, %v2482
        %2484 = vmatmul.f32.gmra.mxu0 %v1332
        %v2485 = vpop.f32.mrf.mxu0
        %v2486 = vadd.f32 %v2373, %v2485
        %2487 = vmatmul.f32.gmra.mxu0 %v1341
        %v2488 = vpop.f32.mrf.mxu0
        %v2489 = vadd.f32 %v2376, %v2488
        %2490 = vmatmul.f32.gmra.mxu0 %v1350
        %v2491 = vpop.f32.mrf.mxu0
        %v2492 = vadd.f32 %v2379, %v2491
        %2493 = vmatmul.f32.gmra.mxu0 %v1359
        %v2494 = vpop.f32.mrf.mxu0
        %v2495 = vadd.f32 %v2382, %v2494
        %2496 = vmatmul.f32.gmra.mxu0 %v1368
        %v2497 = vpop.f32.mrf.mxu0
        %v2498 = vadd.f32 %v2385, %v2497
        %2499 = vmatmul.f32.gmra.mxu0 %v1377
        %v2500 = vpop.f32.mrf.mxu0
        %v2501 = vadd.f32 %v2388, %v2500
        %2502 = vmatmul.f32.gmra.mxu0 %v1386
        %v2503 = vpop.f32.mrf.mxu0
        %v2504 = vadd.f32 %v2391, %v2503
        %2505 = vmatmul.f32.gmra.mxu0 %v1395
        %v2506 = vpop.f32.mrf.mxu0
        %v2507 = vadd.f32 %v2394, %v2506
        %2508 = vmatmul.f32.gmra.mxu0 %v1404
        %v2509 = vpop.f32.mrf.mxu0
        %v2510 = vadd.f32 %v2397, %v2509
        %2511 = vmatmul.f32.gmra.mxu0 %v1413
        %v2512 = vpop.f32.mrf.mxu0
        %v2513 = vadd.f32 %v2400, %v2512
        %2514 = vmatmul.f32.gmra.mxu0 %v1422
        %v2515 = vpop.f32.mrf.mxu0
        %v2516 = vadd.f32 %v2403, %v2515
        %2517 = vmatmul.f32.gmra.mxu0 %v1431
        %v2518 = vpop.f32.mrf.mxu0
        %v2519 = vadd.f32 %v2406, %v2518
        %2520 = vmatmul.f32.gmra.mxu0 %v1440
        %v2521 = vpop.f32.mrf.mxu0
        %v2522 = vadd.f32 %v2409, %v2521
        %2523 = vmatmul.f32.gmra.mxu0 %v1449
        %v2524 = vpop.f32.mrf.mxu0
        %v2525 = vadd.f32 %v2412, %v2524
        %2526 = vmatmul.f32.gmra.mxu0 %v1458
        %v2527 = vpop.f32.mrf.mxu0
        %v2528 = vadd.f32 %v2415, %v2527
        %2529 = vmatmul.f32.gmra.mxu0 %v1467
        %v2530 = vpop.f32.mrf.mxu0
        %v2531 = vadd.f32 %v2418, %v2530
        %2532 = vmatmul.f32.gmra.mxu0 %v1476
        %v2533 = vpop.f32.mrf.mxu0
        %v2534 = vadd.f32 %v2421, %v2533
        %2535 = vmatmul.f32.gmra.mxu0 %v1485
        %v2536 = vpop.f32.mrf.mxu0
        %v2537 = vadd.f32 %v2424, %v2536
        %2538 = vdwg.mxu0
        %2539 = vmatpush.msra.mxu0 %v1630
        %2540 = vmatpush.msra.mxu0 %v1629
        %2541 = vmatpush.msra.mxu0 %v1628
        %2542 = vmatpush.msra.mxu0 %v1627
        %2543 = vmatpush.msra.mxu0 %v1626
        %2544 = vmatpush.msra.mxu0 %v1625
        %2545 = vmatpush.msra.mxu0 %v1624
        %2546 = vmatpush.msra.mxu0 %v1623
        %2547 = vmatpush.msra.mxu0 %v1622
        %2548 = vmatpush.msra.mxu0 %v1621
        %2549 = vmatpush.msra.mxu0 %v1620
        %2550 = vmatpush.msra.mxu0 %v1619
        %2551 = vmatpush.msra.mxu0 %v1618
        %2552 = vmatpush.msra.mxu0 %v1617
        %2553 = vmatpush.msra.mxu0 %v1616
        %2554 = vmatpush.msra.mxu0 %v1615
        %2555 = vmatmul.f32.gmra.mxu0 %v1207
        %v2556 = vpop.f32.mrf.mxu0
        %v2557 = vadd.f32 %v2444, %v2556
        %2558 = vmatmul.f32.gmra.mxu0 %v1216
        %v2559 = vpop.f32.mrf.mxu0
        %v2560 = vadd.f32 %v2447, %v2559
        %2561 = vmatmul.f32.gmra.mxu0 %v1225
        %v2562 = vpop.f32.mrf.mxu0
        %v2563 = vadd.f32 %v2450, %v2562
        %2564 = vmatmul.f32.gmra.mxu0 %v1234
        %v2565 = vpop.f32.mrf.mxu0
        %v2566 = vadd.f32 %v2453, %v2565
        %2567 = vmatmul.f32.gmra.mxu0 %v1243
        %v2568 = vpop.f32.mrf.mxu0
        %v2569 = vadd.f32 %v2456, %v2568
        %2570 = vmatmul.f32.gmra.mxu0 %v1252
        %v2571 = vpop.f32.mrf.mxu0
        %v2572 = vadd.f32 %v2459, %v2571
        %2573 = vmatmul.f32.gmra.mxu0 %v1261
        %v2574 = vpop.f32.mrf.mxu0
        %v2575 = vadd.f32 %v2462, %v2574
        %2576 = vmatmul.f32.gmra.mxu0 %v1270
        %v2577 = vpop.f32.mrf.mxu0
        %v2578 = vadd.f32 %v2465, %v2577
        %2579 = vmatmul.f32.gmra.mxu0 %v1279
        %v2580 = vpop.f32.mrf.mxu0
        %v2581 = vadd.f32 %v2468, %v2580
        %2582 = vmatmul.f32.gmra.mxu0 %v1288
        %v2583 = vpop.f32.mrf.mxu0
        %v2584 = vadd.f32 %v2471, %v2583
        %2585 = vmatmul.f32.gmra.mxu0 %v1297
        %v2586 = vpop.f32.mrf.mxu0
        %v2587 = vadd.f32 %v2474, %v2586
        %2588 = vmatmul.f32.gmra.mxu0 %v1306
        %v2589 = vpop.f32.mrf.mxu0
        %v2590 = vadd.f32 %v2477, %v2589
        %2591 = vmatmul.f32.gmra.mxu0 %v1315
        %v2592 = vpop.f32.mrf.mxu0
        %v2593 = vadd.f32 %v2480, %v2592
        %2594 = vmatmul.f32.gmra.mxu0 %v1324
        %v2595 = vpop.f32.mrf.mxu0
        %v2596 = vadd.f32 %v2483, %v2595
        %2597 = vmatmul.f32.gmra.mxu0 %v1333
        %v2598 = vpop.f32.mrf.mxu0
        %v2599 = vadd.f32 %v2486, %v2598
        %2600 = vmatmul.f32.gmra.mxu0 %v1342
        %v2601 = vpop.f32.mrf.mxu0
        %v2602 = vadd.f32 %v2489, %v2601
        %2603 = vmatmul.f32.gmra.mxu0 %v1351
        %v2604 = vpop.f32.mrf.mxu0
        %v2605 = vadd.f32 %v2492, %v2604
        %2606 = vmatmul.f32.gmra.mxu0 %v1360
        %v2607 = vpop.f32.mrf.mxu0
        %v2608 = vadd.f32 %v2495, %v2607
        %2609 = vmatmul.f32.gmra.mxu0 %v1369
        %v2610 = vpop.f32.mrf.mxu0
        %v2611 = vadd.f32 %v2498, %v2610
        %2612 = vmatmul.f32.gmra.mxu0 %v1378
        %v2613 = vpop.f32.mrf.mxu0
        %v2614 = vadd.f32 %v2501, %v2613
        %2615 = vmatmul.f32.gmra.mxu0 %v1387
        %v2616 = vpop.f32.mrf.mxu0
        %v2617 = vadd.f32 %v2504, %v2616
        %2618 = vmatmul.f32.gmra.mxu0 %v1396
        %v2619 = vpop.f32.mrf.mxu0
        %v2620 = vadd.f32 %v2507, %v2619
        %2621 = vmatmul.f32.gmra.mxu0 %v1405
        %v2622 = vpop.f32.mrf.mxu0
        %v2623 = vadd.f32 %v2510, %v2622
        %2624 = vmatmul.f32.gmra.mxu0 %v1414
        %v2625 = vpop.f32.mrf.mxu0
        %v2626 = vadd.f32 %v2513, %v2625
        %2627 = vmatmul.f32.gmra.mxu0 %v1423
        %v2628 = vpop.f32.mrf.mxu0
        %v2629 = vadd.f32 %v2516, %v2628
        %2630 = vmatmul.f32.gmra.mxu0 %v1432
        %v2631 = vpop.f32.mrf.mxu0
        %v2632 = vadd.f32 %v2519, %v2631
        %2633 = vmatmul.f32.gmra.mxu0 %v1441
        %v2634 = vpop.f32.mrf.mxu0
        %v2635 = vadd.f32 %v2522, %v2634
        %2636 = vmatmul.f32.gmra.mxu0 %v1450
        %v2637 = vpop.f32.mrf.mxu0
        %v2638 = vadd.f32 %v2525, %v2637
        %2639 = vmatmul.f32.gmra.mxu0 %v1459
        %v2640 = vpop.f32.mrf.mxu0
        %v2641 = vadd.f32 %v2528, %v2640
        %2642 = vmatmul.f32.gmra.mxu0 %v1468
        %v2643 = vpop.f32.mrf.mxu0
        %v2644 = vadd.f32 %v2531, %v2643
        %2645 = vmatmul.f32.gmra.mxu0 %v1477
        %v2646 = vpop.f32.mrf.mxu0
        %v2647 = vadd.f32 %v2534, %v2646
        %2648 = vmatmul.f32.gmra.mxu0 %v1486
        %v2649 = vpop.f32.mrf.mxu0
        %v2650 = vadd.f32 %v2537, %v2649
        %2651 = vdwg.mxu0
        %v2652 = vmax.f32 %v2557, 0.0
        %v2653 = vmax.f32 %v2560, 0.0
        %v2654 = vmax.f32 %v2563, 0.0
        %v2655 = vmax.f32 %v2566, 0.0
        %v2656 = vmax.f32 %v2569, 0.0
        %v2657 = vmax.f32 %v2572, 0.0
        %v2658 = vmax.f32 %v2575, 0.0
        %v2659 = vmax.f32 %v2578, 0.0
        %v2660 = vmax.f32 %v2581, 0.0
        %v2661 = vmax.f32 %v2584, 0.0
        %v2662 = vmax.f32 %v2587, 0.0
        %v2663 = vmax.f32 %v2590, 0.0
        %v2664 = vmax.f32 %v2593, 0.0
        %v2665 = vmax.f32 %v2596, 0.0
        %v2666 = vmax.f32 %v2599, 0.0
        %v2667 = vmax.f32 %v2602, 0.0
        %v2668 = vmax.f32 %v2605, 0.0
        %v2669 = vmax.f32 %v2608, 0.0
        %v2670 = vmax.f32 %v2611, 0.0
        %v2671 = vmax.f32 %v2614, 0.0
        %v2672 = vmax.f32 %v2617, 0.0
        %v2673 = vmax.f32 %v2620, 0.0
        %v2674 = vmax.f32 %v2623, 0.0
        %v2675 = vmax.f32 %v2626, 0.0
        %v2676 = vmax.f32 %v2629, 0.0
        %v2677 = vmax.f32 %v2632, 0.0
        %v2678 = vmax.f32 %v2635, 0.0
        %v2679 = vmax.f32 %v2638, 0.0
        %v2680 = vmax.f32 %v2641, 0.0
        %v2681 = vmax.f32 %v2644, 0.0
        %v2682 = vmax.f32 %v2647, 0.0
        %v2683 = vmax.f32 %v2650, 0.0
        %v2684 = vld [vmem:[#allocation10] sm:$0xff]
        %v2685 = vld [vmem:[#allocation10 + $0x8] sm:$0xff]
        %v2686 = vld [vmem:[#allocation10 + $0x10] sm:$0xff]
        %v2687 = vld [vmem:[#allocation10 + $0x18] sm:$0xff]
        %v2688 = vld [vmem:[#allocation10 + $0x20] sm:$0xff]
        %v2689 = vld [vmem:[#allocation10 + $0x28] sm:$0xff]
        %v2690 = vld [vmem:[#allocation10 + $0x30] sm:$0xff]
        %v2691 = vld [vmem:[#allocation10 + $0x38] sm:$0xff]
        %v2692 = vld [vmem:[#allocation10 + $0x40] sm:$0xff]
        %v2693 = vld [vmem:[#allocation10 + $0x48] sm:$0xff]
        %v2694 = vld [vmem:[#allocation10 + $0x50] sm:$0xff]
        %v2695 = vld [vmem:[#allocation10 + $0x58] sm:$0xff]
        %v2696 = vld [vmem:[#allocation10 + $0x60] sm:$0xff]
        %v2697 = vld [vmem:[#allocation10 + $0x68] sm:$0xff]
        %v2698 = vld [vmem:[#allocation10 + $0x70] sm:$0xff]
        %v2699 = vld [vmem:[#allocation10 + $0x78] sm:$0xff]
        %v2700 = vld [vmem:[%s6] sm:$0x1]
        %v2702 = vperm.slane %v2700, 0
        %2704 = vmatpush.msra.mxu0 %v2699
        %2705 = vmatpush.msra.mxu0 %v2698
        %2706 = vmatpush.msra.mxu0 %v2697
        %2707 = vmatpush.msra.mxu0 %v2696
        %2708 = vmatpush.msra.mxu0 %v2695
        %2709 = vmatpush.msra.mxu0 %v2694
        %2710 = vmatpush.msra.mxu0 %v2693
        %2711 = vmatpush.msra.mxu0 %v2692
        %2712 = vmatpush.msra.mxu0 %v2691
        %2713 = vmatpush.msra.mxu0 %v2690
        %2714 = vmatpush.msra.mxu0 %v2689
        %2715 = vmatpush.msra.mxu0 %v2688
        %2716 = vmatpush.msra.mxu0 %v2687
        %2717 = vmatpush.msra.mxu0 %v2686
        %2718 = vmatpush.msra.mxu0 %v2685
        %2719 = vmatpush.msra.mxu0 %v2684
        %2720 = vmatmul.f32.gmra.mxu0 %v2652
        %v2721 = vpop.f32.mrf.mxu0
        %v2722 = vadd.f32 %v2702, %v2721
        %2723 = vmatmul.f32.gmra.mxu0 %v2653
        %v2724 = vpop.f32.mrf.mxu0
        %v2725 = vadd.f32 %v2702, %v2724
        %2726 = vmatmul.f32.gmra.mxu0 %v2654
        %v2727 = vpop.f32.mrf.mxu0
        %v2728 = vadd.f32 %v2702, %v2727
        %2729 = vmatmul.f32.gmra.mxu0 %v2655
        %v2730 = vpop.f32.mrf.mxu0
        %v2731 = vadd.f32 %v2702, %v2730
        %2732 = vmatmul.f32.gmra.mxu0 %v2656
        %v2733 = vpop.f32.mrf.mxu0
        %v2734 = vadd.f32 %v2702, %v2733
        %2735 = vmatmul.f32.gmra.mxu0 %v2657
        %v2736 = vpop.f32.mrf.mxu0
        %v2737 = vadd.f32 %v2702, %v2736
        %2738 = vmatmul.f32.gmra.mxu0 %v2658
        %v2739 = vpop.f32.mrf.mxu0
        %v2740 = vadd.f32 %v2702, %v2739
        %2741 = vmatmul.f32.gmra.mxu0 %v2659
        %v2742 = vpop.f32.mrf.mxu0
        %v2743 = vadd.f32 %v2702, %v2742
        %2744 = vmatmul.f32.gmra.mxu0 %v2660
        %v2745 = vpop.f32.mrf.mxu0
        %v2746 = vadd.f32 %v2702, %v2745
        %2747 = vmatmul.f32.gmra.mxu0 %v2661
        %v2748 = vpop.f32.mrf.mxu0
        %v2749 = vadd.f32 %v2702, %v2748
        %2750 = vmatmul.f32.gmra.mxu0 %v2662
        %v2751 = vpop.f32.mrf.mxu0
        %v2752 = vadd.f32 %v2702, %v2751
        %2753 = vmatmul.f32.gmra.mxu0 %v2663
        %v2754 = vpop.f32.mrf.mxu0
        %v2755 = vadd.f32 %v2702, %v2754
        %2756 = vmatmul.f32.gmra.mxu0 %v2664
        %v2757 = vpop.f32.mrf.mxu0
        %v2758 = vadd.f32 %v2702, %v2757
        %2759 = vmatmul.f32.gmra.mxu0 %v2665
        %v2760 = vpop.f32.mrf.mxu0
        %v2761 = vadd.f32 %v2702, %v2760
        %2762 = vmatmul.f32.gmra.mxu0 %v2666
        %v2763 = vpop.f32.mrf.mxu0
        %v2764 = vadd.f32 %v2702, %v2763
        %2765 = vmatmul.f32.gmra.mxu0 %v2667
        %v2766 = vpop.f32.mrf.mxu0
        %v2767 = vadd.f32 %v2702, %v2766
        %2768 = vmatmul.f32.gmra.mxu0 %v2668
        %v2769 = vpop.f32.mrf.mxu0
        %v2770 = vadd.f32 %v2702, %v2769
        %2771 = vmatmul.f32.gmra.mxu0 %v2669
        %v2772 = vpop.f32.mrf.mxu0
        %v2773 = vadd.f32 %v2702, %v2772
        %2774 = vmatmul.f32.gmra.mxu0 %v2670
        %v2775 = vpop.f32.mrf.mxu0
        %v2776 = vadd.f32 %v2702, %v2775
        %2777 = vmatmul.f32.gmra.mxu0 %v2671
        %v2778 = vpop.f32.mrf.mxu0
        %v2779 = vadd.f32 %v2702, %v2778
        %2780 = vmatmul.f32.gmra.mxu0 %v2672
        %v2781 = vpop.f32.mrf.mxu0
        %v2782 = vadd.f32 %v2702, %v2781
        %2783 = vmatmul.f32.gmra.mxu0 %v2673
        %v2784 = vpop.f32.mrf.mxu0
        %v2785 = vadd.f32 %v2702, %v2784
        %2786 = vmatmul.f32.gmra.mxu0 %v2674
        %v2787 = vpop.f32.mrf.mxu0
        %v2788 = vadd.f32 %v2702, %v2787
        %2789 = vmatmul.f32.gmra.mxu0 %v2675
        %v2790 = vpop.f32.mrf.mxu0
        %v2791 = vadd.f32 %v2702, %v2790
        %2792 = vmatmul.f32.gmra.mxu0 %v2676
        %v2793 = vpop.f32.mrf.mxu0
        %v2794 = vadd.f32 %v2702, %v2793
        %2795 = vmatmul.f32.gmra.mxu0 %v2677
        %v2796 = vpop.f32.mrf.mxu0
        %v2797 = vadd.f32 %v2702, %v2796
        %2798 = vmatmul.f32.gmra.mxu0 %v2678
        %v2799 = vpop.f32.mrf.mxu0
        %v2800 = vadd.f32 %v2702, %v2799
        %2801 = vmatmul.f32.gmra.mxu0 %v2679
        %v2802 = vpop.f32.mrf.mxu0
        %v2803 = vadd.f32 %v2702, %v2802
        %2804 = vmatmul.f32.gmra.mxu0 %v2680
        %v2805 = vpop.f32.mrf.mxu0
        %v2806 = vadd.f32 %v2702, %v2805
        %2807 = vmatmul.f32.gmra.mxu0 %v2681
        %v2808 = vpop.f32.mrf.mxu0
        %v2809 = vadd.f32 %v2702, %v2808
        %2810 = vmatmul.f32.gmra.mxu0 %v2682
        %v2811 = vpop.f32.mrf.mxu0
        %v2812 = vadd.f32 %v2702, %v2811
        %2813 = vmatmul.f32.gmra.mxu0 %v2683
        %v2814 = vpop.f32.mrf.mxu0
        %v2815 = vadd.f32 %v2702, %v2814
        %2816 = vdwg.mxu0
        %v2817 = vadd.f32 %v2722, %v349
        %v2818 = vadd.f32 %v2725, %v350
        %v2819 = vadd.f32 %v2728, %v351
        %v2820 = vadd.f32 %v2731, %v352
        %v2821 = vadd.f32 %v2734, %v353
        %v2822 = vadd.f32 %v2737, %v354
        %v2823 = vadd.f32 %v2740, %v355
        %v2824 = vadd.f32 %v2743, %v356
        %v2825 = vadd.f32 %v2746, %v357
        %v2826 = vadd.f32 %v2749, %v358
        %v2827 = vadd.f32 %v2752, %v359
        %v2828 = vadd.f32 %v2755, %v360
        %v2829 = vadd.f32 %v2758, %v361
        %v2830 = vadd.f32 %v2761, %v362
        %v2831 = vadd.f32 %v2764, %v363
        %v2832 = vadd.f32 %v2767, %v364
        %v2833 = vadd.f32 %v2770, %v365
        %v2834 = vadd.f32 %v2773, %v366
        %v2835 = vadd.f32 %v2776, %v367
        %v2836 = vadd.f32 %v2779, %v368
        %v2837 = vadd.f32 %v2782, %v369
        %v2838 = vadd.f32 %v2785, %v370
        %v2839 = vadd.f32 %v2788, %v371
        %v2840 = vadd.f32 %v2791, %v372
        %v2841 = vadd.f32 %v2794, %v373
        %v2842 = vadd.f32 %v2797, %v374
        %v2843 = vadd.f32 %v2800, %v375
        %v2844 = vadd.f32 %v2803, %v376
        %v2845 = vadd.f32 %v2806, %v377
        %v2846 = vadd.f32 %v2809, %v378
        %v2847 = vadd.f32 %v2812, %v379
        %v2848 = vadd.f32 %v2815, %v380
        %v2849 = vmax.f32 %v2817, 0.0
        %v2850 = vmax.f32 %v2818, 0.0
        %v2851 = vmax.f32 %v2819, 0.0
        %v2852 = vmax.f32 %v2820, 0.0
        %v2853 = vmax.f32 %v2821, 0.0
        %v2854 = vmax.f32 %v2822, 0.0
        %v2855 = vmax.f32 %v2823, 0.0
        %v2856 = vmax.f32 %v2824, 0.0
        %v2857 = vmax.f32 %v2825, 0.0
        %v2858 = vmax.f32 %v2826, 0.0
        %v2859 = vmax.f32 %v2827, 0.0
        %v2860 = vmax.f32 %v2828, 0.0
        %v2861 = vmax.f32 %v2829, 0.0
        %v2862 = vmax.f32 %v2830, 0.0
        %v2863 = vmax.f32 %v2831, 0.0
        %v2864 = vmax.f32 %v2832, 0.0
        %v2865 = vmax.f32 %v2833, 0.0
        %v2866 = vmax.f32 %v2834, 0.0
        %v2867 = vmax.f32 %v2835, 0.0
        %v2868 = vmax.f32 %v2836, 0.0
        %v2869 = vmax.f32 %v2837, 0.0
        %v2870 = vmax.f32 %v2838, 0.0
        %v2871 = vmax.f32 %v2839, 0.0
        %v2872 = vmax.f32 %v2840, 0.0
        %v2873 = vmax.f32 %v2841, 0.0
        %v2874 = vmax.f32 %v2842, 0.0
        %v2875 = vmax.f32 %v2843, 0.0
        %v2876 = vmax.f32 %v2844, 0.0
        %v2877 = vmax.f32 %v2845, 0.0
        %v2878 = vmax.f32 %v2846, 0.0
        %v2879 = vmax.f32 %v2847, 0.0
        %v2880 = vmax.f32 %v2848, 0.0
        %2881 = vst [vmem:[%s348] sm:$0xff] %v2849
        %2882 = vst [vmem:[%s348 + $0x8] sm:$0xff] %v2850
        %2883 = vst [vmem:[%s348 + $0x10] sm:$0xff] %v2851
        %2884 = vst [vmem:[%s348 + $0x18] sm:$0xff] %v2852
        %2885 = vst [vmem:[%s348 + $0x20] sm:$0xff] %v2853
        %2886 = vst [vmem:[%s348 + $0x28] sm:$0xff] %v2854
        %2887 = vst [vmem:[%s348 + $0x30] sm:$0xff] %v2855
        %2888 = vst [vmem:[%s348 + $0x38] sm:$0xff] %v2856
        %2889 = vst [vmem:[%s348 + $0x40] sm:$0xff] %v2857
        %2890 = vst [vmem:[%s348 + $0x48] sm:$0xff] %v2858
        %2891 = vst [vmem:[%s348 + $0x50] sm:$0xff] %v2859
        %2892 = vst [vmem:[%s348 + $0x58] sm:$0xff] %v2860
        %2893 = vst [vmem:[%s348 + $0x60] sm:$0xff] %v2861
        %2894 = vst [vmem:[%s348 + $0x68] sm:$0xff] %v2862
        %2895 = vst [vmem:[%s348 + $0x70] sm:$0xff] %v2863
        %2896 = vst [vmem:[%s348 + $0x78] sm:$0xff] %v2864
        %2897 = vst [vmem:[%s348 + $0x80] sm:$0xff] %v2865
        %2898 = vst [vmem:[%s348 + $0x88] sm:$0xff] %v2866
        %2899 = vst [vmem:[%s348 + $0x90] sm:$0xff] %v2867
        %2900 = vst [vmem:[%s348 + $0x98] sm:$0xff] %v2868
        %2901 = vst [vmem:[%s348 + $0xa0] sm:$0xff] %v2869
        %2902 = vst [vmem:[%s348 + $0xa8] sm:$0xff] %v2870
        %2903 = vst [vmem:[%s348 + $0xb0] sm:$0xff] %v2871
        %2904 = vst [vmem:[%s348 + $0xb8] sm:$0xff] %v2872
        %2905 = vst [vmem:[%s348 + $0xc0] sm:$0xff] %v2873
        %2906 = vst [vmem:[%s348 + $0xc8] sm:$0xff] %v2874
        %2907 = vst [vmem:[%s348 + $0xd0] sm:$0xff] %v2875
        %2908 = vst [vmem:[%s348 + $0xd8] sm:$0xff] %v2876
        %2909 = vst [vmem:[%s348 + $0xe0] sm:$0xff] %v2877
        %2910 = vst [vmem:[%s348 + $0xe8] sm:$0xff] %v2878
        %2911 = vst [vmem:[%s348 + $0xf0] sm:$0xff] %v2879
        %2912 = vst [vmem:[%s348 + $0xf8] sm:$0xff] %v2880
        %s2913 = sand.u32 %s186, 1
        %s2914 = scalar_lea.sflag [#allocation6], %s2913
        %s2915 = sand.u32 %s186, 1
        %s2916 = smul.addr %s2915, 256
        %s2917 = scalar_lea.vmem [#allocation12], %s2916
        // Predicated region
        $region65: #{tpu_custom_call.1} parent=47 // pred_check
          %p2918 = pneg %p196
        $region66: #{tpu_custom_call.1} parent=47 // pred_check_branch
          %2920 = sbr.rel (%p2918) target = $region68
        $region67: #{tpu_custom_call.1} parent=47 // pred_region
          %2922 = vsyncadd %s2914, 0
          %s2923 = smul.addr %s26, 32
          %s2924 = smul.addr %s2923, 8
          %s2925 = scalar_lea.hbm %s7, %s2924
          %s2926 = sshll.u32 %s2917, 4
          %s2927 = int_to_ptr.vmem [resolvable:$true] %s2926
          %s2928 = sshll.u32 %s2925, 4
          %s2929 = int_to_ptr.hbm [resolvable:$true] %s2928
          %2934 = dma.vmem_to_hbm [thread:$0]  %s2927, 4096, %s2929, %s2914, 128, 128, 8
        $region68: #{tpu_custom_call.1} parent=47 // pred_fallthru
          _
      $region48: #{tpu_custom_call.1} parent=5 // pred_fallthru
        _
      %p2935 = scmp.le.s32.totalorder 2, %s21
      // Predicated region
      $region69: #{tpu_custom_call.1} parent=5 // pred_check
        %p2936 = pneg %p2935
      $region70: #{tpu_custom_call.1} parent=5 // pred_check_branch
        %2938 = sbr.rel (%p2936) target = $region72
      $region71: #{tpu_custom_call.1} parent=5 // pred_region
        %s2939 = ssub.s32 %s21, 2
        // Predicated region
        $region73: #{tpu_custom_call.1} parent=71 // pred_check
          %p2940 = pneg %p202
        $region74: #{tpu_custom_call.1} parent=71 // pred_check_branch
          %2942 = sbr.rel (%p2940) target = $region76
        $region75: #{tpu_custom_call.1} parent=71 // pred_region
          %s2943 = sand.u32 %s187, 1
          %s2944 = scalar_lea.sflag [#allocation6], %s2943
          %s2945 = sand.u32 %s187, 1
          %s2946 = smul.addr %s2945, 256
          %s2947 = scalar_lea.vmem [#allocation12], %s2946
          %2949 = dma.done %s2944, 4096
        $region76: #{tpu_custom_call.1} parent=71 // pred_fallthru
          _
      $region72: #{tpu_custom_call.1} parent=5 // pred_fallthru
        _
    $region6: #{tpu_custom_call.1} parent=1 // loop_footer
      %s25 = sadd.s32 1, %s21
    $region7: #{tpu_custom_call.1} parent=1 // loop_footer_branch
      %20 = sbr.rel target = $region3
    $region8: #{tpu_custom_call.1} parent=1 // loop_exit
      _
    %2950 = vsyncpa [#allocation5], 1
    %s2951 = scalar_lea.sflag [#allocation5], 1
    %2952 = vsyncpa %s2951, 1
    %2953 = vsyncpa [#allocation8], 1
    %2954 = vsyncpa [#allocation11], 1
    %2955 = vsyncpa [#allocation6], 1
    %s2956 = scalar_lea.sflag [#allocation6], 1
    %2957 = vsyncpa %s2956, 1

</llo_original>
